<compile_context>
chip_gen: v5e
topology: v5e:2x2
jax: 0.10.0
libtpu: 0.0.40
codegen_flags: <defaults>
</compile_context>

<pallas_src>
import functools

import numpy as np
import jax
import jax.numpy as jnp
from jax.experimental import pallas as pl
from jax.experimental.pallas import tpu as pltpu


# ---------------------------------------------------------------------------
# Grid generation (faithful port of the PyTorch module's numpy code)
# ---------------------------------------------------------------------------
def generateStrides(h, w):
    # TODO(synk): `generateStrides` is not defined in the provided source file;
    # we use the standard equirectangular 1/cos(latitude) horizontal stride,
    # clamped to [1, w], which is the conventional choice for this module family.
    strides = np.empty(h, dtype=np.int64)
    for i in range(h):
        lat = (i + 0.5) / h * np.pi - np.pi / 2.0
        s = int(round(1.0 / max(np.cos(lat), 1e-6)))
        strides[i] = max(1, min(s, w))
    return strides


def generateGrid(h, w):
    """Exact port of Equirect2Omni.generateGrid -> (1, H, W, 2) = (lat, lon)."""
    strides = generateStrides(h, w)
    grid = np.full((h, w, 2), w, dtype=np.int64)
    center = w // 2
    for i in range(h):
        grid[i, center] = [i, center]
        idx = 1
        while True:
            position = center + strides[i] * idx
            if w <= position or w <= center + idx:
                break
            grid[i, center + idx] = [i, position]
            idx += 1
        idx = 1
        while True:
            position = center - strides[i] * idx
            if position < 0 or center - idx < 0:
                break
            grid[i, center - idx] = [i, position]
            idx += 1
    return np.expand_dims(grid, 0)


TR = 8  # output rows per grid step (keeps the block's leading dim 8-aligned)


@functools.lru_cache(maxsize=None)
def _sampling_tables(H, W):
    """Host-side (cached) sparse-sampling tables for grid_sample(bilinear,
    align_corners=True, padding_mode='zeros') with the module's grid.

    Returns numpy arrays:
      rows_flat : (Hp*S,) int32   source row for (output row, slot), clamped
      x0t, x1t  : (Hp, W) int32   clamped horizontal tap columns per out pixel
      w0, w1    : (Hp, S*W) f32   per-slot blend weights for taps 0/1 (OOB -> 0)
      S, Hp     : ints            number of row slots, padded row count
    """
    pattern = generateGrid(H, W)[0].astype(np.float64)      # (H, W, 2) = (lat, lon)
    lat = pattern[..., 0]
    lon = pattern[..., 1]

    # align_corners=True: normalized coords -> pixel coords
    iy = lat * (H - 1) / H
    ix = lon * (W - 1) / W

    ix0 = np.floor(ix).astype(np.int64)
    ix1 = ix0 + 1
    wx1 = ix - ix0
    wx0 = 1.0 - wx1
    cw0 = wx0 * ((ix0 >= 0) & (ix0 <= W - 1))                # zeros-padding folded in
    cw1 = wx1 * ((ix1 >= 0) & (ix1 <= W - 1))
    x0c = np.clip(ix0, 0, W - 1).astype(np.int32)
    x1c = np.clip(ix1, 0, W - 1).astype(np.int32)

    # Row-slot decomposition: within one output row the latitude takes only a
    # few distinct values (the row index and the grid's fill sentinel); each
    # distinct value contributes two vertical taps (= two "slots").
    max_lat = max(len(np.unique(lat[i, :])) for i in range(H))
    S = 2 * max_lat

    Hp = ((H + TR - 1) // TR) * TR
    rows = np.zeros((Hp, S), dtype=np.int32)
    w0 = np.zeros((Hp, S, W), dtype=np.float32)
    w1 = np.zeros((Hp, S, W), dtype=np.float32)
    x0t = np.zeros((Hp, W), dtype=np.int32)
    x1t = np.zeros((Hp, W), dtype=np.int32)
    x0t[:H] = x0c
    x1t[:H] = x1c

    for i in range(H):
        for k, v in enumerate(np.unique(lat[i, :])):
            sel = (lat[i, :] == v).astype(np.float64)        # pixels using lat == v
            iy_v = v * (H - 1) / H
            iy0 = int(np.floor(iy_v))
            iy1 = iy0 + 1
            wy1 = iy_v - iy0
            wy0 = 1.0 - wy1
            vy0 = 1.0 if 0 <= iy0 <= H - 1 else 0.0
            vy1 = 1.0 if 0 <= iy1 <= H - 1 else 0.0
            rows[i, 2 * k] = min(max(iy0, 0), H - 1)
            rows[i, 2 * k + 1] = min(max(iy1, 0), H - 1)
            w0[i, 2 * k] = (sel * wy0 * vy0 * cw0[i]).astype(np.float32)
            w1[i, 2 * k] = (sel * wy0 * vy0 * cw1[i]).astype(np.float32)
            w0[i, 2 * k + 1] = (sel * wy1 * vy1 * cw0[i]).astype(np.float32)
            w1[i, 2 * k + 1] = (sel * wy1 * vy1 * cw1[i]).astype(np.float32)

    return (rows.reshape(-1).astype(np.int32),
            x0t, x1t,
            w0.reshape(Hp, S * W), w1.reshape(Hp, S * W),
            S, Hp)


# ---------------------------------------------------------------------------
# Pallas kernel: sparse 4-tap gather + blend for one block of TR output rows
# ---------------------------------------------------------------------------
def _e2o_kernel(rows_ref, x0_ref, x1_ref, w0_ref, w1_ref, img_ref, out_ref):
    """rows_ref : SMEM (Hp*S,) int32   (scalar prefetch) source row per (row, slot)
       x0_ref   : VMEM (TR, W) int32   horizontal tap-0 column per output pixel
       x1_ref   : VMEM (TR, W) int32   horizontal tap-1 column
       w0_ref   : VMEM (TR, S*W) f32   tap-0 weight per (slot, output pixel)
       w1_ref   : VMEM (TR, S*W) f32   tap-1 weight
       img_ref  : VMEM (H, B*C, W)     whole image, resident across the grid
       out_ref  : VMEM (TR, B*C, W)
    """
    i = pl.program_id(0)
    tr, bc, w = out_ref.shape
    s_slots = w0_ref.shape[1] // w

    # Source-column index: varies along axis 0 (input column), broadcast over
    # axis 1 (output column).
    col_iota = jax.lax.broadcasted_iota(jnp.int32, (w, w), 0)

    x0_blk = x0_ref[...]
    x1_blk = x1_ref[...]
    w0_blk = w0_ref[...]
    w1_blk = w1_ref[...]

    for t in range(tr):
        m0 = col_iota == x0_blk[t:t + 1, :]          # (W, W) one-hot column mask
        m1 = col_iota == x1_blk[t:t + 1, :]
        acc = jnp.zeros((bc, w), jnp.float32)
        for s in range(s_slots):
            r = rows_ref[(i * tr + t) * s_slots + s]          # scalar source row
            src = img_ref[r]                                  # (B*C, W) gathered row
            wt0 = w0_blk[t:t + 1, s * w:(s + 1) * w]          # (1, W)
            wt1 = w1_blk[t:t + 1, s * w:(s + 1) * w]
            # Sparse blend matrix: at most 2 non-zeros per output column.
            blend = jnp.where(m0, wt0, 0.0) + jnp.where(m1, wt1, 0.0)   # (W, W)
            acc = acc + jnp.dot(src, blend, preferred_element_type=jnp.float32)
        out_ref[t, :, :] = acc.astype(out_ref.dtype)


# ---------------------------------------------------------------------------
# Equirect2Omni forward
# ---------------------------------------------------------------------------
def equirect2omni_forward(img):
    """img: (B, C, H, W) float32 (NCHW). Returns (B, C, H, W) float32."""
    img = jnp.asarray(img, jnp.float32)
    B, C, H, W = img.shape
    rows_flat, x0t, x1t, w0, w1, S, Hp = _sampling_tables(H, W)
    BC = B * C

    # (B, C, H, W) -> (H, B*C, W): source rows on the leading (dynamically
    # indexable) axis, W stays lane-dense.  Note: the image block is held
    # fully resident in VMEM (fits comfortably for the sizes this module sees).
    img_t = jnp.transpose(img.reshape(BC, H, W), (1, 0, 2))

    out = pl.pallas_call(
        _e2o_kernel,
        out_shape=jax.ShapeDtypeStruct((Hp, BC, W), jnp.float32),
        grid_spec=pltpu.PrefetchScalarGridSpec(
            num_scalar_prefetch=1,
            grid=(Hp // TR,),
            in_specs=[
                pl.BlockSpec((TR, W), lambda i, rows: (i, 0)),        # x0 columns
                pl.BlockSpec((TR, W), lambda i, rows: (i, 0)),        # x1 columns
                pl.BlockSpec((TR, S * W), lambda i, rows: (i, 0)),    # tap-0 weights
                pl.BlockSpec((TR, S * W), lambda i, rows: (i, 0)),    # tap-1 weights
                pl.BlockSpec((H, BC, W), lambda i, rows: (0, 0, 0)),  # image, resident
            ],
            out_specs=pl.BlockSpec((TR, BC, W), lambda i, rows: (i, 0, 0)),
        ),
        compiler_params=pltpu.CompilerParams(
            dimension_semantics=("parallel",)),
    )(jnp.asarray(rows_flat), jnp.asarray(x0t), jnp.asarray(x1t),
      jnp.asarray(w0), jnp.asarray(w1), img_t)

    out = out[:H]                                             # drop row padding
    return jnp.transpose(out, (1, 0, 2)).reshape(B, C, H, W)


# ---------------------------------------------------------------------------
# Pure-numpy reference: grid_sample(bilinear, align_corners=True, zeros)
# ---------------------------------------------------------------------------
def _reference_forward(img_np):
    B, C, H, W = img_np.shape
    pattern = generateGrid(H, W)[0].astype(np.float64)
    iy = pattern[..., 0] * (H - 1) / H
    ix = pattern[..., 1] * (W - 1) / W
    y0 = np.floor(iy).astype(np.int64)
    y1 = y0 + 1
    x0 = np.floor(ix).astype(np.int64)
    x1 = x0 + 1
    wy1 = iy - y0
    wy0 = 1.0 - wy1
    wx1 = ix - x0
    wx0 = 1.0 - wx1
    out = np.zeros((B, C, H, W), dtype=np.float64)
    for yy, wy in ((y0, wy0), (y1, wy1)):
        for xx, wx in ((x0, wx0), (x1, wx1)):
            valid = (yy >= 0) & (yy < H) & (xx >= 0) & (xx < W)
            yc = np.clip(yy, 0, H - 1)
            xc = np.clip(xx, 0, W - 1)
            out += (wy * wx * valid)[None, None] * img_np[:, :, yc, xc]
    return out.astype(np.float32)


if __name__ == "__main__":
    key = jax.random.PRNGKey(0)
    B, C, H, W = 2, 4, 16, 16
    img = jax.random.normal(key, (B, C, H, W), dtype=jnp.float32)

    out = equirect2omni_forward(img)
    out = jax.block_until_ready(out)

    ref = _reference_forward(np.asarray(img))
    assert out.shape == (B, C, H, W)
    assert np.allclose(np.asarray(out), ref, atol=1e-5, rtol=1e-5)

    print("KERNEL_OK")
</pallas_src>

<mosaic_0001>
module attributes {stable_mosaic.version = 11 : i64} {
  func.func @_e2o_kernel(%arg0: i32, %arg1: memref<64xi32, #tpu.memory_space<smem>>, %arg2: memref<8x16xi32, #tpu.memory_space<vmem>>, %arg3: memref<8x16xi32, #tpu.memory_space<vmem>>, %arg4: memref<8x64xf32, #tpu.memory_space<vmem>>, %arg5: memref<8x64xf32, #tpu.memory_space<vmem>>, %arg6: memref<16x8x16xf32, #tpu.memory_space<vmem>>, %arg7: memref<8x8x16xf32, #tpu.memory_space<vmem>>) attributes {dimension_semantics = [#tpu.dimension_semantics<parallel>], iteration_bounds = array<i64: 2>, scalar_prefetch = 1 : i64, scratch_operands = 0 : i64, tpu.core_type = #tpu.core_type<tc>, window_params = [{transform_indices = @transform_0, window_bounds = array<i64: 8, 16>}, {transform_indices = @transform_1, window_bounds = array<i64: 8, 16>}, {transform_indices = @transform_2, window_bounds = array<i64: 8, 64>}, {transform_indices = @transform_3, window_bounds = array<i64: 8, 64>}, {pipeline_mode = #tpu.pipeline_mode<synchronous>, transform_indices = @transform_4, window_bounds = array<i64: 16, 8, 16>}, {transform_indices = @transform_5, window_bounds = array<i64: 8, 8, 16>}]} {
    %0 = tpu.iota {dimensions = array<i32: 0>} : vector<16x16xi32>
    %c0 = arith.constant 0 : index
    %c0_0 = arith.constant 0 : index
    %1 = vector.load %arg2[%c0, %c0_0] : memref<8x16xi32, #tpu.memory_space<vmem>>, vector<8x16xi32>
    %c0_1 = arith.constant 0 : index
    %c0_2 = arith.constant 0 : index
    %2 = vector.load %arg3[%c0_1, %c0_2] : memref<8x16xi32, #tpu.memory_space<vmem>>, vector<8x16xi32>
    %c0_3 = arith.constant 0 : index
    %c0_4 = arith.constant 0 : index
    %3 = vector.load %arg4[%c0_3, %c0_4] : memref<8x64xf32, #tpu.memory_space<vmem>>, vector<8x64xf32>
    %c0_5 = arith.constant 0 : index
    %c0_6 = arith.constant 0 : index
    %4 = vector.load %arg5[%c0_5, %c0_6] : memref<8x64xf32, #tpu.memory_space<vmem>>, vector<8x64xf32>
    %5 = vector.extract_strided_slice %1 {offsets = [0, 0], sizes = [1, 16], strides = [1, 1]} : vector<8x16xi32> to vector<1x16xi32>
    %6 = vector.broadcast %5 : vector<1x16xi32> to vector<16x16xi32>
    %7 = arith.cmpi eq, %0, %6 : vector<16x16xi32>
    %8 = vector.extract_strided_slice %2 {offsets = [0, 0], sizes = [1, 16], strides = [1, 1]} : vector<8x16xi32> to vector<1x16xi32>
    %9 = vector.broadcast %8 : vector<1x16xi32> to vector<16x16xi32>
    %10 = arith.cmpi eq, %0, %9 : vector<16x16xi32>
    %cst = arith.constant 0.000000e+00 : f32
    %11 = vector.broadcast %cst : f32 to vector<8x16xf32>
    %c8_i32 = arith.constant 8 : i32
    %12 = arith.muli %arg0, %c8_i32 : i32
    %c0_i32 = arith.constant 0 : i32
    %13 = arith.addi %12, %c0_i32 : i32
    %c4_i32 = arith.constant 4 : i32
    %14 = arith.muli %13, %c4_i32 : i32
    %c0_i32_7 = arith.constant 0 : i32
    %15 = arith.addi %14, %c0_i32_7 : i32
    %16 = arith.index_cast %15 : i32 to index
    %17 = memref.load %arg1[%16] : memref<64xi32, #tpu.memory_space<smem>>
    %18 = arith.index_cast %17 : i32 to index
    %c0_8 = arith.constant 0 : index
    %c0_9 = arith.constant 0 : index
    %19 = vector.load %arg6[%18, %c0_8, %c0_9] : memref<16x8x16xf32, #tpu.memory_space<vmem>>, vector<1x8x16xf32>
    %20 = vector.shape_cast %19 : vector<1x8x16xf32> to vector<8x16xf32>
    %21 = vector.extract_strided_slice %3 {offsets = [0, 0], sizes = [1, 16], strides = [1, 1]} : vector<8x64xf32> to vector<1x16xf32>
    %22 = vector.extract_strided_slice %4 {offsets = [0, 0], sizes = [1, 16], strides = [1, 1]} : vector<8x64xf32> to vector<1x16xf32>
    %cst_10 = arith.constant 0.000000e+00 : f32
    %23 = vector.shape_cast %21 : vector<1x16xf32> to vector<1x16xf32>
    %24 = vector.broadcast %23 : vector<1x16xf32> to vector<16x16xf32>
    %25 = vector.broadcast %cst_10 : f32 to vector<16x16xf32>
    %26 = arith.select %7, %24, %25 : vector<16x16xi1>, vector<16x16xf32>
    %cst_11 = arith.constant 0.000000e+00 : f32
    %27 = vector.shape_cast %22 : vector<1x16xf32> to vector<1x16xf32>
    %28 = vector.broadcast %27 : vector<1x16xf32> to vector<16x16xf32>
    %29 = vector.broadcast %cst_11 : f32 to vector<16x16xf32>
    %30 = arith.select %10, %28, %29 : vector<16x16xi1>, vector<16x16xf32>
    %31 = arith.addf %26, %30 : vector<16x16xf32>
    %cst_12 = arith.constant dense<0.000000e+00> : vector<8x16xf32>
    %32 = tpu.matmul %20, %31, %cst_12 {dimension_numbers = #tpu.dot_dimension_numbers<[1], [0], [0], [1], [0, 0, 1, 1], [], []>} : vector<8x16xf32>, vector<16x16xf32>, vector<8x16xf32> -> vector<8x16xf32>
    %33 = arith.addf %11, %32 : vector<8x16xf32>
    %c8_i32_13 = arith.constant 8 : i32
    %34 = arith.muli %arg0, %c8_i32_13 : i32
    %c0_i32_14 = arith.constant 0 : i32
    %35 = arith.addi %34, %c0_i32_14 : i32
    %c4_i32_15 = arith.constant 4 : i32
    %36 = arith.muli %35, %c4_i32_15 : i32
    %c1_i32 = arith.constant 1 : i32
    %37 = arith.addi %36, %c1_i32 : i32
    %38 = arith.index_cast %37 : i32 to index
    %39 = memref.load %arg1[%38] : memref<64xi32, #tpu.memory_space<smem>>
    %40 = arith.index_cast %39 : i32 to index
    %c0_16 = arith.constant 0 : index
    %c0_17 = arith.constant 0 : index
    %41 = vector.load %arg6[%40, %c0_16, %c0_17] : memref<16x8x16xf32, #tpu.memory_space<vmem>>, vector<1x8x16xf32>
    %42 = vector.shape_cast %41 : vector<1x8x16xf32> to vector<8x16xf32>
    %43 = vector.extract_strided_slice %3 {offsets = [0, 16], sizes = [1, 16], strides = [1, 1]} : vector<8x64xf32> to vector<1x16xf32>
    %44 = vector.extract_strided_slice %4 {offsets = [0, 16], sizes = [1, 16], strides = [1, 1]} : vector<8x64xf32> to vector<1x16xf32>
    %cst_18 = arith.constant 0.000000e+00 : f32
    %45 = vector.shape_cast %43 : vector<1x16xf32> to vector<1x16xf32>
    %46 = vector.broadcast %45 : vector<1x16xf32> to vector<16x16xf32>
    %47 = vector.broadcast %cst_18 : f32 to vector<16x16xf32>
    %48 = arith.select %7, %46, %47 : vector<16x16xi1>, vector<16x16xf32>
    %cst_19 = arith.constant 0.000000e+00 : f32
    %49 = vector.shape_cast %44 : vector<1x16xf32> to vector<1x16xf32>
    %50 = vector.broadcast %49 : vector<1x16xf32> to vector<16x16xf32>
    %51 = vector.broadcast %cst_19 : f32 to vector<16x16xf32>
    %52 = arith.select %10, %50, %51 : vector<16x16xi1>, vector<16x16xf32>
    %53 = arith.addf %48, %52 : vector<16x16xf32>
    %cst_20 = arith.constant dense<0.000000e+00> : vector<8x16xf32>
    %54 = tpu.matmul %42, %53, %cst_20 {dimension_numbers = #tpu.dot_dimension_numbers<[1], [0], [0], [1], [0, 0, 1, 1], [], []>} : vector<8x16xf32>, vector<16x16xf32>, vector<8x16xf32> -> vector<8x16xf32>
    %55 = arith.addf %33, %54 : vector<8x16xf32>
    %c8_i32_21 = arith.constant 8 : i32
    %56 = arith.muli %arg0, %c8_i32_21 : i32
    %c0_i32_22 = arith.constant 0 : i32
    %57 = arith.addi %56, %c0_i32_22 : i32
    %c4_i32_23 = arith.constant 4 : i32
    %58 = arith.muli %57, %c4_i32_23 : i32
    %c2_i32 = arith.constant 2 : i32
    %59 = arith.addi %58, %c2_i32 : i32
    %60 = arith.index_cast %59 : i32 to index
    %61 = memref.load %arg1[%60] : memref<64xi32, #tpu.memory_space<smem>>
    %62 = arith.index_cast %61 : i32 to index
    %c0_24 = arith.constant 0 : index
    %c0_25 = arith.constant 0 : index
    %63 = vector.load %arg6[%62, %c0_24, %c0_25] : memref<16x8x16xf32, #tpu.memory_space<vmem>>, vector<1x8x16xf32>
    %64 = vector.shape_cast %63 : vector<1x8x16xf32> to vector<8x16xf32>
    %65 = vector.extract_strided_slice %3 {offsets = [0, 32], sizes = [1, 16], strides = [1, 1]} : vector<8x64xf32> to vector<1x16xf32>
    %66 = vector.extract_strided_slice %4 {offsets = [0, 32], sizes = [1, 16], strides = [1, 1]} : vector<8x64xf32> to vector<1x16xf32>
    %cst_26 = arith.constant 0.000000e+00 : f32
    %67 = vector.shape_cast %65 : vector<1x16xf32> to vector<1x16xf32>
    %68 = vector.broadcast %67 : vector<1x16xf32> to vector<16x16xf32>
    %69 = vector.broadcast %cst_26 : f32 to vector<16x16xf32>
    %70 = arith.select %7, %68, %69 : vector<16x16xi1>, vector<16x16xf32>
    %cst_27 = arith.constant 0.000000e+00 : f32
    %71 = vector.shape_cast %66 : vector<1x16xf32> to vector<1x16xf32>
    %72 = vector.broadcast %71 : vector<1x16xf32> to vector<16x16xf32>
    %73 = vector.broadcast %cst_27 : f32 to vector<16x16xf32>
    %74 = arith.select %10, %72, %73 : vector<16x16xi1>, vector<16x16xf32>
    %75 = arith.addf %70, %74 : vector<16x16xf32>
    %cst_28 = arith.constant dense<0.000000e+00> : vector<8x16xf32>
    %76 = tpu.matmul %64, %75, %cst_28 {dimension_numbers = #tpu.dot_dimension_numbers<[1], [0], [0], [1], [0, 0, 1, 1], [], []>} : vector<8x16xf32>, vector<16x16xf32>, vector<8x16xf32> -> vector<8x16xf32>
    %77 = arith.addf %55, %76 : vector<8x16xf32>
    %c8_i32_29 = arith.constant 8 : i32
    %78 = arith.muli %arg0, %c8_i32_29 : i32
    %c0_i32_30 = arith.constant 0 : i32
    %79 = arith.addi %78, %c0_i32_30 : i32
    %c4_i32_31 = arith.constant 4 : i32
    %80 = arith.muli %79, %c4_i32_31 : i32
    %c3_i32 = arith.constant 3 : i32
    %81 = arith.addi %80, %c3_i32 : i32
    %82 = arith.index_cast %81 : i32 to index
    %83 = memref.load %arg1[%82] : memref<64xi32, #tpu.memory_space<smem>>
    %84 = arith.index_cast %83 : i32 to index
    %c0_32 = arith.constant 0 : index
    %c0_33 = arith.constant 0 : index
    %85 = vector.load %arg6[%84, %c0_32, %c0_33] : memref<16x8x16xf32, #tpu.memory_space<vmem>>, vector<1x8x16xf32>
    %86 = vector.shape_cast %85 : vector<1x8x16xf32> to vector<8x16xf32>
    %87 = vector.extract_strided_slice %3 {offsets = [0, 48], sizes = [1, 16], strides = [1, 1]} : vector<8x64xf32> to vector<1x16xf32>
    %88 = vector.extract_strided_slice %4 {offsets = [0, 48], sizes = [1, 16], strides = [1, 1]} : vector<8x64xf32> to vector<1x16xf32>
    %cst_34 = arith.constant 0.000000e+00 : f32
    %89 = vector.shape_cast %87 : vector<1x16xf32> to vector<1x16xf32>
    %90 = vector.broadcast %89 : vector<1x16xf32> to vector<16x16xf32>
    %91 = vector.broadcast %cst_34 : f32 to vector<16x16xf32>
    %92 = arith.select %7, %90, %91 : vector<16x16xi1>, vector<16x16xf32>
    %cst_35 = arith.constant 0.000000e+00 : f32
    %93 = vector.shape_cast %88 : vector<1x16xf32> to vector<1x16xf32>
    %94 = vector.broadcast %93 : vector<1x16xf32> to vector<16x16xf32>
    %95 = vector.broadcast %cst_35 : f32 to vector<16x16xf32>
    %96 = arith.select %10, %94, %95 : vector<16x16xi1>, vector<16x16xf32>
    %97 = arith.addf %92, %96 : vector<16x16xf32>
    %cst_36 = arith.constant dense<0.000000e+00> : vector<8x16xf32>
    %98 = tpu.matmul %86, %97, %cst_36 {dimension_numbers = #tpu.dot_dimension_numbers<[1], [0], [0], [1], [0, 0, 1, 1], [], []>} : vector<8x16xf32>, vector<16x16xf32>, vector<8x16xf32> -> vector<8x16xf32>
    %99 = arith.addf %77, %98 : vector<8x16xf32>
    %c0_37 = arith.constant 0 : index
    %c0_38 = arith.constant 0 : index
    %c0_39 = arith.constant 0 : index
    %100 = vector.load %arg7[%c0_37, %c0_38, %c0_39] : memref<8x8x16xf32, #tpu.memory_space<vmem>>, vector<1x8x16xf32>
    %101 = vector.shape_cast %100 : vector<1x8x16xf32> to vector<8x16xf32>
    %102 = vector.shape_cast %99 : vector<8x16xf32> to vector<1x8x16xf32>
    tpu.vector_store %arg7[%c0_37, %c0_38, %c0_39], %102 {strides = array<i32>} : memref<8x8x16xf32, #tpu.memory_space<vmem>>, vector<1x8x16xf32>,
    %103 = vector.extract_strided_slice %1 {offsets = [1, 0], sizes = [1, 16], strides = [1, 1]} : vector<8x16xi32> to vector<1x16xi32>
    %104 = vector.broadcast %103 : vector<1x16xi32> to vector<16x16xi32>
    %105 = arith.cmpi eq, %0, %104 : vector<16x16xi32>
    %106 = vector.extract_strided_slice %2 {offsets = [1, 0], sizes = [1, 16], strides = [1, 1]} : vector<8x16xi32> to vector<1x16xi32>
    %107 = vector.broadcast %106 : vector<1x16xi32> to vector<16x16xi32>
    %108 = arith.cmpi eq, %0, %107 : vector<16x16xi32>
    %cst_40 = arith.constant 0.000000e+00 : f32
    %109 = vector.broadcast %cst_40 : f32 to vector<8x16xf32>
    %c8_i32_41 = arith.constant 8 : i32
    %110 = arith.muli %arg0, %c8_i32_41 : i32
    %c1_i32_42 = arith.constant 1 : i32
    %111 = arith.addi %110, %c1_i32_42 : i32
    %c4_i32_43 = arith.constant 4 : i32
    %112 = arith.muli %111, %c4_i32_43 : i32
    %c0_i32_44 = arith.constant 0 : i32
    %113 = arith.addi %112, %c0_i32_44 : i32
    %114 = arith.index_cast %113 : i32 to index
    %115 = memref.load %arg1[%114] : memref<64xi32, #tpu.memory_space<smem>>
    %116 = arith.index_cast %115 : i32 to index
    %c0_45 = arith.constant 0 : index
    %c0_46 = arith.constant 0 : index
    %117 = vector.load %arg6[%116, %c0_45, %c0_46] : memref<16x8x16xf32, #tpu.memory_space<vmem>>, vector<1x8x16xf32>
    %118 = vector.shape_cast %117 : vector<1x8x16xf32> to vector<8x16xf32>
    %119 = vector.extract_strided_slice %3 {offsets = [1, 0], sizes = [1, 16], strides = [1, 1]} : vector<8x64xf32> to vector<1x16xf32>
    %120 = vector.extract_strided_slice %4 {offsets = [1, 0], sizes = [1, 16], strides = [1, 1]} : vector<8x64xf32> to vector<1x16xf32>
    %cst_47 = arith.constant 0.000000e+00 : f32
    %121 = vector.shape_cast %119 : vector<1x16xf32> to vector<1x16xf32>
    %122 = vector.broadcast %121 : vector<1x16xf32> to vector<16x16xf32>
    %123 = vector.broadcast %cst_47 : f32 to vector<16x16xf32>
    %124 = arith.select %105, %122, %123 : vector<16x16xi1>, vector<16x16xf32>
    %cst_48 = arith.constant 0.000000e+00 : f32
    %125 = vector.shape_cast %120 : vector<1x16xf32> to vector<1x16xf32>
    %126 = vector.broadcast %125 : vector<1x16xf32> to vector<16x16xf32>
    %127 = vector.broadcast %cst_48 : f32 to vector<16x16xf32>
    %128 = arith.select %108, %126, %127 : vector<16x16xi1>, vector<16x16xf32>
    %129 = arith.addf %124, %128 : vector<16x16xf32>
    %cst_49 = arith.constant dense<0.000000e+00> : vector<8x16xf32>
    %130 = tpu.matmul %118, %129, %cst_49 {dimension_numbers = #tpu.dot_dimension_numbers<[1], [0], [0], [1], [0, 0, 1, 1], [], []>} : vector<8x16xf32>, vector<16x16xf32>, vector<8x16xf32> -> vector<8x16xf32>
    %131 = arith.addf %109, %130 : vector<8x16xf32>
    %c8_i32_50 = arith.constant 8 : i32
    %132 = arith.muli %arg0, %c8_i32_50 : i32
    %c1_i32_51 = arith.constant 1 : i32
    %133 = arith.addi %132, %c1_i32_51 : i32
    %c4_i32_52 = arith.constant 4 : i32
    %134 = arith.muli %133, %c4_i32_52 : i32
    %c1_i32_53 = arith.constant 1 : i32
    %135 = arith.addi %134, %c1_i32_53 : i32
    %136 = arith.index_cast %135 : i32 to index
    %137 = memref.load %arg1[%136] : memref<64xi32, #tpu.memory_space<smem>>
    %138 = arith.index_cast %137 : i32 to index
    %c0_54 = arith.constant 0 : index
    %c0_55 = arith.constant 0 : index
    %139 = vector.load %arg6[%138, %c0_54, %c0_55] : memref<16x8x16xf32, #tpu.memory_space<vmem>>, vector<1x8x16xf32>
    %140 = vector.shape_cast %139 : vector<1x8x16xf32> to vector<8x16xf32>
    %141 = vector.extract_strided_slice %3 {offsets = [1, 16], sizes = [1, 16], strides = [1, 1]} : vector<8x64xf32> to vector<1x16xf32>
    %142 = vector.extract_strided_slice %4 {offsets = [1, 16], sizes = [1, 16], strides = [1, 1]} : vector<8x64xf32> to vector<1x16xf32>
    %cst_56 = arith.constant 0.000000e+00 : f32
    %143 = vector.shape_cast %141 : vector<1x16xf32> to vector<1x16xf32>
    %144 = vector.broadcast %143 : vector<1x16xf32> to vector<16x16xf32>
    %145 = vector.broadcast %cst_56 : f32 to vector<16x16xf32>
    %146 = arith.select %105, %144, %145 : vector<16x16xi1>, vector<16x16xf32>
    %cst_57 = arith.constant 0.000000e+00 : f32
    %147 = vector.shape_cast %142 : vector<1x16xf32> to vector<1x16xf32>
    %148 = vector.broadcast %147 : vector<1x16xf32> to vector<16x16xf32>
    %149 = vector.broadcast %cst_57 : f32 to vector<16x16xf32>
    %150 = arith.select %108, %148, %149 : vector<16x16xi1>, vector<16x16xf32>
    %151 = arith.addf %146, %150 : vector<16x16xf32>
    %cst_58 = arith.constant dense<0.000000e+00> : vector<8x16xf32>
    %152 = tpu.matmul %140, %151, %cst_58 {dimension_numbers = #tpu.dot_dimension_numbers<[1], [0], [0], [1], [0, 0, 1, 1], [], []>} : vector<8x16xf32>, vector<16x16xf32>, vector<8x16xf32> -> vector<8x16xf32>
    %153 = arith.addf %131, %152 : vector<8x16xf32>
    %c8_i32_59 = arith.constant 8 : i32
    %154 = arith.muli %arg0, %c8_i32_59 : i32
    %c1_i32_60 = arith.constant 1 : i32
    %155 = arith.addi %154, %c1_i32_60 : i32
    %c4_i32_61 = arith.constant 4 : i32
    %156 = arith.muli %155, %c4_i32_61 : i32
    %c2_i32_62 = arith.constant 2 : i32
    %157 = arith.addi %156, %c2_i32_62 : i32
    %158 = arith.index_cast %157 : i32 to index
    %159 = memref.load %arg1[%158] : memref<64xi32, #tpu.memory_space<smem>>
    %160 = arith.index_cast %159 : i32 to index
    %c0_63 = arith.constant 0 : index
    %c0_64 = arith.constant 0 : index
    %161 = vector.load %arg6[%160, %c0_63, %c0_64] : memref<16x8x16xf32, #tpu.memory_space<vmem>>, vector<1x8x16xf32>
    %162 = vector.shape_cast %161 : vector<1x8x16xf32> to vector<8x16xf32>
    %163 = vector.extract_strided_slice %3 {offsets = [1, 32], sizes = [1, 16], strides = [1, 1]} : vector<8x64xf32> to vector<1x16xf32>
    %164 = vector.extract_strided_slice %4 {offsets = [1, 32], sizes = [1, 16], strides = [1, 1]} : vector<8x64xf32> to vector<1x16xf32>
    %cst_65 = arith.constant 0.000000e+00 : f32
    %165 = vector.shape_cast %163 : vector<1x16xf32> to vector<1x16xf32>
    %166 = vector.broadcast %165 : vector<1x16xf32> to vector<16x16xf32>
    %167 = vector.broadcast %cst_65 : f32 to vector<16x16xf32>
    %168 = arith.select %105, %166, %167 : vector<16x16xi1>, vector<16x16xf32>
    %cst_66 = arith.constant 0.000000e+00 : f32
    %169 = vector.shape_cast %164 : vector<1x16xf32> to vector<1x16xf32>
    %170 = vector.broadcast %169 : vector<1x16xf32> to vector<16x16xf32>
    %171 = vector.broadcast %cst_66 : f32 to vector<16x16xf32>
    %172 = arith.select %108, %170, %171 : vector<16x16xi1>, vector<16x16xf32>
    %173 = arith.addf %168, %172 : vector<16x16xf32>
    %cst_67 = arith.constant dense<0.000000e+00> : vector<8x16xf32>
    %174 = tpu.matmul %162, %173, %cst_67 {dimension_numbers = #tpu.dot_dimension_numbers<[1], [0], [0], [1], [0, 0, 1, 1], [], []>} : vector<8x16xf32>, vector<16x16xf32>, vector<8x16xf32> -> vector<8x16xf32>
    %175 = arith.addf %153, %174 : vector<8x16xf32>
    %c8_i32_68 = arith.constant 8 : i32
    %176 = arith.muli %arg0, %c8_i32_68 : i32
    %c1_i32_69 = arith.constant 1 : i32
    %177 = arith.addi %176, %c1_i32_69 : i32
    %c4_i32_70 = arith.constant 4 : i32
    %178 = arith.muli %177, %c4_i32_70 : i32
    %c3_i32_71 = arith.constant 3 : i32
    %179 = arith.addi %178, %c3_i32_71 : i32
    %180 = arith.index_cast %179 : i32 to index
    %181 = memref.load %arg1[%180] : memref<64xi32, #tpu.memory_space<smem>>
    %182 = arith.index_cast %181 : i32 to index
    %c0_72 = arith.constant 0 : index
    %c0_73 = arith.constant 0 : index
    %183 = vector.load %arg6[%182, %c0_72, %c0_73] : memref<16x8x16xf32, #tpu.memory_space<vmem>>, vector<1x8x16xf32>
    %184 = vector.shape_cast %183 : vector<1x8x16xf32> to vector<8x16xf32>
    %185 = vector.extract_strided_slice %3 {offsets = [1, 48], sizes = [1, 16], strides = [1, 1]} : vector<8x64xf32> to vector<1x16xf32>
    %186 = vector.extract_strided_slice %4 {offsets = [1, 48], sizes = [1, 16], strides = [1, 1]} : vector<8x64xf32> to vector<1x16xf32>
    %cst_74 = arith.constant 0.000000e+00 : f32
    %187 = vector.shape_cast %185 : vector<1x16xf32> to vector<1x16xf32>
    %188 = vector.broadcast %187 : vector<1x16xf32> to vector<16x16xf32>
    %189 = vector.broadcast %cst_74 : f32 to vector<16x16xf32>
    %190 = arith.select %105, %188, %189 : vector<16x16xi1>, vector<16x16xf32>
    %cst_75 = arith.constant 0.000000e+00 : f32
    %191 = vector.shape_cast %186 : vector<1x16xf32> to vector<1x16xf32>
    %192 = vector.broadcast %191 : vector<1x16xf32> to vector<16x16xf32>
    %193 = vector.broadcast %cst_75 : f32 to vector<16x16xf32>
    %194 = arith.select %108, %192, %193 : vector<16x16xi1>, vector<16x16xf32>
    %195 = arith.addf %190, %194 : vector<16x16xf32>
    %cst_76 = arith.constant dense<0.000000e+00> : vector<8x16xf32>
    %196 = tpu.matmul %184, %195, %cst_76 {dimension_numbers = #tpu.dot_dimension_numbers<[1], [0], [0], [1], [0, 0, 1, 1], [], []>} : vector<8x16xf32>, vector<16x16xf32>, vector<8x16xf32> -> vector<8x16xf32>
    %197 = arith.addf %175, %196 : vector<8x16xf32>
    %c1 = arith.constant 1 : index
    %c0_77 = arith.constant 0 : index
    %c0_78 = arith.constant 0 : index
    %198 = vector.load %arg7[%c1, %c0_77, %c0_78] : memref<8x8x16xf32, #tpu.memory_space<vmem>>, vector<1x8x16xf32>
    %199 = vector.shape_cast %198 : vector<1x8x16xf32> to vector<8x16xf32>
    %200 = vector.shape_cast %197 : vector<8x16xf32> to vector<1x8x16xf32>
    tpu.vector_store %arg7[%c1, %c0_77, %c0_78], %200 {strides = array<i32>} : memref<8x8x16xf32, #tpu.memory_space<vmem>>, vector<1x8x16xf32>,
    %201 = vector.extract_strided_slice %1 {offsets = [2, 0], sizes = [1, 16], strides = [1, 1]} : vector<8x16xi32> to vector<1x16xi32>
    %202 = vector.broadcast %201 : vector<1x16xi32> to vector<16x16xi32>
    %203 = arith.cmpi eq, %0, %202 : vector<16x16xi32>
    %204 = vector.extract_strided_slice %2 {offsets = [2, 0], sizes = [1, 16], strides = [1, 1]} : vector<8x16xi32> to vector<1x16xi32>
    %205 = vector.broadcast %204 : vector<1x16xi32> to vector<16x16xi32>
    %206 = arith.cmpi eq, %0, %205 : vector<16x16xi32>
    %cst_79 = arith.constant 0.000000e+00 : f32
    %207 = vector.broadcast %cst_79 : f32 to vector<8x16xf32>
    %c8_i32_80 = arith.constant 8 : i32
    %208 = arith.muli %arg0, %c8_i32_80 : i32
    %c2_i32_81 = arith.constant 2 : i32
    %209 = arith.addi %208, %c2_i32_81 : i32
    %c4_i32_82 = arith.constant 4 : i32
    %210 = arith.muli %209, %c4_i32_82 : i32
    %c0_i32_83 = arith.constant 0 : i32
    %211 = arith.addi %210, %c0_i32_83 : i32
    %212 = arith.index_cast %211 : i32 to index
    %213 = memref.load %arg1[%212] : memref<64xi32, #tpu.memory_space<smem>>
    %214 = arith.index_cast %213 : i32 to index
    %c0_84 = arith.constant 0 : index
    %c0_85 = arith.constant 0 : index
    %215 = vector.load %arg6[%214, %c0_84, %c0_85] : memref<16x8x16xf32, #tpu.memory_space<vmem>>, vector<1x8x16xf32>
    %216 = vector.shape_cast %215 : vector<1x8x16xf32> to vector<8x16xf32>
    %217 = vector.extract_strided_slice %3 {offsets = [2, 0], sizes = [1, 16], strides = [1, 1]} : vector<8x64xf32> to vector<1x16xf32>
    %218 = vector.extract_strided_slice %4 {offsets = [2, 0], sizes = [1, 16], strides = [1, 1]} : vector<8x64xf32> to vector<1x16xf32>
    %cst_86 = arith.constant 0.000000e+00 : f32
    %219 = vector.shape_cast %217 : vector<1x16xf32> to vector<1x16xf32>
    %220 = vector.broadcast %219 : vector<1x16xf32> to vector<16x16xf32>
    %221 = vector.broadcast %cst_86 : f32 to vector<16x16xf32>
    %222 = arith.select %203, %220, %221 : vector<16x16xi1>, vector<16x16xf32>
    %cst_87 = arith.constant 0.000000e+00 : f32
    %223 = vector.shape_cast %218 : vector<1x16xf32> to vector<1x16xf32>
    %224 = vector.broadcast %223 : vector<1x16xf32> to vector<16x16xf32>
    %225 = vector.broadcast %cst_87 : f32 to vector<16x16xf32>
    %226 = arith.select %206, %224, %225 : vector<16x16xi1>, vector<16x16xf32>
    %227 = arith.addf %222, %226 : vector<16x16xf32>
    %cst_88 = arith.constant dense<0.000000e+00> : vector<8x16xf32>
    %228 = tpu.matmul %216, %227, %cst_88 {dimension_numbers = #tpu.dot_dimension_numbers<[1], [0], [0], [1], [0, 0, 1, 1], [], []>} : vector<8x16xf32>, vector<16x16xf32>, vector<8x16xf32> -> vector<8x16xf32>
    %229 = arith.addf %207, %228 : vector<8x16xf32>
    %c8_i32_89 = arith.constant 8 : i32
    %230 = arith.muli %arg0, %c8_i32_89 : i32
    %c2_i32_90 = arith.constant 2 : i32
    %231 = arith.addi %230, %c2_i32_90 : i32
    %c4_i32_91 = arith.constant 4 : i32
    %232 = arith.muli %231, %c4_i32_91 : i32
    %c1_i32_92 = arith.constant 1 : i32
    %233 = arith.addi %232, %c1_i32_92 : i32
    %234 = arith.index_cast %233 : i32 to index
    %235 = memref.load %arg1[%234] : memref<64xi32, #tpu.memory_space<smem>>
    %236 = arith.index_cast %235 : i32 to index
    %c0_93 = arith.constant 0 : index
    %c0_94 = arith.constant 0 : index
    %237 = vector.load %arg6[%236, %c0_93, %c0_94] : memref<16x8x16xf32, #tpu.memory_space<vmem>>, vector<1x8x16xf32>
    %238 = vector.shape_cast %237 : vector<1x8x16xf32> to vector<8x16xf32>
    %239 = vector.extract_strided_slice %3 {offsets = [2, 16], sizes = [1, 16], strides = [1, 1]} : vector<8x64xf32> to vector<1x16xf32>
    %240 = vector.extract_strided_slice %4 {offsets = [2, 16], sizes = [1, 16], strides = [1, 1]} : vector<8x64xf32> to vector<1x16xf32>
    %cst_95 = arith.constant 0.000000e+00 : f32
    %241 = vector.shape_cast %239 : vector<1x16xf32> to vector<1x16xf32>
    %242 = vector.broadcast %241 : vector<1x16xf32> to vector<16x16xf32>
    %243 = vector.broadcast %cst_95 : f32 to vector<16x16xf32>
    %244 = arith.select %203, %242, %243 : vector<16x16xi1>, vector<16x16xf32>
    %cst_96 = arith.constant 0.000000e+00 : f32
    %245 = vector.shape_cast %240 : vector<1x16xf32> to vector<1x16xf32>
    %246 = vector.broadcast %245 : vector<1x16xf32> to vector<16x16xf32>
    %247 = vector.broadcast %cst_96 : f32 to vector<16x16xf32>
    %248 = arith.select %206, %246, %247 : vector<16x16xi1>, vector<16x16xf32>
    %249 = arith.addf %244, %248 : vector<16x16xf32>
    %cst_97 = arith.constant dense<0.000000e+00> : vector<8x16xf32>
    %250 = tpu.matmul %238, %249, %cst_97 {dimension_numbers = #tpu.dot_dimension_numbers<[1], [0], [0], [1], [0, 0, 1, 1], [], []>} : vector<8x16xf32>, vector<16x16xf32>, vector<8x16xf32> -> vector<8x16xf32>
    %251 = arith.addf %229, %250 : vector<8x16xf32>
    %c8_i32_98 = arith.constant 8 : i32
    %252 = arith.muli %arg0, %c8_i32_98 : i32
    %c2_i32_99 = arith.constant 2 : i32
    %253 = arith.addi %252, %c2_i32_99 : i32
    %c4_i32_100 = arith.constant 4 : i32
    %254 = arith.muli %253, %c4_i32_100 : i32
    %c2_i32_101 = arith.constant 2 : i32
    %255 = arith.addi %254, %c2_i32_101 : i32
    %256 = arith.index_cast %255 : i32 to index
    %257 = memref.load %arg1[%256] : memref<64xi32, #tpu.memory_space<smem>>
    %258 = arith.index_cast %257 : i32 to index
    %c0_102 = arith.constant 0 : index
    %c0_103 = arith.constant 0 : index
    %259 = vector.load %arg6[%258, %c0_102, %c0_103] : memref<16x8x16xf32, #tpu.memory_space<vmem>>, vector<1x8x16xf32>
    %260 = vector.shape_cast %259 : vector<1x8x16xf32> to vector<8x16xf32>
    %261 = vector.extract_strided_slice %3 {offsets = [2, 32], sizes = [1, 16], strides = [1, 1]} : vector<8x64xf32> to vector<1x16xf32>
    %262 = vector.extract_strided_slice %4 {offsets = [2, 32], sizes = [1, 16], strides = [1, 1]} : vector<8x64xf32> to vector<1x16xf32>
    %cst_104 = arith.constant 0.000000e+00 : f32
    %263 = vector.shape_cast %261 : vector<1x16xf32> to vector<1x16xf32>
    %264 = vector.broadcast %263 : vector<1x16xf32> to vector<16x16xf32>
    %265 = vector.broadcast %cst_104 : f32 to vector<16x16xf32>
    %266 = arith.select %203, %264, %265 : vector<16x16xi1>, vector<16x16xf32>
    %cst_105 = arith.constant 0.000000e+00 : f32
    %267 = vector.shape_cast %262 : vector<1x16xf32> to vector<1x16xf32>
    %268 = vector.broadcast %267 : vector<1x16xf32> to vector<16x16xf32>
    %269 = vector.broadcast %cst_105 : f32 to vector<16x16xf32>
    %270 = arith.select %206, %268, %269 : vector<16x16xi1>, vector<16x16xf32>
    %271 = arith.addf %266, %270 : vector<16x16xf32>
    %cst_106 = arith.constant dense<0.000000e+00> : vector<8x16xf32>
    %272 = tpu.matmul %260, %271, %cst_106 {dimension_numbers = #tpu.dot_dimension_numbers<[1], [0], [0], [1], [0, 0, 1, 1], [], []>} : vector<8x16xf32>, vector<16x16xf32>, vector<8x16xf32> -> vector<8x16xf32>
    %273 = arith.addf %251, %272 : vector<8x16xf32>
    %c8_i32_107 = arith.constant 8 : i32
    %274 = arith.muli %arg0, %c8_i32_107 : i32
    %c2_i32_108 = arith.constant 2 : i32
    %275 = arith.addi %274, %c2_i32_108 : i32
    %c4_i32_109 = arith.constant 4 : i32
    %276 = arith.muli %275, %c4_i32_109 : i32
    %c3_i32_110 = arith.constant 3 : i32
    %277 = arith.addi %276, %c3_i32_110 : i32
    %278 = arith.index_cast %277 : i32 to index
    %279 = memref.load %arg1[%278] : memref<64xi32, #tpu.memory_space<smem>>
    %280 = arith.index_cast %279 : i32 to index
    %c0_111 = arith.constant 0 : index
    %c0_112 = arith.constant 0 : index
    %281 = vector.load %arg6[%280, %c0_111, %c0_112] : memref<16x8x16xf32, #tpu.memory_space<vmem>>, vector<1x8x16xf32>
    %282 = vector.shape_cast %281 : vector<1x8x16xf32> to vector<8x16xf32>
    %283 = vector.extract_strided_slice %3 {offsets = [2, 48], sizes = [1, 16], strides = [1, 1]} : vector<8x64xf32> to vector<1x16xf32>
    %284 = vector.extract_strided_slice %4 {offsets = [2, 48], sizes = [1, 16], strides = [1, 1]} : vector<8x64xf32> to vector<1x16xf32>
    %cst_113 = arith.constant 0.000000e+00 : f32
    %285 = vector.shape_cast %283 : vector<1x16xf32> to vector<1x16xf32>
    %286 = vector.broadcast %285 : vector<1x16xf32> to vector<16x16xf32>
    %287 = vector.broadcast %cst_113 : f32 to vector<16x16xf32>
    %288 = arith.select %203, %286, %287 : vector<16x16xi1>, vector<16x16xf32>
    %cst_114 = arith.constant 0.000000e+00 : f32
    %289 = vector.shape_cast %284 : vector<1x16xf32> to vector<1x16xf32>
    %290 = vector.broadcast %289 : vector<1x16xf32> to vector<16x16xf32>
    %291 = vector.broadcast %cst_114 : f32 to vector<16x16xf32>
    %292 = arith.select %206, %290, %291 : vector<16x16xi1>, vector<16x16xf32>
    %293 = arith.addf %288, %292 : vector<16x16xf32>
    %cst_115 = arith.constant dense<0.000000e+00> : vector<8x16xf32>
    %294 = tpu.matmul %282, %293, %cst_115 {dimension_numbers = #tpu.dot_dimension_numbers<[1], [0], [0], [1], [0, 0, 1, 1], [], []>} : vector<8x16xf32>, vector<16x16xf32>, vector<8x16xf32> -> vector<8x16xf32>
    %295 = arith.addf %273, %294 : vector<8x16xf32>
    %c2 = arith.constant 2 : index
    %c0_116 = arith.constant 0 : index
    %c0_117 = arith.constant 0 : index
    %296 = vector.load %arg7[%c2, %c0_116, %c0_117] : memref<8x8x16xf32, #tpu.memory_space<vmem>>, vector<1x8x16xf32>
    %297 = vector.shape_cast %296 : vector<1x8x16xf32> to vector<8x16xf32>
    %298 = vector.shape_cast %295 : vector<8x16xf32> to vector<1x8x16xf32>
    tpu.vector_store %arg7[%c2, %c0_116, %c0_117], %298 {strides = array<i32>} : memref<8x8x16xf32, #tpu.memory_space<vmem>>, vector<1x8x16xf32>,
    %299 = vector.extract_strided_slice %1 {offsets = [3, 0], sizes = [1, 16], strides = [1, 1]} : vector<8x16xi32> to vector<1x16xi32>
    %300 = vector.broadcast %299 : vector<1x16xi32> to vector<16x16xi32>
    %301 = arith.cmpi eq, %0, %300 : vector<16x16xi32>
    %302 = vector.extract_strided_slice %2 {offsets = [3, 0], sizes = [1, 16], strides = [1, 1]} : vector<8x16xi32> to vector<1x16xi32>
    %303 = vector.broadcast %302 : vector<1x16xi32> to vector<16x16xi32>
    %304 = arith.cmpi eq, %0, %303 : vector<16x16xi32>
    %cst_118 = arith.constant 0.000000e+00 : f32
    %305 = vector.broadcast %cst_118 : f32 to vector<8x16xf32>
    %c8_i32_119 = arith.constant 8 : i32
    %306 = arith.muli %arg0, %c8_i32_119 : i32
    %c3_i32_120 = arith.constant 3 : i32
    %307 = arith.addi %306, %c3_i32_120 : i32
    %c4_i32_121 = arith.constant 4 : i32
    %308 = arith.muli %307, %c4_i32_121 : i32
    %c0_i32_122 = arith.constant 0 : i32
    %309 = arith.addi %308, %c0_i32_122 : i32
    %310 = arith.index_cast %309 : i32 to index
    %311 = memref.load %arg1[%310] : memref<64xi32, #tpu.memory_space<smem>>
    %312 = arith.index_cast %311 : i32 to index
    %c0_123 = arith.constant 0 : index
    %c0_124 = arith.constant 0 : index
    %313 = vector.load %arg6[%312, %c0_123, %c0_124] : memref<16x8x16xf32, #tpu.memory_space<vmem>>, vector<1x8x16xf32>
    %314 = vector.shape_cast %313 : vector<1x8x16xf32> to vector<8x16xf32>
    %315 = vector.extract_strided_slice %3 {offsets = [3, 0], sizes = [1, 16], strides = [1, 1]} : vector<8x64xf32> to vector<1x16xf32>
    %316 = vector.extract_strided_slice %4 {offsets = [3, 0], sizes = [1, 16], strides = [1, 1]} : vector<8x64xf32> to vector<1x16xf32>
    %cst_125 = arith.constant 0.000000e+00 : f32
    %317 = vector.shape_cast %315 : vector<1x16xf32> to vector<1x16xf32>
    %318 = vector.broadcast %317 : vector<1x16xf32> to vector<16x16xf32>
    %319 = vector.broadcast %cst_125 : f32 to vector<16x16xf32>
    %320 = arith.select %301, %318, %319 : vector<16x16xi1>, vector<16x16xf32>
    %cst_126 = arith.constant 0.000000e+00 : f32
    %321 = vector.shape_cast %316 : vector<1x16xf32> to vector<1x16xf32>
    %322 = vector.broadcast %321 : vector<1x16xf32> to vector<16x16xf32>
    %323 = vector.broadcast %cst_126 : f32 to vector<16x16xf32>
    %324 = arith.select %304, %322, %323 : vector<16x16xi1>, vector<16x16xf32>
    %325 = arith.addf %320, %324 : vector<16x16xf32>
    %cst_127 = arith.constant dense<0.000000e+00> : vector<8x16xf32>
    %326 = tpu.matmul %314, %325, %cst_127 {dimension_numbers = #tpu.dot_dimension_numbers<[1], [0], [0], [1], [0, 0, 1, 1], [], []>} : vector<8x16xf32>, vector<16x16xf32>, vector<8x16xf32> -> vector<8x16xf32>
    %327 = arith.addf %305, %326 : vector<8x16xf32>
    %c8_i32_128 = arith.constant 8 : i32
    %328 = arith.muli %arg0, %c8_i32_128 : i32
    %c3_i32_129 = arith.constant 3 : i32
    %329 = arith.addi %328, %c3_i32_129 : i32
    %c4_i32_130 = arith.constant 4 : i32
    %330 = arith.muli %329, %c4_i32_130 : i32
    %c1_i32_131 = arith.constant 1 : i32
    %331 = arith.addi %330, %c1_i32_131 : i32
    %332 = arith.index_cast %331 : i32 to index
    %333 = memref.load %arg1[%332] : memref<64xi32, #tpu.memory_space<smem>>
    %334 = arith.index_cast %333 : i32 to index
    %c0_132 = arith.constant 0 : index
    %c0_133 = arith.constant 0 : index
    %335 = vector.load %arg6[%334, %c0_132, %c0_133] : memref<16x8x16xf32, #tpu.memory_space<vmem>>, vector<1x8x16xf32>
    %336 = vector.shape_cast %335 : vector<1x8x16xf32> to vector<8x16xf32>
    %337 = vector.extract_strided_slice %3 {offsets = [3, 16], sizes = [1, 16], strides = [1, 1]} : vector<8x64xf32> to vector<1x16xf32>
    %338 = vector.extract_strided_slice %4 {offsets = [3, 16], sizes = [1, 16], strides = [1, 1]} : vector<8x64xf32> to vector<1x16xf32>
    %cst_134 = arith.constant 0.000000e+00 : f32
    %339 = vector.shape_cast %337 : vector<1x16xf32> to vector<1x16xf32>
    %340 = vector.broadcast %339 : vector<1x16xf32> to vector<16x16xf32>
    %341 = vector.broadcast %cst_134 : f32 to vector<16x16xf32>
    %342 = arith.select %301, %340, %341 : vector<16x16xi1>, vector<16x16xf32>
    %cst_135 = arith.constant 0.000000e+00 : f32
    %343 = vector.shape_cast %338 : vector<1x16xf32> to vector<1x16xf32>
    %344 = vector.broadcast %343 : vector<1x16xf32> to vector<16x16xf32>
    %345 = vector.broadcast %cst_135 : f32 to vector<16x16xf32>
    %346 = arith.select %304, %344, %345 : vector<16x16xi1>, vector<16x16xf32>
    %347 = arith.addf %342, %346 : vector<16x16xf32>
    %cst_136 = arith.constant dense<0.000000e+00> : vector<8x16xf32>
    %348 = tpu.matmul %336, %347, %cst_136 {dimension_numbers = #tpu.dot_dimension_numbers<[1], [0], [0], [1], [0, 0, 1, 1], [], []>} : vector<8x16xf32>, vector<16x16xf32>, vector<8x16xf32> -> vector<8x16xf32>
    %349 = arith.addf %327, %348 : vector<8x16xf32>
    %c8_i32_137 = arith.constant 8 : i32
    %350 = arith.muli %arg0, %c8_i32_137 : i32
    %c3_i32_138 = arith.constant 3 : i32
    %351 = arith.addi %350, %c3_i32_138 : i32
    %c4_i32_139 = arith.constant 4 : i32
    %352 = arith.muli %351, %c4_i32_139 : i32
    %c2_i32_140 = arith.constant 2 : i32
    %353 = arith.addi %352, %c2_i32_140 : i32
    %354 = arith.index_cast %353 : i32 to index
    %355 = memref.load %arg1[%354] : memref<64xi32, #tpu.memory_space<smem>>
    %356 = arith.index_cast %355 : i32 to index
    %c0_141 = arith.constant 0 : index
    %c0_142 = arith.constant 0 : index
    %357 = vector.load %arg6[%356, %c0_141, %c0_142] : memref<16x8x16xf32, #tpu.memory_space<vmem>>, vector<1x8x16xf32>
    %358 = vector.shape_cast %357 : vector<1x8x16xf32> to vector<8x16xf32>
    %359 = vector.extract_strided_slice %3 {offsets = [3, 32], sizes = [1, 16], strides = [1, 1]} : vector<8x64xf32> to vector<1x16xf32>
    %360 = vector.extract_strided_slice %4 {offsets = [3, 32], sizes = [1, 16], strides = [1, 1]} : vector<8x64xf32> to vector<1x16xf32>
    %cst_143 = arith.constant 0.000000e+00 : f32
    %361 = vector.shape_cast %359 : vector<1x16xf32> to vector<1x16xf32>
    %362 = vector.broadcast %361 : vector<1x16xf32> to vector<16x16xf32>
    %363 = vector.broadcast %cst_143 : f32 to vector<16x16xf32>
    %364 = arith.select %301, %362, %363 : vector<16x16xi1>, vector<16x16xf32>
    %cst_144 = arith.constant 0.000000e+00 : f32
    %365 = vector.shape_cast %360 : vector<1x16xf32> to vector<1x16xf32>
    %366 = vector.broadcast %365 : vector<1x16xf32> to vector<16x16xf32>
    %367 = vector.broadcast %cst_144 : f32 to vector<16x16xf32>
    %368 = arith.select %304, %366, %367 : vector<16x16xi1>, vector<16x16xf32>
    %369 = arith.addf %364, %368 : vector<16x16xf32>
    %cst_145 = arith.constant dense<0.000000e+00> : vector<8x16xf32>
    %370 = tpu.matmul %358, %369, %cst_145 {dimension_numbers = #tpu.dot_dimension_numbers<[1], [0], [0], [1], [0, 0, 1, 1], [], []>} : vector<8x16xf32>, vector<16x16xf32>, vector<8x16xf32> -> vector<8x16xf32>
    %371 = arith.addf %349, %370 : vector<8x16xf32>
    %c8_i32_146 = arith.constant 8 : i32
    %372 = arith.muli %arg0, %c8_i32_146 : i32
    %c3_i32_147 = arith.constant 3 : i32
    %373 = arith.addi %372, %c3_i32_147 : i32
    %c4_i32_148 = arith.constant 4 : i32
    %374 = arith.muli %373, %c4_i32_148 : i32
    %c3_i32_149 = arith.constant 3 : i32
    %375 = arith.addi %374, %c3_i32_149 : i32
    %376 = arith.index_cast %375 : i32 to index
    %377 = memref.load %arg1[%376] : memref<64xi32, #tpu.memory_space<smem>>
    %378 = arith.index_cast %377 : i32 to index
    %c0_150 = arith.constant 0 : index
    %c0_151 = arith.constant 0 : index
    %379 = vector.load %arg6[%378, %c0_150, %c0_151] : memref<16x8x16xf32, #tpu.memory_space<vmem>>, vector<1x8x16xf32>
    %380 = vector.shape_cast %379 : vector<1x8x16xf32> to vector<8x16xf32>
    %381 = vector.extract_strided_slice %3 {offsets = [3, 48], sizes = [1, 16], strides = [1, 1]} : vector<8x64xf32> to vector<1x16xf32>
    %382 = vector.extract_strided_slice %4 {offsets = [3, 48], sizes = [1, 16], strides = [1, 1]} : vector<8x64xf32> to vector<1x16xf32>
    %cst_152 = arith.constant 0.000000e+00 : f32
    %383 = vector.shape_cast %381 : vector<1x16xf32> to vector<1x16xf32>
    %384 = vector.broadcast %383 : vector<1x16xf32> to vector<16x16xf32>
    %385 = vector.broadcast %cst_152 : f32 to vector<16x16xf32>
    %386 = arith.select %301, %384, %385 : vector<16x16xi1>, vector<16x16xf32>
    %cst_153 = arith.constant 0.000000e+00 : f32
    %387 = vector.shape_cast %382 : vector<1x16xf32> to vector<1x16xf32>
    %388 = vector.broadcast %387 : vector<1x16xf32> to vector<16x16xf32>
    %389 = vector.broadcast %cst_153 : f32 to vector<16x16xf32>
    %390 = arith.select %304, %388, %389 : vector<16x16xi1>, vector<16x16xf32>
    %391 = arith.addf %386, %390 : vector<16x16xf32>
    %cst_154 = arith.constant dense<0.000000e+00> : vector<8x16xf32>
    %392 = tpu.matmul %380, %391, %cst_154 {dimension_numbers = #tpu.dot_dimension_numbers<[1], [0], [0], [1], [0, 0, 1, 1], [], []>} : vector<8x16xf32>, vector<16x16xf32>, vector<8x16xf32> -> vector<8x16xf32>
    %393 = arith.addf %371, %392 : vector<8x16xf32>
    %c3 = arith.constant 3 : index
    %c0_155 = arith.constant 0 : index
    %c0_156 = arith.constant 0 : index
    %394 = vector.load %arg7[%c3, %c0_155, %c0_156] : memref<8x8x16xf32, #tpu.memory_space<vmem>>, vector<1x8x16xf32>
    %395 = vector.shape_cast %394 : vector<1x8x16xf32> to vector<8x16xf32>
    %396 = vector.shape_cast %393 : vector<8x16xf32> to vector<1x8x16xf32>
    tpu.vector_store %arg7[%c3, %c0_155, %c0_156], %396 {strides = array<i32>} : memref<8x8x16xf32, #tpu.memory_space<vmem>>, vector<1x8x16xf32>,
    %397 = vector.extract_strided_slice %1 {offsets = [4, 0], sizes = [1, 16], strides = [1, 1]} : vector<8x16xi32> to vector<1x16xi32>
    %398 = vector.broadcast %397 : vector<1x16xi32> to vector<16x16xi32>
    %399 = arith.cmpi eq, %0, %398 : vector<16x16xi32>
    %400 = vector.extract_strided_slice %2 {offsets = [4, 0], sizes = [1, 16], strides = [1, 1]} : vector<8x16xi32> to vector<1x16xi32>
    %401 = vector.broadcast %400 : vector<1x16xi32> to vector<16x16xi32>
    %402 = arith.cmpi eq, %0, %401 : vector<16x16xi32>
    %cst_157 = arith.constant 0.000000e+00 : f32
    %403 = vector.broadcast %cst_157 : f32 to vector<8x16xf32>
    %c8_i32_158 = arith.constant 8 : i32
    %404 = arith.muli %arg0, %c8_i32_158 : i32
    %c4_i32_159 = arith.constant 4 : i32
    %405 = arith.addi %404, %c4_i32_159 : i32
    %c4_i32_160 = arith.constant 4 : i32
    %406 = arith.muli %405, %c4_i32_160 : i32
    %c0_i32_161 = arith.constant 0 : i32
    %407 = arith.addi %406, %c0_i32_161 : i32
    %408 = arith.index_cast %407 : i32 to index
    %409 = memref.load %arg1[%408] : memref<64xi32, #tpu.memory_space<smem>>
    %410 = arith.index_cast %409 : i32 to index
    %c0_162 = arith.constant 0 : index
    %c0_163 = arith.constant 0 : index
    %411 = vector.load %arg6[%410, %c0_162, %c0_163] : memref<16x8x16xf32, #tpu.memory_space<vmem>>, vector<1x8x16xf32>
    %412 = vector.shape_cast %411 : vector<1x8x16xf32> to vector<8x16xf32>
    %413 = vector.extract_strided_slice %3 {offsets = [4, 0], sizes = [1, 16], strides = [1, 1]} : vector<8x64xf32> to vector<1x16xf32>
    %414 = vector.extract_strided_slice %4 {offsets = [4, 0], sizes = [1, 16], strides = [1, 1]} : vector<8x64xf32> to vector<1x16xf32>
    %cst_164 = arith.constant 0.000000e+00 : f32
    %415 = vector.shape_cast %413 : vector<1x16xf32> to vector<1x16xf32>
    %416 = vector.broadcast %415 : vector<1x16xf32> to vector<16x16xf32>
    %417 = vector.broadcast %cst_164 : f32 to vector<16x16xf32>
    %418 = arith.select %399, %416, %417 : vector<16x16xi1>, vector<16x16xf32>
    %cst_165 = arith.constant 0.000000e+00 : f32
    %419 = vector.shape_cast %414 : vector<1x16xf32> to vector<1x16xf32>
    %420 = vector.broadcast %419 : vector<1x16xf32> to vector<16x16xf32>
    %421 = vector.broadcast %cst_165 : f32 to vector<16x16xf32>
    %422 = arith.select %402, %420, %421 : vector<16x16xi1>, vector<16x16xf32>
    %423 = arith.addf %418, %422 : vector<16x16xf32>
    %cst_166 = arith.constant dense<0.000000e+00> : vector<8x16xf32>
    %424 = tpu.matmul %412, %423, %cst_166 {dimension_numbers = #tpu.dot_dimension_numbers<[1], [0], [0], [1], [0, 0, 1, 1], [], []>} : vector<8x16xf32>, vector<16x16xf32>, vector<8x16xf32> -> vector<8x16xf32>
    %425 = arith.addf %403, %424 : vector<8x16xf32>
    %c8_i32_167 = arith.constant 8 : i32
    %426 = arith.muli %arg0, %c8_i32_167 : i32
    %c4_i32_168 = arith.constant 4 : i32
    %427 = arith.addi %426, %c4_i32_168 : i32
    %c4_i32_169 = arith.constant 4 : i32
    %428 = arith.muli %427, %c4_i32_169 : i32
    %c1_i32_170 = arith.constant 1 : i32
    %429 = arith.addi %428, %c1_i32_170 : i32
    %430 = arith.index_cast %429 : i32 to index
    %431 = memref.load %arg1[%430] : memref<64xi32, #tpu.memory_space<smem>>
    %432 = arith.index_cast %431 : i32 to index
    %c0_171 = arith.constant 0 : index
    %c0_172 = arith.constant 0 : index
    %433 = vector.load %arg6[%432, %c0_171, %c0_172] : memref<16x8x16xf32, #tpu.memory_space<vmem>>, vector<1x8x16xf32>
    %434 = vector.shape_cast %433 : vector<1x8x16xf32> to vector<8x16xf32>
    %435 = vector.extract_strided_slice %3 {offsets = [4, 16], sizes = [1, 16], strides = [1, 1]} : vector<8x64xf32> to vector<1x16xf32>
    %436 = vector.extract_strided_slice %4 {offsets = [4, 16], sizes = [1, 16], strides = [1, 1]} : vector<8x64xf32> to vector<1x16xf32>
    %cst_173 = arith.constant 0.000000e+00 : f32
    %437 = vector.shape_cast %435 : vector<1x16xf32> to vector<1x16xf32>
    %438 = vector.broadcast %437 : vector<1x16xf32> to vector<16x16xf32>
    %439 = vector.broadcast %cst_173 : f32 to vector<16x16xf32>
    %440 = arith.select %399, %438, %439 : vector<16x16xi1>, vector<16x16xf32>
    %cst_174 = arith.constant 0.000000e+00 : f32
    %441 = vector.shape_cast %436 : vector<1x16xf32> to vector<1x16xf32>
    %442 = vector.broadcast %441 : vector<1x16xf32> to vector<16x16xf32>
    %443 = vector.broadcast %cst_174 : f32 to vector<16x16xf32>
    %444 = arith.select %402, %442, %443 : vector<16x16xi1>, vector<16x16xf32>
    %445 = arith.addf %440, %444 : vector<16x16xf32>
    %cst_175 = arith.constant dense<0.000000e+00> : vector<8x16xf32>
    %446 = tpu.matmul %434, %445, %cst_175 {dimension_numbers = #tpu.dot_dimension_numbers<[1], [0], [0], [1], [0, 0, 1, 1], [], []>} : vector<8x16xf32>, vector<16x16xf32>, vector<8x16xf32> -> vector<8x16xf32>
    %447 = arith.addf %425, %446 : vector<8x16xf32>
    %c8_i32_176 = arith.constant 8 : i32
    %448 = arith.muli %arg0, %c8_i32_176 : i32
    %c4_i32_177 = arith.constant 4 : i32
    %449 = arith.addi %448, %c4_i32_177 : i32
    %c4_i32_178 = arith.constant 4 : i32
    %450 = arith.muli %449, %c4_i32_178 : i32
    %c2_i32_179 = arith.constant 2 : i32
    %451 = arith.addi %450, %c2_i32_179 : i32
    %452 = arith.index_cast %451 : i32 to index
    %453 = memref.load %arg1[%452] : memref<64xi32, #tpu.memory_space<smem>>
    %454 = arith.index_cast %453 : i32 to index
    %c0_180 = arith.constant 0 : index
    %c0_181 = arith.constant 0 : index
    %455 = vector.load %arg6[%454, %c0_180, %c0_181] : memref<16x8x16xf32, #tpu.memory_space<vmem>>, vector<1x8x16xf32>
    %456 = vector.shape_cast %455 : vector<1x8x16xf32> to vector<8x16xf32>
    %457 = vector.extract_strided_slice %3 {offsets = [4, 32], sizes = [1, 16], strides = [1, 1]} : vector<8x64xf32> to vector<1x16xf32>
    %458 = vector.extract_strided_slice %4 {offsets = [4, 32], sizes = [1, 16], strides = [1, 1]} : vector<8x64xf32> to vector<1x16xf32>
    %cst_182 = arith.constant 0.000000e+00 : f32
    %459 = vector.shape_cast %457 : vector<1x16xf32> to vector<1x16xf32>
    %460 = vector.broadcast %459 : vector<1x16xf32> to vector<16x16xf32>
    %461 = vector.broadcast %cst_182 : f32 to vector<16x16xf32>
    %462 = arith.select %399, %460, %461 : vector<16x16xi1>, vector<16x16xf32>
    %cst_183 = arith.constant 0.000000e+00 : f32
    %463 = vector.shape_cast %458 : vector<1x16xf32> to vector<1x16xf32>
    %464 = vector.broadcast %463 : vector<1x16xf32> to vector<16x16xf32>
    %465 = vector.broadcast %cst_183 : f32 to vector<16x16xf32>
    %466 = arith.select %402, %464, %465 : vector<16x16xi1>, vector<16x16xf32>
    %467 = arith.addf %462, %466 : vector<16x16xf32>
    %cst_184 = arith.constant dense<0.000000e+00> : vector<8x16xf32>
    %468 = tpu.matmul %456, %467, %cst_184 {dimension_numbers = #tpu.dot_dimension_numbers<[1], [0], [0], [1], [0, 0, 1, 1], [], []>} : vector<8x16xf32>, vector<16x16xf32>, vector<8x16xf32> -> vector<8x16xf32>
    %469 = arith.addf %447, %468 : vector<8x16xf32>
    %c8_i32_185 = arith.constant 8 : i32
    %470 = arith.muli %arg0, %c8_i32_185 : i32
    %c4_i32_186 = arith.constant 4 : i32
    %471 = arith.addi %470, %c4_i32_186 : i32
    %c4_i32_187 = arith.constant 4 : i32
    %472 = arith.muli %471, %c4_i32_187 : i32
    %c3_i32_188 = arith.constant 3 : i32
    %473 = arith.addi %472, %c3_i32_188 : i32
    %474 = arith.index_cast %473 : i32 to index
    %475 = memref.load %arg1[%474] : memref<64xi32, #tpu.memory_space<smem>>
    %476 = arith.index_cast %475 : i32 to index
    %c0_189 = arith.constant 0 : index
    %c0_190 = arith.constant 0 : index
    %477 = vector.load %arg6[%476, %c0_189, %c0_190] : memref<16x8x16xf32, #tpu.memory_space<vmem>>, vector<1x8x16xf32>
    %478 = vector.shape_cast %477 : vector<1x8x16xf32> to vector<8x16xf32>
    %479 = vector.extract_strided_slice %3 {offsets = [4, 48], sizes = [1, 16], strides = [1, 1]} : vector<8x64xf32> to vector<1x16xf32>
    %480 = vector.extract_strided_slice %4 {offsets = [4, 48], sizes = [1, 16], strides = [1, 1]} : vector<8x64xf32> to vector<1x16xf32>
    %cst_191 = arith.constant 0.000000e+00 : f32
    %481 = vector.shape_cast %479 : vector<1x16xf32> to vector<1x16xf32>
    %482 = vector.broadcast %481 : vector<1x16xf32> to vector<16x16xf32>
    %483 = vector.broadcast %cst_191 : f32 to vector<16x16xf32>
    %484 = arith.select %399, %482, %483 : vector<16x16xi1>, vector<16x16xf32>
    %cst_192 = arith.constant 0.000000e+00 : f32
    %485 = vector.shape_cast %480 : vector<1x16xf32> to vector<1x16xf32>
    %486 = vector.broadcast %485 : vector<1x16xf32> to vector<16x16xf32>
    %487 = vector.broadcast %cst_192 : f32 to vector<16x16xf32>
    %488 = arith.select %402, %486, %487 : vector<16x16xi1>, vector<16x16xf32>
    %489 = arith.addf %484, %488 : vector<16x16xf32>
    %cst_193 = arith.constant dense<0.000000e+00> : vector<8x16xf32>
    %490 = tpu.matmul %478, %489, %cst_193 {dimension_numbers = #tpu.dot_dimension_numbers<[1], [0], [0], [1], [0, 0, 1, 1], [], []>} : vector<8x16xf32>, vector<16x16xf32>, vector<8x16xf32> -> vector<8x16xf32>
    %491 = arith.addf %469, %490 : vector<8x16xf32>
    %c4 = arith.constant 4 : index
    %c0_194 = arith.constant 0 : index
    %c0_195 = arith.constant 0 : index
    %492 = vector.load %arg7[%c4, %c0_194, %c0_195] : memref<8x8x16xf32, #tpu.memory_space<vmem>>, vector<1x8x16xf32>
    %493 = vector.shape_cast %492 : vector<1x8x16xf32> to vector<8x16xf32>
    %494 = vector.shape_cast %491 : vector<8x16xf32> to vector<1x8x16xf32>
    tpu.vector_store %arg7[%c4, %c0_194, %c0_195], %494 {strides = array<i32>} : memref<8x8x16xf32, #tpu.memory_space<vmem>>, vector<1x8x16xf32>,
    %495 = vector.extract_strided_slice %1 {offsets = [5, 0], sizes = [1, 16], strides = [1, 1]} : vector<8x16xi32> to vector<1x16xi32>
    %496 = vector.broadcast %495 : vector<1x16xi32> to vector<16x16xi32>
    %497 = arith.cmpi eq, %0, %496 : vector<16x16xi32>
    %498 = vector.extract_strided_slice %2 {offsets = [5, 0], sizes = [1, 16], strides = [1, 1]} : vector<8x16xi32> to vector<1x16xi32>
    %499 = vector.broadcast %498 : vector<1x16xi32> to vector<16x16xi32>
    %500 = arith.cmpi eq, %0, %499 : vector<16x16xi32>
    %cst_196 = arith.constant 0.000000e+00 : f32
    %501 = vector.broadcast %cst_196 : f32 to vector<8x16xf32>
    %c8_i32_197 = arith.constant 8 : i32
    %502 = arith.muli %arg0, %c8_i32_197 : i32
    %c5_i32 = arith.constant 5 : i32
    %503 = arith.addi %502, %c5_i32 : i32
    %c4_i32_198 = arith.constant 4 : i32
    %504 = arith.muli %503, %c4_i32_198 : i32
    %c0_i32_199 = arith.constant 0 : i32
    %505 = arith.addi %504, %c0_i32_199 : i32
    %506 = arith.index_cast %505 : i32 to index
    %507 = memref.load %arg1[%506] : memref<64xi32, #tpu.memory_space<smem>>
    %508 = arith.index_cast %507 : i32 to index
    %c0_200 = arith.constant 0 : index
    %c0_201 = arith.constant 0 : index
    %509 = vector.load %arg6[%508, %c0_200, %c0_201] : memref<16x8x16xf32, #tpu.memory_space<vmem>>, vector<1x8x16xf32>
    %510 = vector.shape_cast %509 : vector<1x8x16xf32> to vector<8x16xf32>
    %511 = vector.extract_strided_slice %3 {offsets = [5, 0], sizes = [1, 16], strides = [1, 1]} : vector<8x64xf32> to vector<1x16xf32>
    %512 = vector.extract_strided_slice %4 {offsets = [5, 0], sizes = [1, 16], strides = [1, 1]} : vector<8x64xf32> to vector<1x16xf32>
    %cst_202 = arith.constant 0.000000e+00 : f32
    %513 = vector.shape_cast %511 : vector<1x16xf32> to vector<1x16xf32>
    %514 = vector.broadcast %513 : vector<1x16xf32> to vector<16x16xf32>
    %515 = vector.broadcast %cst_202 : f32 to vector<16x16xf32>
    %516 = arith.select %497, %514, %515 : vector<16x16xi1>, vector<16x16xf32>
    %cst_203 = arith.constant 0.000000e+00 : f32
    %517 = vector.shape_cast %512 : vector<1x16xf32> to vector<1x16xf32>
    %518 = vector.broadcast %517 : vector<1x16xf32> to vector<16x16xf32>
    %519 = vector.broadcast %cst_203 : f32 to vector<16x16xf32>
    %520 = arith.select %500, %518, %519 : vector<16x16xi1>, vector<16x16xf32>
    %521 = arith.addf %516, %520 : vector<16x16xf32>
    %cst_204 = arith.constant dense<0.000000e+00> : vector<8x16xf32>
    %522 = tpu.matmul %510, %521, %cst_204 {dimension_numbers = #tpu.dot_dimension_numbers<[1], [0], [0], [1], [0, 0, 1, 1], [], []>} : vector<8x16xf32>, vector<16x16xf32>, vector<8x16xf32> -> vector<8x16xf32>
    %523 = arith.addf %501, %522 : vector<8x16xf32>
    %c8_i32_205 = arith.constant 8 : i32
    %524 = arith.muli %arg0, %c8_i32_205 : i32
    %c5_i32_206 = arith.constant 5 : i32
    %525 = arith.addi %524, %c5_i32_206 : i32
    %c4_i32_207 = arith.constant 4 : i32
    %526 = arith.muli %525, %c4_i32_207 : i32
    %c1_i32_208 = arith.constant 1 : i32
    %527 = arith.addi %526, %c1_i32_208 : i32
    %528 = arith.index_cast %527 : i32 to index
    %529 = memref.load %arg1[%528] : memref<64xi32, #tpu.memory_space<smem>>
    %530 = arith.index_cast %529 : i32 to index
    %c0_209 = arith.constant 0 : index
    %c0_210 = arith.constant 0 : index
    %531 = vector.load %arg6[%530, %c0_209, %c0_210] : memref<16x8x16xf32, #tpu.memory_space<vmem>>, vector<1x8x16xf32>
    %532 = vector.shape_cast %531 : vector<1x8x16xf32> to vector<8x16xf32>
    %533 = vector.extract_strided_slice %3 {offsets = [5, 16], sizes = [1, 16], strides = [1, 1]} : vector<8x64xf32> to vector<1x16xf32>
    %534 = vector.extract_strided_slice %4 {offsets = [5, 16], sizes = [1, 16], strides = [1, 1]} : vector<8x64xf32> to vector<1x16xf32>
    %cst_211 = arith.constant 0.000000e+00 : f32
    %535 = vector.shape_cast %533 : vector<1x16xf32> to vector<1x16xf32>
    %536 = vector.broadcast %535 : vector<1x16xf32> to vector<16x16xf32>
    %537 = vector.broadcast %cst_211 : f32 to vector<16x16xf32>
    %538 = arith.select %497, %536, %537 : vector<16x16xi1>, vector<16x16xf32>
    %cst_212 = arith.constant 0.000000e+00 : f32
    %539 = vector.shape_cast %534 : vector<1x16xf32> to vector<1x16xf32>
    %540 = vector.broadcast %539 : vector<1x16xf32> to vector<16x16xf32>
    %541 = vector.broadcast %cst_212 : f32 to vector<16x16xf32>
    %542 = arith.select %500, %540, %541 : vector<16x16xi1>, vector<16x16xf32>
    %543 = arith.addf %538, %542 : vector<16x16xf32>
    %cst_213 = arith.constant dense<0.000000e+00> : vector<8x16xf32>
    %544 = tpu.matmul %532, %543, %cst_213 {dimension_numbers = #tpu.dot_dimension_numbers<[1], [0], [0], [1], [0, 0, 1, 1], [], []>} : vector<8x16xf32>, vector<16x16xf32>, vector<8x16xf32> -> vector<8x16xf32>
    %545 = arith.addf %523, %544 : vector<8x16xf32>
    %c8_i32_214 = arith.constant 8 : i32
    %546 = arith.muli %arg0, %c8_i32_214 : i32
    %c5_i32_215 = arith.constant 5 : i32
    %547 = arith.addi %546, %c5_i32_215 : i32
    %c4_i32_216 = arith.constant 4 : i32
    %548 = arith.muli %547, %c4_i32_216 : i32
    %c2_i32_217 = arith.constant 2 : i32
    %549 = arith.addi %548, %c2_i32_217 : i32
    %550 = arith.index_cast %549 : i32 to index
    %551 = memref.load %arg1[%550] : memref<64xi32, #tpu.memory_space<smem>>
    %552 = arith.index_cast %551 : i32 to index
    %c0_218 = arith.constant 0 : index
    %c0_219 = arith.constant 0 : index
    %553 = vector.load %arg6[%552, %c0_218, %c0_219] : memref<16x8x16xf32, #tpu.memory_space<vmem>>, vector<1x8x16xf32>
    %554 = vector.shape_cast %553 : vector<1x8x16xf32> to vector<8x16xf32>
    %555 = vector.extract_strided_slice %3 {offsets = [5, 32], sizes = [1, 16], strides = [1, 1]} : vector<8x64xf32> to vector<1x16xf32>
    %556 = vector.extract_strided_slice %4 {offsets = [5, 32], sizes = [1, 16], strides = [1, 1]} : vector<8x64xf32> to vector<1x16xf32>
    %cst_220 = arith.constant 0.000000e+00 : f32
    %557 = vector.shape_cast %555 : vector<1x16xf32> to vector<1x16xf32>
    %558 = vector.broadcast %557 : vector<1x16xf32> to vector<16x16xf32>
    %559 = vector.broadcast %cst_220 : f32 to vector<16x16xf32>
    %560 = arith.select %497, %558, %559 : vector<16x16xi1>, vector<16x16xf32>
    %cst_221 = arith.constant 0.000000e+00 : f32
    %561 = vector.shape_cast %556 : vector<1x16xf32> to vector<1x16xf32>
    %562 = vector.broadcast %561 : vector<1x16xf32> to vector<16x16xf32>
    %563 = vector.broadcast %cst_221 : f32 to vector<16x16xf32>
    %564 = arith.select %500, %562, %563 : vector<16x16xi1>, vector<16x16xf32>
    %565 = arith.addf %560, %564 : vector<16x16xf32>
    %cst_222 = arith.constant dense<0.000000e+00> : vector<8x16xf32>
    %566 = tpu.matmul %554, %565, %cst_222 {dimension_numbers = #tpu.dot_dimension_numbers<[1], [0], [0], [1], [0, 0, 1, 1], [], []>} : vector<8x16xf32>, vector<16x16xf32>, vector<8x16xf32> -> vector<8x16xf32>
    %567 = arith.addf %545, %566 : vector<8x16xf32>
    %c8_i32_223 = arith.constant 8 : i32
    %568 = arith.muli %arg0, %c8_i32_223 : i32
    %c5_i32_224 = arith.constant 5 : i32
    %569 = arith.addi %568, %c5_i32_224 : i32
    %c4_i32_225 = arith.constant 4 : i32
    %570 = arith.muli %569, %c4_i32_225 : i32
    %c3_i32_226 = arith.constant 3 : i32
    %571 = arith.addi %570, %c3_i32_226 : i32
    %572 = arith.index_cast %571 : i32 to index
    %573 = memref.load %arg1[%572] : memref<64xi32, #tpu.memory_space<smem>>
    %574 = arith.index_cast %573 : i32 to index
    %c0_227 = arith.constant 0 : index
    %c0_228 = arith.constant 0 : index
    %575 = vector.load %arg6[%574, %c0_227, %c0_228] : memref<16x8x16xf32, #tpu.memory_space<vmem>>, vector<1x8x16xf32>
    %576 = vector.shape_cast %575 : vector<1x8x16xf32> to vector<8x16xf32>
    %577 = vector.extract_strided_slice %3 {offsets = [5, 48], sizes = [1, 16], strides = [1, 1]} : vector<8x64xf32> to vector<1x16xf32>
    %578 = vector.extract_strided_slice %4 {offsets = [5, 48], sizes = [1, 16], strides = [1, 1]} : vector<8x64xf32> to vector<1x16xf32>
    %cst_229 = arith.constant 0.000000e+00 : f32
    %579 = vector.shape_cast %577 : vector<1x16xf32> to vector<1x16xf32>
    %580 = vector.broadcast %579 : vector<1x16xf32> to vector<16x16xf32>
    %581 = vector.broadcast %cst_229 : f32 to vector<16x16xf32>
    %582 = arith.select %497, %580, %581 : vector<16x16xi1>, vector<16x16xf32>
    %cst_230 = arith.constant 0.000000e+00 : f32
    %583 = vector.shape_cast %578 : vector<1x16xf32> to vector<1x16xf32>
    %584 = vector.broadcast %583 : vector<1x16xf32> to vector<16x16xf32>
    %585 = vector.broadcast %cst_230 : f32 to vector<16x16xf32>
    %586 = arith.select %500, %584, %585 : vector<16x16xi1>, vector<16x16xf32>
    %587 = arith.addf %582, %586 : vector<16x16xf32>
    %cst_231 = arith.constant dense<0.000000e+00> : vector<8x16xf32>
    %588 = tpu.matmul %576, %587, %cst_231 {dimension_numbers = #tpu.dot_dimension_numbers<[1], [0], [0], [1], [0, 0, 1, 1], [], []>} : vector<8x16xf32>, vector<16x16xf32>, vector<8x16xf32> -> vector<8x16xf32>
    %589 = arith.addf %567, %588 : vector<8x16xf32>
    %c5 = arith.constant 5 : index
    %c0_232 = arith.constant 0 : index
    %c0_233 = arith.constant 0 : index
    %590 = vector.load %arg7[%c5, %c0_232, %c0_233] : memref<8x8x16xf32, #tpu.memory_space<vmem>>, vector<1x8x16xf32>
    %591 = vector.shape_cast %590 : vector<1x8x16xf32> to vector<8x16xf32>
    %592 = vector.shape_cast %589 : vector<8x16xf32> to vector<1x8x16xf32>
    tpu.vector_store %arg7[%c5, %c0_232, %c0_233], %592 {strides = array<i32>} : memref<8x8x16xf32, #tpu.memory_space<vmem>>, vector<1x8x16xf32>,
    %593 = vector.extract_strided_slice %1 {offsets = [6, 0], sizes = [1, 16], strides = [1, 1]} : vector<8x16xi32> to vector<1x16xi32>
    %594 = vector.broadcast %593 : vector<1x16xi32> to vector<16x16xi32>
    %595 = arith.cmpi eq, %0, %594 : vector<16x16xi32>
    %596 = vector.extract_strided_slice %2 {offsets = [6, 0], sizes = [1, 16], strides = [1, 1]} : vector<8x16xi32> to vector<1x16xi32>
    %597 = vector.broadcast %596 : vector<1x16xi32> to vector<16x16xi32>
    %598 = arith.cmpi eq, %0, %597 : vector<16x16xi32>
    %cst_234 = arith.constant 0.000000e+00 : f32
    %599 = vector.broadcast %cst_234 : f32 to vector<8x16xf32>
    %c8_i32_235 = arith.constant 8 : i32
    %600 = arith.muli %arg0, %c8_i32_235 : i32
    %c6_i32 = arith.constant 6 : i32
    %601 = arith.addi %600, %c6_i32 : i32
    %c4_i32_236 = arith.constant 4 : i32
    %602 = arith.muli %601, %c4_i32_236 : i32
    %c0_i32_237 = arith.constant 0 : i32
    %603 = arith.addi %602, %c0_i32_237 : i32
    %604 = arith.index_cast %603 : i32 to index
    %605 = memref.load %arg1[%604] : memref<64xi32, #tpu.memory_space<smem>>
    %606 = arith.index_cast %605 : i32 to index
    %c0_238 = arith.constant 0 : index
    %c0_239 = arith.constant 0 : index
    %607 = vector.load %arg6[%606, %c0_238, %c0_239] : memref<16x8x16xf32, #tpu.memory_space<vmem>>, vector<1x8x16xf32>
    %608 = vector.shape_cast %607 : vector<1x8x16xf32> to vector<8x16xf32>
    %609 = vector.extract_strided_slice %3 {offsets = [6, 0], sizes = [1, 16], strides = [1, 1]} : vector<8x64xf32> to vector<1x16xf32>
    %610 = vector.extract_strided_slice %4 {offsets = [6, 0], sizes = [1, 16], strides = [1, 1]} : vector<8x64xf32> to vector<1x16xf32>
    %cst_240 = arith.constant 0.000000e+00 : f32
    %611 = vector.shape_cast %609 : vector<1x16xf32> to vector<1x16xf32>
    %612 = vector.broadcast %611 : vector<1x16xf32> to vector<16x16xf32>
    %613 = vector.broadcast %cst_240 : f32 to vector<16x16xf32>
    %614 = arith.select %595, %612, %613 : vector<16x16xi1>, vector<16x16xf32>
    %cst_241 = arith.constant 0.000000e+00 : f32
    %615 = vector.shape_cast %610 : vector<1x16xf32> to vector<1x16xf32>
    %616 = vector.broadcast %615 : vector<1x16xf32> to vector<16x16xf32>
    %617 = vector.broadcast %cst_241 : f32 to vector<16x16xf32>
    %618 = arith.select %598, %616, %617 : vector<16x16xi1>, vector<16x16xf32>
    %619 = arith.addf %614, %618 : vector<16x16xf32>
    %cst_242 = arith.constant dense<0.000000e+00> : vector<8x16xf32>
    %620 = tpu.matmul %608, %619, %cst_242 {dimension_numbers = #tpu.dot_dimension_numbers<[1], [0], [0], [1], [0, 0, 1, 1], [], []>} : vector<8x16xf32>, vector<16x16xf32>, vector<8x16xf32> -> vector<8x16xf32>
    %621 = arith.addf %599, %620 : vector<8x16xf32>
    %c8_i32_243 = arith.constant 8 : i32
    %622 = arith.muli %arg0, %c8_i32_243 : i32
    %c6_i32_244 = arith.constant 6 : i32
    %623 = arith.addi %622, %c6_i32_244 : i32
    %c4_i32_245 = arith.constant 4 : i32
    %624 = arith.muli %623, %c4_i32_245 : i32
    %c1_i32_246 = arith.constant 1 : i32
    %625 = arith.addi %624, %c1_i32_246 : i32
    %626 = arith.index_cast %625 : i32 to index
    %627 = memref.load %arg1[%626] : memref<64xi32, #tpu.memory_space<smem>>
    %628 = arith.index_cast %627 : i32 to index
    %c0_247 = arith.constant 0 : index
    %c0_248 = arith.constant 0 : index
    %629 = vector.load %arg6[%628, %c0_247, %c0_248] : memref<16x8x16xf32, #tpu.memory_space<vmem>>, vector<1x8x16xf32>
    %630 = vector.shape_cast %629 : vector<1x8x16xf32> to vector<8x16xf32>
    %631 = vector.extract_strided_slice %3 {offsets = [6, 16], sizes = [1, 16], strides = [1, 1]} : vector<8x64xf32> to vector<1x16xf32>
    %632 = vector.extract_strided_slice %4 {offsets = [6, 16], sizes = [1, 16], strides = [1, 1]} : vector<8x64xf32> to vector<1x16xf32>
    %cst_249 = arith.constant 0.000000e+00 : f32
    %633 = vector.shape_cast %631 : vector<1x16xf32> to vector<1x16xf32>
    %634 = vector.broadcast %633 : vector<1x16xf32> to vector<16x16xf32>
    %635 = vector.broadcast %cst_249 : f32 to vector<16x16xf32>
    %636 = arith.select %595, %634, %635 : vector<16x16xi1>, vector<16x16xf32>
    %cst_250 = arith.constant 0.000000e+00 : f32
    %637 = vector.shape_cast %632 : vector<1x16xf32> to vector<1x16xf32>
    %638 = vector.broadcast %637 : vector<1x16xf32> to vector<16x16xf32>
    %639 = vector.broadcast %cst_250 : f32 to vector<16x16xf32>
    %640 = arith.select %598, %638, %639 : vector<16x16xi1>, vector<16x16xf32>
    %641 = arith.addf %636, %640 : vector<16x16xf32>
    %cst_251 = arith.constant dense<0.000000e+00> : vector<8x16xf32>
    %642 = tpu.matmul %630, %641, %cst_251 {dimension_numbers = #tpu.dot_dimension_numbers<[1], [0], [0], [1], [0, 0, 1, 1], [], []>} : vector<8x16xf32>, vector<16x16xf32>, vector<8x16xf32> -> vector<8x16xf32>
    %643 = arith.addf %621, %642 : vector<8x16xf32>
    %c8_i32_252 = arith.constant 8 : i32
    %644 = arith.muli %arg0, %c8_i32_252 : i32
    %c6_i32_253 = arith.constant 6 : i32
    %645 = arith.addi %644, %c6_i32_253 : i32
    %c4_i32_254 = arith.constant 4 : i32
    %646 = arith.muli %645, %c4_i32_254 : i32
    %c2_i32_255 = arith.constant 2 : i32
    %647 = arith.addi %646, %c2_i32_255 : i32
    %648 = arith.index_cast %647 : i32 to index
    %649 = memref.load %arg1[%648] : memref<64xi32, #tpu.memory_space<smem>>
    %650 = arith.index_cast %649 : i32 to index
    %c0_256 = arith.constant 0 : index
    %c0_257 = arith.constant 0 : index
    %651 = vector.load %arg6[%650, %c0_256, %c0_257] : memref<16x8x16xf32, #tpu.memory_space<vmem>>, vector<1x8x16xf32>
    %652 = vector.shape_cast %651 : vector<1x8x16xf32> to vector<8x16xf32>
    %653 = vector.extract_strided_slice %3 {offsets = [6, 32], sizes = [1, 16], strides = [1, 1]} : vector<8x64xf32> to vector<1x16xf32>
    %654 = vector.extract_strided_slice %4 {offsets = [6, 32], sizes = [1, 16], strides = [1, 1]} : vector<8x64xf32> to vector<1x16xf32>
    %cst_258 = arith.constant 0.000000e+00 : f32
    %655 = vector.shape_cast %653 : vector<1x16xf32> to vector<1x16xf32>
    %656 = vector.broadcast %655 : vector<1x16xf32> to vector<16x16xf32>
    %657 = vector.broadcast %cst_258 : f32 to vector<16x16xf32>
    %658 = arith.select %595, %656, %657 : vector<16x16xi1>, vector<16x16xf32>
    %cst_259 = arith.constant 0.000000e+00 : f32
    %659 = vector.shape_cast %654 : vector<1x16xf32> to vector<1x16xf32>
    %660 = vector.broadcast %659 : vector<1x16xf32> to vector<16x16xf32>
    %661 = vector.broadcast %cst_259 : f32 to vector<16x16xf32>
    %662 = arith.select %598, %660, %661 : vector<16x16xi1>, vector<16x16xf32>
    %663 = arith.addf %658, %662 : vector<16x16xf32>
    %cst_260 = arith.constant dense<0.000000e+00> : vector<8x16xf32>
    %664 = tpu.matmul %652, %663, %cst_260 {dimension_numbers = #tpu.dot_dimension_numbers<[1], [0], [0], [1], [0, 0, 1, 1], [], []>} : vector<8x16xf32>, vector<16x16xf32>, vector<8x16xf32> -> vector<8x16xf32>
    %665 = arith.addf %643, %664 : vector<8x16xf32>
    %c8_i32_261 = arith.constant 8 : i32
    %666 = arith.muli %arg0, %c8_i32_261 : i32
    %c6_i32_262 = arith.constant 6 : i32
    %667 = arith.addi %666, %c6_i32_262 : i32
    %c4_i32_263 = arith.constant 4 : i32
    %668 = arith.muli %667, %c4_i32_263 : i32
    %c3_i32_264 = arith.constant 3 : i32
    %669 = arith.addi %668, %c3_i32_264 : i32
    %670 = arith.index_cast %669 : i32 to index
    %671 = memref.load %arg1[%670] : memref<64xi32, #tpu.memory_space<smem>>
    %672 = arith.index_cast %671 : i32 to index
    %c0_265 = arith.constant 0 : index
    %c0_266 = arith.constant 0 : index
    %673 = vector.load %arg6[%672, %c0_265, %c0_266] : memref<16x8x16xf32, #tpu.memory_space<vmem>>, vector<1x8x16xf32>
    %674 = vector.shape_cast %673 : vector<1x8x16xf32> to vector<8x16xf32>
    %675 = vector.extract_strided_slice %3 {offsets = [6, 48], sizes = [1, 16], strides = [1, 1]} : vector<8x64xf32> to vector<1x16xf32>
    %676 = vector.extract_strided_slice %4 {offsets = [6, 48], sizes = [1, 16], strides = [1, 1]} : vector<8x64xf32> to vector<1x16xf32>
    %cst_267 = arith.constant 0.000000e+00 : f32
    %677 = vector.shape_cast %675 : vector<1x16xf32> to vector<1x16xf32>
    %678 = vector.broadcast %677 : vector<1x16xf32> to vector<16x16xf32>
    %679 = vector.broadcast %cst_267 : f32 to vector<16x16xf32>
    %680 = arith.select %595, %678, %679 : vector<16x16xi1>, vector<16x16xf32>
    %cst_268 = arith.constant 0.000000e+00 : f32
    %681 = vector.shape_cast %676 : vector<1x16xf32> to vector<1x16xf32>
    %682 = vector.broadcast %681 : vector<1x16xf32> to vector<16x16xf32>
    %683 = vector.broadcast %cst_268 : f32 to vector<16x16xf32>
    %684 = arith.select %598, %682, %683 : vector<16x16xi1>, vector<16x16xf32>
    %685 = arith.addf %680, %684 : vector<16x16xf32>
    %cst_269 = arith.constant dense<0.000000e+00> : vector<8x16xf32>
    %686 = tpu.matmul %674, %685, %cst_269 {dimension_numbers = #tpu.dot_dimension_numbers<[1], [0], [0], [1], [0, 0, 1, 1], [], []>} : vector<8x16xf32>, vector<16x16xf32>, vector<8x16xf32> -> vector<8x16xf32>
    %687 = arith.addf %665, %686 : vector<8x16xf32>
    %c6 = arith.constant 6 : index
    %c0_270 = arith.constant 0 : index
    %c0_271 = arith.constant 0 : index
    %688 = vector.load %arg7[%c6, %c0_270, %c0_271] : memref<8x8x16xf32, #tpu.memory_space<vmem>>, vector<1x8x16xf32>
    %689 = vector.shape_cast %688 : vector<1x8x16xf32> to vector<8x16xf32>
    %690 = vector.shape_cast %687 : vector<8x16xf32> to vector<1x8x16xf32>
    tpu.vector_store %arg7[%c6, %c0_270, %c0_271], %690 {strides = array<i32>} : memref<8x8x16xf32, #tpu.memory_space<vmem>>, vector<1x8x16xf32>,
    %691 = vector.extract_strided_slice %1 {offsets = [7, 0], sizes = [1, 16], strides = [1, 1]} : vector<8x16xi32> to vector<1x16xi32>
    %692 = vector.broadcast %691 : vector<1x16xi32> to vector<16x16xi32>
    %693 = arith.cmpi eq, %0, %692 : vector<16x16xi32>
    %694 = vector.extract_strided_slice %2 {offsets = [7, 0], sizes = [1, 16], strides = [1, 1]} : vector<8x16xi32> to vector<1x16xi32>
    %695 = vector.broadcast %694 : vector<1x16xi32> to vector<16x16xi32>
    %696 = arith.cmpi eq, %0, %695 : vector<16x16xi32>
    %cst_272 = arith.constant 0.000000e+00 : f32
    %697 = vector.broadcast %cst_272 : f32 to vector<8x16xf32>
    %c8_i32_273 = arith.constant 8 : i32
    %698 = arith.muli %arg0, %c8_i32_273 : i32
    %c7_i32 = arith.constant 7 : i32
    %699 = arith.addi %698, %c7_i32 : i32
    %c4_i32_274 = arith.constant 4 : i32
    %700 = arith.muli %699, %c4_i32_274 : i32
    %c0_i32_275 = arith.constant 0 : i32
    %701 = arith.addi %700, %c0_i32_275 : i32
    %702 = arith.index_cast %701 : i32 to index
    %703 = memref.load %arg1[%702] : memref<64xi32, #tpu.memory_space<smem>>
    %704 = arith.index_cast %703 : i32 to index
    %c0_276 = arith.constant 0 : index
    %c0_277 = arith.constant 0 : index
    %705 = vector.load %arg6[%704, %c0_276, %c0_277] : memref<16x8x16xf32, #tpu.memory_space<vmem>>, vector<1x8x16xf32>
    %706 = vector.shape_cast %705 : vector<1x8x16xf32> to vector<8x16xf32>
    %707 = vector.extract_strided_slice %3 {offsets = [7, 0], sizes = [1, 16], strides = [1, 1]} : vector<8x64xf32> to vector<1x16xf32>
    %708 = vector.extract_strided_slice %4 {offsets = [7, 0], sizes = [1, 16], strides = [1, 1]} : vector<8x64xf32> to vector<1x16xf32>
    %cst_278 = arith.constant 0.000000e+00 : f32
    %709 = vector.shape_cast %707 : vector<1x16xf32> to vector<1x16xf32>
    %710 = vector.broadcast %709 : vector<1x16xf32> to vector<16x16xf32>
    %711 = vector.broadcast %cst_278 : f32 to vector<16x16xf32>
    %712 = arith.select %693, %710, %711 : vector<16x16xi1>, vector<16x16xf32>
    %cst_279 = arith.constant 0.000000e+00 : f32
    %713 = vector.shape_cast %708 : vector<1x16xf32> to vector<1x16xf32>
    %714 = vector.broadcast %713 : vector<1x16xf32> to vector<16x16xf32>
    %715 = vector.broadcast %cst_279 : f32 to vector<16x16xf32>
    %716 = arith.select %696, %714, %715 : vector<16x16xi1>, vector<16x16xf32>
    %717 = arith.addf %712, %716 : vector<16x16xf32>
    %cst_280 = arith.constant dense<0.000000e+00> : vector<8x16xf32>
    %718 = tpu.matmul %706, %717, %cst_280 {dimension_numbers = #tpu.dot_dimension_numbers<[1], [0], [0], [1], [0, 0, 1, 1], [], []>} : vector<8x16xf32>, vector<16x16xf32>, vector<8x16xf32> -> vector<8x16xf32>
    %719 = arith.addf %697, %718 : vector<8x16xf32>
    %c8_i32_281 = arith.constant 8 : i32
    %720 = arith.muli %arg0, %c8_i32_281 : i32
    %c7_i32_282 = arith.constant 7 : i32
    %721 = arith.addi %720, %c7_i32_282 : i32
    %c4_i32_283 = arith.constant 4 : i32
    %722 = arith.muli %721, %c4_i32_283 : i32
    %c1_i32_284 = arith.constant 1 : i32
    %723 = arith.addi %722, %c1_i32_284 : i32
    %724 = arith.index_cast %723 : i32 to index
    %725 = memref.load %arg1[%724] : memref<64xi32, #tpu.memory_space<smem>>
    %726 = arith.index_cast %725 : i32 to index
    %c0_285 = arith.constant 0 : index
    %c0_286 = arith.constant 0 : index
    %727 = vector.load %arg6[%726, %c0_285, %c0_286] : memref<16x8x16xf32, #tpu.memory_space<vmem>>, vector<1x8x16xf32>
    %728 = vector.shape_cast %727 : vector<1x8x16xf32> to vector<8x16xf32>
    %729 = vector.extract_strided_slice %3 {offsets = [7, 16], sizes = [1, 16], strides = [1, 1]} : vector<8x64xf32> to vector<1x16xf32>
    %730 = vector.extract_strided_slice %4 {offsets = [7, 16], sizes = [1, 16], strides = [1, 1]} : vector<8x64xf32> to vector<1x16xf32>
    %cst_287 = arith.constant 0.000000e+00 : f32
    %731 = vector.shape_cast %729 : vector<1x16xf32> to vector<1x16xf32>
    %732 = vector.broadcast %731 : vector<1x16xf32> to vector<16x16xf32>
    %733 = vector.broadcast %cst_287 : f32 to vector<16x16xf32>
    %734 = arith.select %693, %732, %733 : vector<16x16xi1>, vector<16x16xf32>
    %cst_288 = arith.constant 0.000000e+00 : f32
    %735 = vector.shape_cast %730 : vector<1x16xf32> to vector<1x16xf32>
    %736 = vector.broadcast %735 : vector<1x16xf32> to vector<16x16xf32>
    %737 = vector.broadcast %cst_288 : f32 to vector<16x16xf32>
    %738 = arith.select %696, %736, %737 : vector<16x16xi1>, vector<16x16xf32>
    %739 = arith.addf %734, %738 : vector<16x16xf32>
    %cst_289 = arith.constant dense<0.000000e+00> : vector<8x16xf32>
    %740 = tpu.matmul %728, %739, %cst_289 {dimension_numbers = #tpu.dot_dimension_numbers<[1], [0], [0], [1], [0, 0, 1, 1], [], []>} : vector<8x16xf32>, vector<16x16xf32>, vector<8x16xf32> -> vector<8x16xf32>
    %741 = arith.addf %719, %740 : vector<8x16xf32>
    %c8_i32_290 = arith.constant 8 : i32
    %742 = arith.muli %arg0, %c8_i32_290 : i32
    %c7_i32_291 = arith.constant 7 : i32
    %743 = arith.addi %742, %c7_i32_291 : i32
    %c4_i32_292 = arith.constant 4 : i32
    %744 = arith.muli %743, %c4_i32_292 : i32
    %c2_i32_293 = arith.constant 2 : i32
    %745 = arith.addi %744, %c2_i32_293 : i32
    %746 = arith.index_cast %745 : i32 to index
    %747 = memref.load %arg1[%746] : memref<64xi32, #tpu.memory_space<smem>>
    %748 = arith.index_cast %747 : i32 to index
    %c0_294 = arith.constant 0 : index
    %c0_295 = arith.constant 0 : index
    %749 = vector.load %arg6[%748, %c0_294, %c0_295] : memref<16x8x16xf32, #tpu.memory_space<vmem>>, vector<1x8x16xf32>
    %750 = vector.shape_cast %749 : vector<1x8x16xf32> to vector<8x16xf32>
    %751 = vector.extract_strided_slice %3 {offsets = [7, 32], sizes = [1, 16], strides = [1, 1]} : vector<8x64xf32> to vector<1x16xf32>
    %752 = vector.extract_strided_slice %4 {offsets = [7, 32], sizes = [1, 16], strides = [1, 1]} : vector<8x64xf32> to vector<1x16xf32>
    %cst_296 = arith.constant 0.000000e+00 : f32
    %753 = vector.shape_cast %751 : vector<1x16xf32> to vector<1x16xf32>
    %754 = vector.broadcast %753 : vector<1x16xf32> to vector<16x16xf32>
    %755 = vector.broadcast %cst_296 : f32 to vector<16x16xf32>
    %756 = arith.select %693, %754, %755 : vector<16x16xi1>, vector<16x16xf32>
    %cst_297 = arith.constant 0.000000e+00 : f32
    %757 = vector.shape_cast %752 : vector<1x16xf32> to vector<1x16xf32>
    %758 = vector.broadcast %757 : vector<1x16xf32> to vector<16x16xf32>
    %759 = vector.broadcast %cst_297 : f32 to vector<16x16xf32>
    %760 = arith.select %696, %758, %759 : vector<16x16xi1>, vector<16x16xf32>
    %761 = arith.addf %756, %760 : vector<16x16xf32>
    %cst_298 = arith.constant dense<0.000000e+00> : vector<8x16xf32>
    %762 = tpu.matmul %750, %761, %cst_298 {dimension_numbers = #tpu.dot_dimension_numbers<[1], [0], [0], [1], [0, 0, 1, 1], [], []>} : vector<8x16xf32>, vector<16x16xf32>, vector<8x16xf32> -> vector<8x16xf32>
    %763 = arith.addf %741, %762 : vector<8x16xf32>
    %c8_i32_299 = arith.constant 8 : i32
    %764 = arith.muli %arg0, %c8_i32_299 : i32
    %c7_i32_300 = arith.constant 7 : i32
    %765 = arith.addi %764, %c7_i32_300 : i32
    %c4_i32_301 = arith.constant 4 : i32
    %766 = arith.muli %765, %c4_i32_301 : i32
    %c3_i32_302 = arith.constant 3 : i32
    %767 = arith.addi %766, %c3_i32_302 : i32
    %768 = arith.index_cast %767 : i32 to index
    %769 = memref.load %arg1[%768] : memref<64xi32, #tpu.memory_space<smem>>
    %770 = arith.index_cast %769 : i32 to index
    %c0_303 = arith.constant 0 : index
    %c0_304 = arith.constant 0 : index
    %771 = vector.load %arg6[%770, %c0_303, %c0_304] : memref<16x8x16xf32, #tpu.memory_space<vmem>>, vector<1x8x16xf32>
    %772 = vector.shape_cast %771 : vector<1x8x16xf32> to vector<8x16xf32>
    %773 = vector.extract_strided_slice %3 {offsets = [7, 48], sizes = [1, 16], strides = [1, 1]} : vector<8x64xf32> to vector<1x16xf32>
    %774 = vector.extract_strided_slice %4 {offsets = [7, 48], sizes = [1, 16], strides = [1, 1]} : vector<8x64xf32> to vector<1x16xf32>
    %cst_305 = arith.constant 0.000000e+00 : f32
    %775 = vector.shape_cast %773 : vector<1x16xf32> to vector<1x16xf32>
    %776 = vector.broadcast %775 : vector<1x16xf32> to vector<16x16xf32>
    %777 = vector.broadcast %cst_305 : f32 to vector<16x16xf32>
    %778 = arith.select %693, %776, %777 : vector<16x16xi1>, vector<16x16xf32>
    %cst_306 = arith.constant 0.000000e+00 : f32
    %779 = vector.shape_cast %774 : vector<1x16xf32> to vector<1x16xf32>
    %780 = vector.broadcast %779 : vector<1x16xf32> to vector<16x16xf32>
    %781 = vector.broadcast %cst_306 : f32 to vector<16x16xf32>
    %782 = arith.select %696, %780, %781 : vector<16x16xi1>, vector<16x16xf32>
    %783 = arith.addf %778, %782 : vector<16x16xf32>
    %cst_307 = arith.constant dense<0.000000e+00> : vector<8x16xf32>
    %784 = tpu.matmul %772, %783, %cst_307 {dimension_numbers = #tpu.dot_dimension_numbers<[1], [0], [0], [1], [0, 0, 1, 1], [], []>} : vector<8x16xf32>, vector<16x16xf32>, vector<8x16xf32> -> vector<8x16xf32>
    %785 = arith.addf %763, %784 : vector<8x16xf32>
    %c7 = arith.constant 7 : index
    %c0_308 = arith.constant 0 : index
    %c0_309 = arith.constant 0 : index
    %786 = vector.load %arg7[%c7, %c0_308, %c0_309] : memref<8x8x16xf32, #tpu.memory_space<vmem>>, vector<1x8x16xf32>
    %787 = vector.shape_cast %786 : vector<1x8x16xf32> to vector<8x16xf32>
    %788 = vector.shape_cast %785 : vector<8x16xf32> to vector<1x8x16xf32>
    tpu.vector_store %arg7[%c7, %c0_308, %c0_309], %788 {strides = array<i32>} : memref<8x8x16xf32, #tpu.memory_space<vmem>>, vector<1x8x16xf32>,
    return
  }
  func.func @transform_0(%arg0: i32, %arg1: memref<64xi32, #tpu.memory_space<smem>>) -> (i32, i32) {
    %c0_i32 = arith.constant 0 : i32
    %c0_i32_0 = arith.constant 0 : i32
    return %arg0, %c0_i32 : i32, i32
  }
  func.func @transform_1(%arg0: i32, %arg1: memref<64xi32, #tpu.memory_space<smem>>) -> (i32, i32) {
    %c0_i32 = arith.constant 0 : i32
    %c0_i32_0 = arith.constant 0 : i32
    return %arg0, %c0_i32 : i32, i32
  }
  func.func @transform_2(%arg0: i32, %arg1: memref<64xi32, #tpu.memory_space<smem>>) -> (i32, i32) {
    %c0_i32 = arith.constant 0 : i32
    %c0_i32_0 = arith.constant 0 : i32
    return %arg0, %c0_i32 : i32, i32
  }
  func.func @transform_3(%arg0: i32, %arg1: memref<64xi32, #tpu.memory_space<smem>>) -> (i32, i32) {
    %c0_i32 = arith.constant 0 : i32
    %c0_i32_0 = arith.constant 0 : i32
    return %arg0, %c0_i32 : i32, i32
  }
  func.func @transform_4(%arg0: i32, %arg1: memref<64xi32, #tpu.memory_space<smem>>) -> (i32, i32, i32) {
    %c0_i32 = arith.constant 0 : i32
    %c0_i32_0 = arith.constant 0 : i32
    %c0_i32_1 = arith.constant 0 : i32
    %c0_i32_2 = arith.constant 0 : i32
    return %c0_i32, %c0_i32_0, %c0_i32_1 : i32, i32, i32
  }
  func.func @transform_5(%arg0: i32, %arg1: memref<64xi32, #tpu.memory_space<smem>>) -> (i32, i32, i32) {
    %c0_i32 = arith.constant 0 : i32
    %c0_i32_0 = arith.constant 0 : i32
    %c0_i32_1 = arith.constant 0 : i32
    return %arg0, %c0_i32, %c0_i32_0 : i32, i32, i32
  }
}

</mosaic_0001>

<llo_original>
// kernel: tpu_custom_call.1
$region0: #{tpu_custom_call.1}
  #allocation0 [shape = 'u32[]', space=smem, size = 0x4, offset = 0x4, fixed_abs, tag = 'smem constant byte address 0x4 - core index']
  #allocation1 [shape = 'u32[72,128]{1,0:T(1,128)}', space=vmem, size = 0x9000, scoped, tag = 'internal scratch']
  #allocation2 [shape = 's32[1]{0}', space=sflag, size = 0x4, scoped, tag = 'scoped memory for tpu_custom_call.1']
  #allocation3 [shape = 'u8[512]{0}', space=smem, size = 0x200, scoped, tag = 'prefetched SMEM operand 0']
  %s0 = inlined_call_operand.hbm [shape: s32[64], index: 0, kind: input, shape index: {}]
  %s1 = inlined_call_operand.hbm [shape: s32[16,16], index: 1, kind: input, shape index: {}]
  %s2 = inlined_call_operand.hbm [shape: s32[16,16], index: 2, kind: input, shape index: {}]
  %s3 = inlined_call_operand.hbm [shape: f32[16,64], index: 3, kind: input, shape index: {}]
  %s4 = inlined_call_operand.hbm [shape: f32[16,64], index: 4, kind: input, shape index: {}]
  %s5 = inlined_call_operand.hbm [shape: f32[16,8,16], index: 5, kind: input, shape index: {}]
  %s6 = inlined_call_operand.hbm [shape: f32[16,8,16], index: 6, kind: output, shape index: {}]
  %s7 = sld [smem:[#allocation0]]
  $region73: #{tpu_custom_call.1} parent=0
    _
  %s9 = ssub.s32 1, %s7
  %s10 = scalar_select 0, %s9, %s7
  %s12 = sshll.u32 %s0, 4
  %s13 = int_to_ptr.hbm [resolvable:$true] %s12
  %15 = dma.hbm_to_smem %s13, 16, [#allocation3], [#allocation2]
  %17 = dma.done [#allocation2], 16
  %18 = sfence
  $region1: #{tpu_custom_call.1} parent=0
    #allocation4 [shape = 'u8[8192]{0}', space=vmem, size = 0x2000, scoped, tag = 'input window, operand 1']
    #allocation5 [shape = 's32[2]{0}', space=sflag, size = 0x8, scoped, tag = 'scoped memory for tpu_custom_call.1']
    #allocation6 [shape = 's32[2]{0}', space=sflag, size = 0x8, scoped, tag = 'scoped memory for tpu_custom_call.1']
    #allocation7 [shape = 'u8[8192]{0}', space=vmem, size = 0x2000, scoped, tag = 'input window, operand 2']
    #allocation8 [shape = 's32[2]{0}', space=sflag, size = 0x8, scoped, tag = 'scoped memory for tpu_custom_call.1']
    #allocation9 [shape = 'u8[8192]{0}', space=vmem, size = 0x2000, scoped, tag = 'input window, operand 3']
    #allocation10 [shape = 'u8[8192]{0}', space=vmem, size = 0x2000, scoped, tag = 'input window, operand 4']
    #allocation11 [shape = 's32[2]{0}', space=sflag, size = 0x8, scoped, tag = 'scoped memory for tpu_custom_call.1']
    #allocation12 [shape = 'u8[65536]{0}', space=vmem, size = 0x10000, scoped, tag = 'input window, operand 5, single buffered']
    #allocation13 [shape = 'u8[65536]{0}', space=vmem, size = 0x10000, scoped, tag = 'output window, operand 0']
    %19 = vsyncpa [#allocation5], 0
    %s20 = scalar_lea.sflag [#allocation5], 1
    %21 = vsyncpa %s20, 0
    %22 = vsyncpa [#allocation8], 0
    %s23 = scalar_lea.sflag [#allocation8], 1
    %24 = vsyncpa %s23, 0
    %25 = vsyncpa [#allocation11], 0
    %s26 = scalar_lea.sflag [#allocation11], 1
    %27 = vsyncpa %s26, 0
    %28 = vsyncpa [#allocation6], 0
    %s29 = scalar_lea.sflag [#allocation6], 1
    %30 = vsyncpa %s29, 0
    loop: start=0, step=1, limit=4
    $region2: #{tpu_custom_call.1} parent=1 // loop_pre_header
      _
    $region3: #{tpu_custom_call.1} parent=1 // loop_header
      %s32 = sphi 0, %s36
      %p33 = scmp.ge.s32.totalorder %s32, 4
      %s42 = sphi 0, %s44
      %s45 = sphi 0, %s42
      %s46 = sphi 0, %s45
      %s62 = sphi 0, %s46
      %s68 = sphi 0, %s70
      %s71 = sphi 0, %s68
      %s72 = sphi 0, %s71
      %s88 = sphi 0, %s72
      %s94 = sphi 0, %s96
      %s97 = sphi 0, %s94
      %s98 = sphi 0, %s97
      %s114 = sphi 0, %s98
      %s120 = sphi 0, %s122
      %s123 = sphi 0, %s120
      %s124 = sphi 0, %s123
      %s140 = sphi 0, %s124
      %s144 = sphi 0, %s144
      %s146 = sphi 0, %s144
      %s147 = sphi 0, %s146
      %s161 = sphi 0, %s147
      %s167 = sphi 0, %s169
      %s170 = sphi 0, %s167
      %s171 = sphi 0, %s170
      %s187 = sphi 0, %s171
    $region4: #{tpu_custom_call.1} parent=1 // loop_header_branch
      %35 = sbr.rel (%p33) target = $region8
    $region5: #{tpu_custom_call.1} parent=1 // loop_body
      %s37 = ssub.s32 %s32, 1
      %s38 = ssub.s32 %s32, 2
      %s39 = sadd.s32 %s32, 1
      %s40 = ssub.s32 %s32, %s39
      %p41 = scmp.eq.s32.totalorder %s40, 0
      %s43 = sadd.s32 %s42, 1
      %s44 = scalar_select %p41, %s42, %s43
      %p47 = pneg %p41
      %p48 = scmp.eq.s32.totalorder %s32, 1
      %p49 = por %p47, %p48
      %p50 = scmp.ne.s32.totalorder %s42, %s45
      %p51 = scmp.eq.s32.totalorder %s32, 0
      %p52 = por %p50, %p51
      %p53 = scmp.ne.s32.totalorder %s42, %s45
      %p54 = scmp.eq.s32.totalorder %s37, 1
      %p55 = por %p53, %p54
      %p56 = scmp.ne.s32.totalorder %s45, %s46
      %p57 = scmp.eq.s32.totalorder %s37, 0
      %p58 = por %p56, %p57
      %p59 = scmp.ne.s32.totalorder %s45, %s46
      %p60 = scmp.eq.s32.totalorder %s38, 1
      %p61 = por %p59, %p60
      %p63 = scmp.ne.s32.totalorder %s46, %s62
      %p64 = scmp.eq.s32.totalorder %s38, 0
      %p65 = por %p63, %p64
      %s66 = ssub.s32 %s32, %s39
      %p67 = scmp.eq.s32.totalorder %s66, 0
      %s69 = sadd.s32 %s68, 1
      %s70 = scalar_select %p67, %s68, %s69
      %p73 = pneg %p67
      %p74 = scmp.eq.s32.totalorder %s32, 1
      %p75 = por %p73, %p74
      %p76 = scmp.ne.s32.totalorder %s68, %s71
      %p77 = scmp.eq.s32.totalorder %s32, 0
      %p78 = por %p76, %p77
      %p79 = scmp.ne.s32.totalorder %s68, %s71
      %p80 = scmp.eq.s32.totalorder %s37, 1
      %p81 = por %p79, %p80
      %p82 = scmp.ne.s32.totalorder %s71, %s72
      %p83 = scmp.eq.s32.totalorder %s37, 0
      %p84 = por %p82, %p83
      %p85 = scmp.ne.s32.totalorder %s71, %s72
      %p86 = scmp.eq.s32.totalorder %s38, 1
      %p87 = por %p85, %p86
      %p89 = scmp.ne.s32.totalorder %s72, %s88
      %p90 = scmp.eq.s32.totalorder %s38, 0
      %p91 = por %p89, %p90
      %s92 = ssub.s32 %s32, %s39
      %p93 = scmp.eq.s32.totalorder %s92, 0
      %s95 = sadd.s32 %s94, 1
      %s96 = scalar_select %p93, %s94, %s95
      %p99 = pneg %p93
      %p100 = scmp.eq.s32.totalorder %s32, 1
      %p101 = por %p99, %p100
      %p102 = scmp.ne.s32.totalorder %s94, %s97
      %p103 = scmp.eq.s32.totalorder %s32, 0
      %p104 = por %p102, %p103
      %p105 = scmp.ne.s32.totalorder %s94, %s97
      %p106 = scmp.eq.s32.totalorder %s37, 1
      %p107 = por %p105, %p106
      %p108 = scmp.ne.s32.totalorder %s97, %s98
      %p109 = scmp.eq.s32.totalorder %s37, 0
      %p110 = por %p108, %p109
      %p111 = scmp.ne.s32.totalorder %s97, %s98
      %p112 = scmp.eq.s32.totalorder %s38, 1
      %p113 = por %p111, %p112
      %p115 = scmp.ne.s32.totalorder %s98, %s114
      %p116 = scmp.eq.s32.totalorder %s38, 0
      %p117 = por %p115, %p116
      %s118 = ssub.s32 %s32, %s39
      %p119 = scmp.eq.s32.totalorder %s118, 0
      %s121 = sadd.s32 %s120, 1
      %s122 = scalar_select %p119, %s120, %s121
      %p125 = pneg %p119
      %p126 = scmp.eq.s32.totalorder %s32, 1
      %p127 = por %p125, %p126
      %p128 = scmp.ne.s32.totalorder %s120, %s123
      %p129 = scmp.eq.s32.totalorder %s32, 0
      %p130 = por %p128, %p129
      %p131 = scmp.ne.s32.totalorder %s120, %s123
      %p132 = scmp.eq.s32.totalorder %s37, 1
      %p133 = por %p131, %p132
      %p134 = scmp.ne.s32.totalorder %s123, %s124
      %p135 = scmp.eq.s32.totalorder %s37, 0
      %p136 = por %p134, %p135
      %p137 = scmp.ne.s32.totalorder %s123, %s124
      %p138 = scmp.eq.s32.totalorder %s38, 1
      %p139 = por %p137, %p138
      %p141 = scmp.ne.s32.totalorder %s124, %s140
      %p142 = scmp.eq.s32.totalorder %s38, 0
      %p143 = por %p141, %p142
      %s145 = sadd.s32 %s144, 1
      %p148 = scmp.eq.s32.totalorder %s32, 1
      %p149 = scmp.ne.s32.totalorder %s144, %s146
      %p150 = scmp.eq.s32.totalorder %s32, 0
      %p151 = por %p149, %p150
      %p152 = scmp.ne.s32.totalorder %s144, %s146
      %p153 = scmp.eq.s32.totalorder %s37, 1
      %p154 = por %p152, %p153
      %p155 = scmp.ne.s32.totalorder %s146, %s147
      %p156 = scmp.eq.s32.totalorder %s37, 0
      %p157 = por %p155, %p156
      %p158 = scmp.ne.s32.totalorder %s146, %s147
      %p159 = scmp.eq.s32.totalorder %s38, 1
      %p160 = por %p158, %p159
      %p162 = scmp.ne.s32.totalorder %s147, %s161
      %p163 = scmp.eq.s32.totalorder %s38, 0
      %p164 = por %p162, %p163
      %s165 = ssub.s32 %s32, %s39
      %p166 = scmp.eq.s32.totalorder %s165, 0
      %s168 = sadd.s32 %s167, 1
      %s169 = scalar_select %p166, %s167, %s168
      %p172 = pneg %p166
      %p173 = scmp.eq.s32.totalorder %s32, 1
      %p174 = por %p172, %p173
      %p175 = scmp.ne.s32.totalorder %s167, %s170
      %p176 = scmp.eq.s32.totalorder %s32, 0
      %p177 = por %p175, %p176
      %p178 = scmp.ne.s32.totalorder %s167, %s170
      %p179 = scmp.eq.s32.totalorder %s37, 1
      %p180 = por %p178, %p179
      %p181 = scmp.ne.s32.totalorder %s170, %s171
      %p182 = scmp.eq.s32.totalorder %s37, 0
      %p183 = por %p181, %p182
      %p184 = scmp.ne.s32.totalorder %s170, %s171
      %p185 = scmp.eq.s32.totalorder %s38, 1
      %p186 = por %p184, %p185
      %p188 = scmp.ne.s32.totalorder %s171, %s187
      %p189 = scmp.eq.s32.totalorder %s38, 0
      %p190 = por %p188, %p189
      %p191 = scmp.le.s32.totalorder 1, %s32
      %p192 = scmp.lt.s32.totalorder %s32, 3
      %p193 = pnand %p191, %p192
      %p194 = pneg %p193
      // Predicated region
      $region9: #{tpu_custom_call.1} parent=5 // pred_check
        _
      $region10: #{tpu_custom_call.1} parent=5 // pred_check_branch
        %196 = sbr.rel (%p193) target = $region12
      $region11: #{tpu_custom_call.1} parent=5 // pred_region
        %s197 = ssub.s32 %s32, 1
        // Predicated region
        $region13: #{tpu_custom_call.1} parent=11 // pred_check
          %p198 = pneg %p157
        $region14: #{tpu_custom_call.1} parent=11 // pred_check_branch
          %200 = sbr.rel (%p198) target = $region16
        $region15: #{tpu_custom_call.1} parent=11 // pred_region
          %202 = vsyncadd [#allocation11], 0
          %s203 = sshll.u32 %s5, 4
          %s204 = int_to_ptr.hbm [resolvable:$true] %s203
          %s205 = sshll.u32 [#allocation12], 4
          %s206 = int_to_ptr.vmem [resolvable:$true] %s205
          %211 = dma.hbm_to_vmem [thread:$0]  %s204, 2048, %s206, [#allocation11], 128, 128, 8
        $region16: #{tpu_custom_call.1} parent=11 // pred_fallthru
          _
      $region12: #{tpu_custom_call.1} parent=5 // pred_fallthru
        _
      %p212 = scmp.lt.s32.totalorder %s32, 2
      // Predicated region
      $region17: #{tpu_custom_call.1} parent=5 // pred_check
        %p213 = pneg %p212
      $region18: #{tpu_custom_call.1} parent=5 // pred_check_branch
        %215 = sbr.rel (%p213) target = $region20
      $region19: #{tpu_custom_call.1} parent=5 // pred_region
        // Predicated region
        $region21: #{tpu_custom_call.1} parent=19 // pred_check
          %p216 = pneg %p52
        $region22: #{tpu_custom_call.1} parent=19 // pred_check_branch
          %218 = sbr.rel (%p216) target = $region24
        $region23: #{tpu_custom_call.1} parent=19 // pred_region
          %s219 = sand.u32 %s42, 1
          %s220 = scalar_lea.sflag [#allocation5], %s219
          %s221 = sand.u32 %s42, 1
          %s222 = smul.addr %s221, 8
          %s223 = scalar_lea.vmem [#allocation4], %s222
          %225 = vsyncadd %s220, 0
          %s226 = smul.addr %s32, 8
          %s227 = scalar_lea.hbm %s1, %s226
          %s229 = sshll.u32 %s227, 4
          %s230 = int_to_ptr.hbm [resolvable:$true] %s229
          %s231 = sshll.u32 %s223, 4
          %s232 = int_to_ptr.vmem [resolvable:$true] %s231
          %234 = dma.hbm_to_vmem [thread:$0]  %s230, 128, %s232, %s220
        $region24: #{tpu_custom_call.1} parent=19 // pred_fallthru
          _
        // Predicated region
        $region25: #{tpu_custom_call.1} parent=19 // pred_check
          %p235 = pneg %p78
        $region26: #{tpu_custom_call.1} parent=19 // pred_check_branch
          %237 = sbr.rel (%p235) target = $region28
        $region27: #{tpu_custom_call.1} parent=19 // pred_region
          %s238 = sand.u32 %s32, 1
          %s239 = scalar_lea.sflag [#allocation8], %s238
          %s240 = sand.u32 %s68, 1
          %s241 = smul.addr %s240, 8
          %s242 = scalar_lea.vmem [#allocation7], %s241
          %244 = vsyncadd %s239, 0
          %s245 = smul.addr %s32, 8
          %s246 = scalar_lea.hbm %s2, %s245
          %s248 = sshll.u32 %s246, 4
          %s249 = int_to_ptr.hbm [resolvable:$true] %s248
          %s250 = sshll.u32 %s242, 4
          %s251 = int_to_ptr.vmem [resolvable:$true] %s250
          %253 = dma.hbm_to_vmem [thread:$0]  %s249, 128, %s251, %s239
        $region28: #{tpu_custom_call.1} parent=19 // pred_fallthru
          _
        // Predicated region
        $region29: #{tpu_custom_call.1} parent=19 // pred_check
          %p254 = pneg %p104
        $region30: #{tpu_custom_call.1} parent=19 // pred_check_branch
          %256 = sbr.rel (%p254) target = $region32
        $region31: #{tpu_custom_call.1} parent=19 // pred_region
          %s257 = sand.u32 %s32, 1
          %s258 = scalar_lea.sflag [#allocation8], %s257
          %s259 = sand.u32 %s94, 1
          %s260 = smul.addr %s259, 8
          %s261 = scalar_lea.vmem [#allocation9], %s260
          %263 = vsyncadd %s258, 0
          %s264 = smul.addr %s32, 8
          %s265 = scalar_lea.hbm %s3, %s264
          %s267 = sshll.u32 %s265, 4
          %s268 = int_to_ptr.hbm [resolvable:$true] %s267
          %s269 = sshll.u32 %s261, 4
          %s270 = int_to_ptr.vmem [resolvable:$true] %s269
          %272 = dma.hbm_to_vmem [thread:$0]  %s268, 128, %s270, %s258
        $region32: #{tpu_custom_call.1} parent=19 // pred_fallthru
          _
        // Predicated region
        $region33: #{tpu_custom_call.1} parent=19 // pred_check
          %p273 = pneg %p130
        $region34: #{tpu_custom_call.1} parent=19 // pred_check_branch
          %275 = sbr.rel (%p273) target = $region36
        $region35: #{tpu_custom_call.1} parent=19 // pred_region
          %s276 = sand.u32 %s32, 1
          %s277 = scalar_lea.sflag [#allocation11], %s276
          %s278 = sand.u32 %s120, 1
          %s279 = smul.addr %s278, 8
          %s280 = scalar_lea.vmem [#allocation10], %s279
          %282 = vsyncadd %s277, 0
          %s283 = smul.addr %s32, 8
          %s284 = scalar_lea.hbm %s4, %s283
          %s286 = sshll.u32 %s284, 4
          %s287 = int_to_ptr.hbm [resolvable:$true] %s286
          %s288 = sshll.u32 %s280, 4
          %s289 = int_to_ptr.vmem [resolvable:$true] %s288
          %291 = dma.hbm_to_vmem [thread:$0]  %s287, 128, %s289, %s277
        $region36: #{tpu_custom_call.1} parent=19 // pred_fallthru
          _
      $region20: #{tpu_custom_call.1} parent=5 // pred_fallthru
        _
      %p292 = scmp.le.s32.totalorder 1, %s32
      %p293 = scmp.lt.s32.totalorder %s32, 3
      %p294 = pnand %p292, %p293
      %p295 = pneg %p294
      // Predicated region
      $region37: #{tpu_custom_call.1} parent=5 // pred_check
        _
      $region38: #{tpu_custom_call.1} parent=5 // pred_check_branch
        %297 = sbr.rel (%p294) target = $region40
      $region39: #{tpu_custom_call.1} parent=5 // pred_region
        %s298 = ssub.s32 %s32, 1
        %s299 = sand.u32 %s45, 1
        %s300 = scalar_lea.sflag [#allocation5], %s299
        %s301 = sand.u32 %s45, 1
        %s302 = smul.addr %s301, 8
        %s303 = scalar_lea.vmem [#allocation4], %s302
        // Predicated region
        $region41: #{tpu_custom_call.1} parent=39 // pred_check
          %p304 = pneg %p58
        $region42: #{tpu_custom_call.1} parent=39 // pred_check_branch
          %306 = sbr.rel (%p304) target = $region44
        $region43: #{tpu_custom_call.1} parent=39 // pred_region
          %308 = dma.done %s300, 128
        $region44: #{tpu_custom_call.1} parent=39 // pred_fallthru
          _
        %s309 = sand.u32 %s37, 1
        %s310 = scalar_lea.sflag [#allocation8], %s309
        %s311 = sand.u32 %s71, 1
        %s312 = smul.addr %s311, 8
        %s313 = scalar_lea.vmem [#allocation7], %s312
        // Predicated region
        $region45: #{tpu_custom_call.1} parent=39 // pred_check
          %p314 = pneg %p84
        $region46: #{tpu_custom_call.1} parent=39 // pred_check_branch
          %316 = sbr.rel (%p314) target = $region48
        $region47: #{tpu_custom_call.1} parent=39 // pred_region
          %318 = dma.done %s310, 128
        $region48: #{tpu_custom_call.1} parent=39 // pred_fallthru
          _
        %s319 = sand.u32 %s37, 1
        %s320 = scalar_lea.sflag [#allocation8], %s319
        %s321 = sand.u32 %s97, 1
        %s322 = smul.addr %s321, 8
        %s323 = scalar_lea.vmem [#allocation9], %s322
        // Predicated region
        $region49: #{tpu_custom_call.1} parent=39 // pred_check
          %p324 = pneg %p110
        $region50: #{tpu_custom_call.1} parent=39 // pred_check_branch
          %326 = sbr.rel (%p324) target = $region52
        $region51: #{tpu_custom_call.1} parent=39 // pred_region
          %328 = dma.done %s320, 128
        $region52: #{tpu_custom_call.1} parent=39 // pred_fallthru
          _
        %s329 = sand.u32 %s37, 1
        %s330 = scalar_lea.sflag [#allocation11], %s329
        %s331 = sand.u32 %s123, 1
        %s332 = smul.addr %s331, 8
        %s333 = scalar_lea.vmem [#allocation10], %s332
        // Predicated region
        $region53: #{tpu_custom_call.1} parent=39 // pred_check
          %p334 = pneg %p136
        $region54: #{tpu_custom_call.1} parent=39 // pred_check_branch
          %336 = sbr.rel (%p334) target = $region56
        $region55: #{tpu_custom_call.1} parent=39 // pred_region
          %338 = dma.done %s330, 128
        $region56: #{tpu_custom_call.1} parent=39 // pred_fallthru
          _
        // Predicated region
        $region57: #{tpu_custom_call.1} parent=39 // pred_check
          %p339 = pneg %p157
        $region58: #{tpu_custom_call.1} parent=39 // pred_check_branch
          %341 = sbr.rel (%p339) target = $region60
        $region59: #{tpu_custom_call.1} parent=39 // pred_region
          %343 = dma.done [#allocation11], 2048
        $region60: #{tpu_custom_call.1} parent=39 // pred_fallthru
          _
        %s344 = sand.u32 %s45, 1
        %s345 = scalar_lea.sflag [#allocation5], %s344
        %s346 = sand.u32 %s45, 1
        %s347 = smul.addr %s346, 8
        %s348 = scalar_lea.vmem [#allocation4], %s347
        %p349 = pneg %p58
        %p350 = pneg %p55
        %s351 = sand.u32 %s37, 1
        %s352 = scalar_lea.sflag [#allocation8], %s351
        %s353 = sand.u32 %s71, 1
        %s354 = smul.addr %s353, 8
        %s355 = scalar_lea.vmem [#allocation7], %s354
        %p356 = pneg %p84
        %p357 = pneg %p81
        %s358 = sand.u32 %s37, 1
        %s359 = scalar_lea.sflag [#allocation8], %s358
        %s360 = sand.u32 %s97, 1
        %s361 = smul.addr %s360, 8
        %s362 = scalar_lea.vmem [#allocation9], %s361
        %p363 = pneg %p110
        %p364 = pneg %p107
        %s365 = sand.u32 %s37, 1
        %s366 = scalar_lea.sflag [#allocation11], %s365
        %s367 = sand.u32 %s123, 1
        %s368 = smul.addr %s367, 8
        %s369 = scalar_lea.vmem [#allocation10], %s368
        %p370 = pneg %p136
        %p371 = pneg %p133
        %p372 = pneg %p157
        %p373 = pneg %p154
        %p374 = pneg %p183
        %p375 = pneg %p180
        %s376 = sand.u32 %s170, 1
        %s377 = scalar_lea.sflag [#allocation6], %s376
        %s378 = sand.u32 %s170, 1
        %s379 = smul.addr %s378, 64
        %s380 = scalar_lea.vmem [#allocation13], %s379
        %s381 = smul.u32 8, %s37
        %v382 = vlaneseq
        %v383 = vshrl.u32 %v382, 7
        %v384 = vadd.s32 %v383, 8
        %v385 = vld [vmem:[%s303] sm:$0xff]
        %v386 = vld [vmem:[%s313] sm:$0xff]
        %v387 = vld [vmem:[%s323] sm:$0xff]
        %v388 = vld [vmem:[%s333] sm:$0xff]
        %v389 = vperm.slane %v385, 0
        %vm390 = vcmp.eq.s32.totalorder %v383, %v389
        %vm391 = vcmp.eq.s32.totalorder %v384, %v389
        %v392 = vperm.slane %v386, 0
        %vm393 = vcmp.eq.s32.totalorder %v383, %v392
        %vm394 = vcmp.eq.s32.totalorder %v384, %v392
        %s395 = smul.u32 %s37, 32
        %s396 = sld [smem:[#allocation3 + %s395]]
        %s397 = smul.u32 %s396, 8
        %s398 = scalar_lea.vmem [#allocation12], %s397
        %v399 = vld [vmem:[%s398] sm:$0xff]
        %v400 = vperm.slane %v387, 0
        %v401 = vsel %vm390, %v400, 0.0
        %v402 = vsel %vm391, %v400, 0.0
        %v403 = vperm.slane %v388, 0
        %v404 = vsel %vm393, %v403, 0.0
        %v405 = vsel %vm394, %v403, 0.0
        %v406 = vadd.f32 %v401, %v404
        %v407 = vadd.f32 %v402, %v405
        %s408 = sadd.s32 %s395, 1
        %s409 = sld [smem:[#allocation3 + %s408]]
        %s410 = smul.u32 %s409, 8
        %s411 = scalar_lea.vmem [#allocation12], %s410
        %v412 = vld [vmem:[%s411] sm:$0xff]
        %414 = vrot.lane.b32.xlu0 %v400, 112
        %v415 = vpop.permute.xlu0 %414
        %v417 = vsel %vm390, %v415, 0.0
        %v418 = vsel %vm391, %v415, 0.0
        %420 = vrot.lane.b32.xlu0 %v403, 112
        %v421 = vpop.permute.xlu0 %420
        %v423 = vsel %vm393, %v421, 0.0
        %v424 = vsel %vm394, %v421, 0.0
        %v425 = vadd.f32 %v417, %v423
        %v426 = vadd.f32 %v418, %v424
        %vm427 = vcmask 130048
        %v429 = vsel %vm427, %v412, 0
        %431 = vmatpush.msra.mxu0 0.0
        %432 = vmatpush.msra.mxu0 0.0
        %433 = vmatpush.msra.mxu0 0.0
        %434 = vmatpush.msra.mxu0 0.0
        %435 = vmatpush.msra.mxu0 0.0
        %436 = vmatpush.msra.mxu0 0.0
        %437 = vmatpush.msra.mxu0 0.0
        %438 = vmatpush.msra.mxu0 0.0
        %439 = vmatpush.msra.mxu0 0.0
        %440 = vmatpush.msra.mxu0 0.0
        %441 = vmatpush.msra.mxu0 0.0
        %442 = vmatpush.msra.mxu0 0.0
        %443 = vmatpush.msra.mxu0 0.0
        %444 = vmatpush.msra.mxu0 0.0
        %445 = vmatpush.msra.mxu0 %v426
        %446 = vmatpush.msra.mxu0 %v425
        %447 = vmatmul.f32.gmra.mxu0 %v429
        %v448 = vpop.f32.mrf.mxu0
        %v449 = vadd.f32 0.0, %v448
        %450 = vdwg.mxu0
        %v452 = vsel %vm427, %v399, 0
        %454 = vmatpush.msra.mxu0 0.0
        %455 = vmatpush.msra.mxu0 0.0
        %456 = vmatpush.msra.mxu0 0.0
        %457 = vmatpush.msra.mxu0 0.0
        %458 = vmatpush.msra.mxu0 0.0
        %459 = vmatpush.msra.mxu0 0.0
        %460 = vmatpush.msra.mxu0 0.0
        %461 = vmatpush.msra.mxu0 0.0
        %462 = vmatpush.msra.mxu0 0.0
        %463 = vmatpush.msra.mxu0 0.0
        %464 = vmatpush.msra.mxu0 0.0
        %465 = vmatpush.msra.mxu0 0.0
        %466 = vmatpush.msra.mxu0 0.0
        %467 = vmatpush.msra.mxu0 0.0
        %468 = vmatpush.msra.mxu0 %v407
        %469 = vmatpush.msra.mxu0 %v406
        %470 = vmatmul.f32.gmra.mxu0 %v452
        %v471 = vpop.f32.mrf.mxu0
        %v472 = vadd.f32 %v449, %v471
        %473 = vdwg.mxu0
        %s474 = sadd.s32 %s395, 2
        %s475 = sld [smem:[#allocation3 + %s474]]
        %s476 = smul.u32 %s475, 8
        %s477 = scalar_lea.vmem [#allocation12], %s476
        %v478 = vld [vmem:[%s477] sm:$0xff]
        %479 = vrot.lane.b32.xlu0 %v400, 96
        %v480 = vpop.permute.xlu0 %479
        %v482 = vsel %vm390, %v480, 0.0
        %v483 = vsel %vm391, %v480, 0.0
        %484 = vrot.lane.b32.xlu0 %v403, 96
        %v485 = vpop.permute.xlu0 %484
        %v487 = vsel %vm393, %v485, 0.0
        %v488 = vsel %vm394, %v485, 0.0
        %v489 = vadd.f32 %v482, %v487
        %v490 = vadd.f32 %v483, %v488
        %v492 = vsel %vm427, %v478, 0
        %494 = vmatpush.msra.mxu0 0.0
        %495 = vmatpush.msra.mxu0 0.0
        %496 = vmatpush.msra.mxu0 0.0
        %497 = vmatpush.msra.mxu0 0.0
        %498 = vmatpush.msra.mxu0 0.0
        %499 = vmatpush.msra.mxu0 0.0
        %500 = vmatpush.msra.mxu0 0.0
        %501 = vmatpush.msra.mxu0 0.0
        %502 = vmatpush.msra.mxu0 0.0
        %503 = vmatpush.msra.mxu0 0.0
        %504 = vmatpush.msra.mxu0 0.0
        %505 = vmatpush.msra.mxu0 0.0
        %506 = vmatpush.msra.mxu0 0.0
        %507 = vmatpush.msra.mxu0 0.0
        %508 = vmatpush.msra.mxu0 %v490
        %509 = vmatpush.msra.mxu0 %v489
        %510 = vmatmul.f32.gmra.mxu0 %v492
        %v511 = vpop.f32.mrf.mxu0
        %v512 = vadd.f32 0.0, %v511
        %513 = vdwg.mxu0
        %v514 = vadd.f32 %v472, %v512
        %s515 = sadd.s32 %s395, 3
        %s516 = sld [smem:[#allocation3 + %s515]]
        %s517 = smul.u32 %s516, 8
        %s518 = scalar_lea.vmem [#allocation12], %s517
        %v519 = vld [vmem:[%s518] sm:$0xff]
        %520 = vrot.lane.b32.xlu0 %v400, 80
        %v521 = vpop.permute.xlu0 %520
        %v523 = vsel %vm390, %v521, 0.0
        %v524 = vsel %vm391, %v521, 0.0
        %525 = vrot.lane.b32.xlu0 %v403, 80
        %v526 = vpop.permute.xlu0 %525
        %v528 = vsel %vm393, %v526, 0.0
        %v529 = vsel %vm394, %v526, 0.0
        %v530 = vadd.f32 %v523, %v528
        %v531 = vadd.f32 %v524, %v529
        %v533 = vsel %vm427, %v519, 0
        %535 = vmatpush.msra.mxu0 0.0
        %536 = vmatpush.msra.mxu0 0.0
        %537 = vmatpush.msra.mxu0 0.0
        %538 = vmatpush.msra.mxu0 0.0
        %539 = vmatpush.msra.mxu0 0.0
        %540 = vmatpush.msra.mxu0 0.0
        %541 = vmatpush.msra.mxu0 0.0
        %542 = vmatpush.msra.mxu0 0.0
        %543 = vmatpush.msra.mxu0 0.0
        %544 = vmatpush.msra.mxu0 0.0
        %545 = vmatpush.msra.mxu0 0.0
        %546 = vmatpush.msra.mxu0 0.0
        %547 = vmatpush.msra.mxu0 0.0
        %548 = vmatpush.msra.mxu0 0.0
        %549 = vmatpush.msra.mxu0 %v531
        %550 = vmatpush.msra.mxu0 %v530
        %551 = vmatmul.f32.gmra.mxu0 %v533
        %v552 = vpop.f32.mrf.mxu0
        %v553 = vadd.f32 0.0, %v552
        %554 = vdwg.mxu0
        %v555 = vadd.f32 %v514, %v553
        %556 = vst.msk [vmem:[%s380] sm:$0xff] %vm427, %v555
        %v557 = vperm.slane %v385, 1
        %vm558 = vcmp.eq.s32.totalorder %v383, %v557
        %vm559 = vcmp.eq.s32.totalorder %v384, %v557
        %v560 = vperm.slane %v386, 1
        %vm561 = vcmp.eq.s32.totalorder %v383, %v560
        %vm562 = vcmp.eq.s32.totalorder %v384, %v560
        %s563 = smul.u32 %s37, 8
        %s564 = sadd.s32 %s563, 1
        %s565 = smul.u32 %s564, 4
        %s566 = sld [smem:[#allocation3 + %s565]]
        %s567 = smul.u32 %s566, 8
        %s568 = scalar_lea.vmem [#allocation12], %s567
        %v569 = vld [vmem:[%s568] sm:$0xff]
        %v570 = vperm.slane %v387, 1
        %v571 = vsel %vm558, %v570, 0.0
        %v572 = vsel %vm559, %v570, 0.0
        %v573 = vperm.slane %v388, 1
        %v574 = vsel %vm561, %v573, 0.0
        %v575 = vsel %vm562, %v573, 0.0
        %v576 = vadd.f32 %v571, %v574
        %v577 = vadd.f32 %v572, %v575
        %s578 = sadd.s32 %s565, 1
        %s579 = sld [smem:[#allocation3 + %s578]]
        %s580 = smul.u32 %s579, 8
        %s581 = scalar_lea.vmem [#allocation12], %s580
        %v582 = vld [vmem:[%s581] sm:$0xff]
        %584 = vrot.lane.b32.xlu0 %v570, 112
        %v585 = vpop.permute.xlu0 %584
        %v587 = vsel %vm558, %v585, 0.0
        %v588 = vsel %vm559, %v585, 0.0
        %590 = vrot.lane.b32.xlu0 %v573, 112
        %v591 = vpop.permute.xlu0 %590
        %v593 = vsel %vm561, %v591, 0.0
        %v594 = vsel %vm562, %v591, 0.0
        %v595 = vadd.f32 %v587, %v593
        %v596 = vadd.f32 %v588, %v594
        %v598 = vsel %vm427, %v582, 0
        %600 = vmatpush.msra.mxu0 0.0
        %601 = vmatpush.msra.mxu0 0.0
        %602 = vmatpush.msra.mxu0 0.0
        %603 = vmatpush.msra.mxu0 0.0
        %604 = vmatpush.msra.mxu0 0.0
        %605 = vmatpush.msra.mxu0 0.0
        %606 = vmatpush.msra.mxu0 0.0
        %607 = vmatpush.msra.mxu0 0.0
        %608 = vmatpush.msra.mxu0 0.0
        %609 = vmatpush.msra.mxu0 0.0
        %610 = vmatpush.msra.mxu0 0.0
        %611 = vmatpush.msra.mxu0 0.0
        %612 = vmatpush.msra.mxu0 0.0
        %613 = vmatpush.msra.mxu0 0.0
        %614 = vmatpush.msra.mxu0 %v596
        %615 = vmatpush.msra.mxu0 %v595
        %616 = vmatmul.f32.gmra.mxu0 %v598
        %v617 = vpop.f32.mrf.mxu0
        %v618 = vadd.f32 0.0, %v617
        %619 = vdwg.mxu0
        %v621 = vsel %vm427, %v569, 0
        %623 = vmatpush.msra.mxu0 0.0
        %624 = vmatpush.msra.mxu0 0.0
        %625 = vmatpush.msra.mxu0 0.0
        %626 = vmatpush.msra.mxu0 0.0
        %627 = vmatpush.msra.mxu0 0.0
        %628 = vmatpush.msra.mxu0 0.0
        %629 = vmatpush.msra.mxu0 0.0
        %630 = vmatpush.msra.mxu0 0.0
        %631 = vmatpush.msra.mxu0 0.0
        %632 = vmatpush.msra.mxu0 0.0
        %633 = vmatpush.msra.mxu0 0.0
        %634 = vmatpush.msra.mxu0 0.0
        %635 = vmatpush.msra.mxu0 0.0
        %636 = vmatpush.msra.mxu0 0.0
        %637 = vmatpush.msra.mxu0 %v577
        %638 = vmatpush.msra.mxu0 %v576
        %639 = vmatmul.f32.gmra.mxu0 %v621
        %v640 = vpop.f32.mrf.mxu0
        %v641 = vadd.f32 %v618, %v640
        %642 = vdwg.mxu0
        %s643 = sadd.s32 %s565, 2
        %s644 = sld [smem:[#allocation3 + %s643]]
        %s645 = smul.u32 %s644, 8
        %s646 = scalar_lea.vmem [#allocation12], %s645
        %v647 = vld [vmem:[%s646] sm:$0xff]
        %648 = vrot.lane.b32.xlu0 %v570, 96
        %v649 = vpop.permute.xlu0 %648
        %v651 = vsel %vm558, %v649, 0.0
        %v652 = vsel %vm559, %v649, 0.0
        %653 = vrot.lane.b32.xlu0 %v573, 96
        %v654 = vpop.permute.xlu0 %653
        %v656 = vsel %vm561, %v654, 0.0
        %v657 = vsel %vm562, %v654, 0.0
        %v658 = vadd.f32 %v651, %v656
        %v659 = vadd.f32 %v652, %v657
        %v661 = vsel %vm427, %v647, 0
        %663 = vmatpush.msra.mxu0 0.0
        %664 = vmatpush.msra.mxu0 0.0
        %665 = vmatpush.msra.mxu0 0.0
        %666 = vmatpush.msra.mxu0 0.0
        %667 = vmatpush.msra.mxu0 0.0
        %668 = vmatpush.msra.mxu0 0.0
        %669 = vmatpush.msra.mxu0 0.0
        %670 = vmatpush.msra.mxu0 0.0
        %671 = vmatpush.msra.mxu0 0.0
        %672 = vmatpush.msra.mxu0 0.0
        %673 = vmatpush.msra.mxu0 0.0
        %674 = vmatpush.msra.mxu0 0.0
        %675 = vmatpush.msra.mxu0 0.0
        %676 = vmatpush.msra.mxu0 0.0
        %677 = vmatpush.msra.mxu0 %v659
        %678 = vmatpush.msra.mxu0 %v658
        %679 = vmatmul.f32.gmra.mxu0 %v661
        %v680 = vpop.f32.mrf.mxu0
        %v681 = vadd.f32 0.0, %v680
        %682 = vdwg.mxu0
        %v683 = vadd.f32 %v641, %v681
        %s684 = sadd.s32 %s565, 3
        %s685 = sld [smem:[#allocation3 + %s684]]
        %s686 = smul.u32 %s685, 8
        %s687 = scalar_lea.vmem [#allocation12], %s686
        %v688 = vld [vmem:[%s687] sm:$0xff]
        %689 = vrot.lane.b32.xlu0 %v570, 80
        %v690 = vpop.permute.xlu0 %689
        %v692 = vsel %vm558, %v690, 0.0
        %v693 = vsel %vm559, %v690, 0.0
        %694 = vrot.lane.b32.xlu0 %v573, 80
        %v695 = vpop.permute.xlu0 %694
        %v697 = vsel %vm561, %v695, 0.0
        %v698 = vsel %vm562, %v695, 0.0
        %v699 = vadd.f32 %v692, %v697
        %v700 = vadd.f32 %v693, %v698
        %v702 = vsel %vm427, %v688, 0
        %704 = vmatpush.msra.mxu0 0.0
        %705 = vmatpush.msra.mxu0 0.0
        %706 = vmatpush.msra.mxu0 0.0
        %707 = vmatpush.msra.mxu0 0.0
        %708 = vmatpush.msra.mxu0 0.0
        %709 = vmatpush.msra.mxu0 0.0
        %710 = vmatpush.msra.mxu0 0.0
        %711 = vmatpush.msra.mxu0 0.0
        %712 = vmatpush.msra.mxu0 0.0
        %713 = vmatpush.msra.mxu0 0.0
        %714 = vmatpush.msra.mxu0 0.0
        %715 = vmatpush.msra.mxu0 0.0
        %716 = vmatpush.msra.mxu0 0.0
        %717 = vmatpush.msra.mxu0 0.0
        %718 = vmatpush.msra.mxu0 %v700
        %719 = vmatpush.msra.mxu0 %v699
        %720 = vmatmul.f32.gmra.mxu0 %v702
        %v721 = vpop.f32.mrf.mxu0
        %v722 = vadd.f32 0.0, %v721
        %723 = vdwg.mxu0
        %v724 = vadd.f32 %v683, %v722
        %s725 = scalar_lea.vmem %s380, 8 [#allocation13]
        %726 = vst.msk [vmem:[%s725] sm:$0xff] %vm427, %v724
        %v727 = vperm.slane %v385, 2
        %vm728 = vcmp.eq.s32.totalorder %v383, %v727
        %vm729 = vcmp.eq.s32.totalorder %v384, %v727
        %v730 = vperm.slane %v386, 2
        %vm731 = vcmp.eq.s32.totalorder %v383, %v730
        %vm732 = vcmp.eq.s32.totalorder %v384, %v730
        %s733 = sadd.s32 %s563, 2
        %s734 = smul.u32 %s733, 4
        %s735 = sld [smem:[#allocation3 + %s734]]
        %s736 = smul.u32 %s735, 8
        %s737 = scalar_lea.vmem [#allocation12], %s736
        %v738 = vld [vmem:[%s737] sm:$0xff]
        %v739 = vperm.slane %v387, 2
        %v740 = vsel %vm728, %v739, 0.0
        %v741 = vsel %vm729, %v739, 0.0
        %v742 = vperm.slane %v388, 2
        %v743 = vsel %vm731, %v742, 0.0
        %v744 = vsel %vm732, %v742, 0.0
        %v745 = vadd.f32 %v740, %v743
        %v746 = vadd.f32 %v741, %v744
        %s747 = sadd.s32 %s734, 1
        %s748 = sld [smem:[#allocation3 + %s747]]
        %s749 = smul.u32 %s748, 8
        %s750 = scalar_lea.vmem [#allocation12], %s749
        %v751 = vld [vmem:[%s750] sm:$0xff]
        %753 = vrot.lane.b32.xlu0 %v739, 112
        %v754 = vpop.permute.xlu0 %753
        %v756 = vsel %vm728, %v754, 0.0
        %v757 = vsel %vm729, %v754, 0.0
        %759 = vrot.lane.b32.xlu0 %v742, 112
        %v760 = vpop.permute.xlu0 %759
        %v762 = vsel %vm731, %v760, 0.0
        %v763 = vsel %vm732, %v760, 0.0
        %v764 = vadd.f32 %v756, %v762
        %v765 = vadd.f32 %v757, %v763
        %v767 = vsel %vm427, %v751, 0
        %769 = vmatpush.msra.mxu0 0.0
        %770 = vmatpush.msra.mxu0 0.0
        %771 = vmatpush.msra.mxu0 0.0
        %772 = vmatpush.msra.mxu0 0.0
        %773 = vmatpush.msra.mxu0 0.0
        %774 = vmatpush.msra.mxu0 0.0
        %775 = vmatpush.msra.mxu0 0.0
        %776 = vmatpush.msra.mxu0 0.0
        %777 = vmatpush.msra.mxu0 0.0
        %778 = vmatpush.msra.mxu0 0.0
        %779 = vmatpush.msra.mxu0 0.0
        %780 = vmatpush.msra.mxu0 0.0
        %781 = vmatpush.msra.mxu0 0.0
        %782 = vmatpush.msra.mxu0 0.0
        %783 = vmatpush.msra.mxu0 %v765
        %784 = vmatpush.msra.mxu0 %v764
        %785 = vmatmul.f32.gmra.mxu0 %v767
        %v786 = vpop.f32.mrf.mxu0
        %v787 = vadd.f32 0.0, %v786
        %788 = vdwg.mxu0
        %v790 = vsel %vm427, %v738, 0
        %792 = vmatpush.msra.mxu0 0.0
        %793 = vmatpush.msra.mxu0 0.0
        %794 = vmatpush.msra.mxu0 0.0
        %795 = vmatpush.msra.mxu0 0.0
        %796 = vmatpush.msra.mxu0 0.0
        %797 = vmatpush.msra.mxu0 0.0
        %798 = vmatpush.msra.mxu0 0.0
        %799 = vmatpush.msra.mxu0 0.0
        %800 = vmatpush.msra.mxu0 0.0
        %801 = vmatpush.msra.mxu0 0.0
        %802 = vmatpush.msra.mxu0 0.0
        %803 = vmatpush.msra.mxu0 0.0
        %804 = vmatpush.msra.mxu0 0.0
        %805 = vmatpush.msra.mxu0 0.0
        %806 = vmatpush.msra.mxu0 %v746
        %807 = vmatpush.msra.mxu0 %v745
        %808 = vmatmul.f32.gmra.mxu0 %v790
        %v809 = vpop.f32.mrf.mxu0
        %v810 = vadd.f32 %v787, %v809
        %811 = vdwg.mxu0
        %s812 = sadd.s32 %s734, 2
        %s813 = sld [smem:[#allocation3 + %s812]]
        %s814 = smul.u32 %s813, 8
        %s815 = scalar_lea.vmem [#allocation12], %s814
        %v816 = vld [vmem:[%s815] sm:$0xff]
        %817 = vrot.lane.b32.xlu0 %v739, 96
        %v818 = vpop.permute.xlu0 %817
        %v820 = vsel %vm728, %v818, 0.0
        %v821 = vsel %vm729, %v818, 0.0
        %822 = vrot.lane.b32.xlu0 %v742, 96
        %v823 = vpop.permute.xlu0 %822
        %v825 = vsel %vm731, %v823, 0.0
        %v826 = vsel %vm732, %v823, 0.0
        %v827 = vadd.f32 %v820, %v825
        %v828 = vadd.f32 %v821, %v826
        %v830 = vsel %vm427, %v816, 0
        %832 = vmatpush.msra.mxu0 0.0
        %833 = vmatpush.msra.mxu0 0.0
        %834 = vmatpush.msra.mxu0 0.0
        %835 = vmatpush.msra.mxu0 0.0
        %836 = vmatpush.msra.mxu0 0.0
        %837 = vmatpush.msra.mxu0 0.0
        %838 = vmatpush.msra.mxu0 0.0
        %839 = vmatpush.msra.mxu0 0.0
        %840 = vmatpush.msra.mxu0 0.0
        %841 = vmatpush.msra.mxu0 0.0
        %842 = vmatpush.msra.mxu0 0.0
        %843 = vmatpush.msra.mxu0 0.0
        %844 = vmatpush.msra.mxu0 0.0
        %845 = vmatpush.msra.mxu0 0.0
        %846 = vmatpush.msra.mxu0 %v828
        %847 = vmatpush.msra.mxu0 %v827
        %848 = vmatmul.f32.gmra.mxu0 %v830
        %v849 = vpop.f32.mrf.mxu0
        %v850 = vadd.f32 0.0, %v849
        %851 = vdwg.mxu0
        %v852 = vadd.f32 %v810, %v850
        %s853 = sadd.s32 %s734, 3
        %s854 = sld [smem:[#allocation3 + %s853]]
        %s855 = smul.u32 %s854, 8
        %s856 = scalar_lea.vmem [#allocation12], %s855
        %v857 = vld [vmem:[%s856] sm:$0xff]
        %858 = vrot.lane.b32.xlu0 %v739, 80
        %v859 = vpop.permute.xlu0 %858
        %v861 = vsel %vm728, %v859, 0.0
        %v862 = vsel %vm729, %v859, 0.0
        %863 = vrot.lane.b32.xlu0 %v742, 80
        %v864 = vpop.permute.xlu0 %863
        %v866 = vsel %vm731, %v864, 0.0
        %v867 = vsel %vm732, %v864, 0.0
        %v868 = vadd.f32 %v861, %v866
        %v869 = vadd.f32 %v862, %v867
        %v871 = vsel %vm427, %v857, 0
        %873 = vmatpush.msra.mxu0 0.0
        %874 = vmatpush.msra.mxu0 0.0
        %875 = vmatpush.msra.mxu0 0.0
        %876 = vmatpush.msra.mxu0 0.0
        %877 = vmatpush.msra.mxu0 0.0
        %878 = vmatpush.msra.mxu0 0.0
        %879 = vmatpush.msra.mxu0 0.0
        %880 = vmatpush.msra.mxu0 0.0
        %881 = vmatpush.msra.mxu0 0.0
        %882 = vmatpush.msra.mxu0 0.0
        %883 = vmatpush.msra.mxu0 0.0
        %884 = vmatpush.msra.mxu0 0.0
        %885 = vmatpush.msra.mxu0 0.0
        %886 = vmatpush.msra.mxu0 0.0
        %887 = vmatpush.msra.mxu0 %v869
        %888 = vmatpush.msra.mxu0 %v868
        %889 = vmatmul.f32.gmra.mxu0 %v871
        %v890 = vpop.f32.mrf.mxu0
        %v891 = vadd.f32 0.0, %v890
        %892 = vdwg.mxu0
        %v893 = vadd.f32 %v852, %v891
        %s894 = scalar_lea.vmem %s380, 16 [#allocation13]
        %895 = vst.msk [vmem:[%s894] sm:$0xff] %vm427, %v893
        %v896 = vperm.slane %v385, 3
        %vm897 = vcmp.eq.s32.totalorder %v383, %v896
        %vm898 = vcmp.eq.s32.totalorder %v384, %v896
        %v899 = vperm.slane %v386, 3
        %vm900 = vcmp.eq.s32.totalorder %v383, %v899
        %vm901 = vcmp.eq.s32.totalorder %v384, %v899
        %s902 = sadd.s32 %s563, 3
        %s903 = smul.u32 %s902, 4
        %s904 = sld [smem:[#allocation3 + %s903]]
        %s905 = smul.u32 %s904, 8
        %s906 = scalar_lea.vmem [#allocation12], %s905
        %v907 = vld [vmem:[%s906] sm:$0xff]
        %v908 = vperm.slane %v387, 3
        %v909 = vsel %vm897, %v908, 0.0
        %v910 = vsel %vm898, %v908, 0.0
        %v911 = vperm.slane %v388, 3
        %v912 = vsel %vm900, %v911, 0.0
        %v913 = vsel %vm901, %v911, 0.0
        %v914 = vadd.f32 %v909, %v912
        %v915 = vadd.f32 %v910, %v913
        %s916 = sadd.s32 %s903, 1
        %s917 = sld [smem:[#allocation3 + %s916]]
        %s918 = smul.u32 %s917, 8
        %s919 = scalar_lea.vmem [#allocation12], %s918
        %v920 = vld [vmem:[%s919] sm:$0xff]
        %922 = vrot.lane.b32.xlu0 %v908, 112
        %v923 = vpop.permute.xlu0 %922
        %v925 = vsel %vm897, %v923, 0.0
        %v926 = vsel %vm898, %v923, 0.0
        %928 = vrot.lane.b32.xlu0 %v911, 112
        %v929 = vpop.permute.xlu0 %928
        %v931 = vsel %vm900, %v929, 0.0
        %v932 = vsel %vm901, %v929, 0.0
        %v933 = vadd.f32 %v925, %v931
        %v934 = vadd.f32 %v926, %v932
        %v936 = vsel %vm427, %v920, 0
        %938 = vmatpush.msra.mxu0 0.0
        %939 = vmatpush.msra.mxu0 0.0
        %940 = vmatpush.msra.mxu0 0.0
        %941 = vmatpush.msra.mxu0 0.0
        %942 = vmatpush.msra.mxu0 0.0
        %943 = vmatpush.msra.mxu0 0.0
        %944 = vmatpush.msra.mxu0 0.0
        %945 = vmatpush.msra.mxu0 0.0
        %946 = vmatpush.msra.mxu0 0.0
        %947 = vmatpush.msra.mxu0 0.0
        %948 = vmatpush.msra.mxu0 0.0
        %949 = vmatpush.msra.mxu0 0.0
        %950 = vmatpush.msra.mxu0 0.0
        %951 = vmatpush.msra.mxu0 0.0
        %952 = vmatpush.msra.mxu0 %v934
        %953 = vmatpush.msra.mxu0 %v933
        %954 = vmatmul.f32.gmra.mxu0 %v936
        %v955 = vpop.f32.mrf.mxu0
        %v956 = vadd.f32 0.0, %v955
        %957 = vdwg.mxu0
        %v959 = vsel %vm427, %v907, 0
        %961 = vmatpush.msra.mxu0 0.0
        %962 = vmatpush.msra.mxu0 0.0
        %963 = vmatpush.msra.mxu0 0.0
        %964 = vmatpush.msra.mxu0 0.0
        %965 = vmatpush.msra.mxu0 0.0
        %966 = vmatpush.msra.mxu0 0.0
        %967 = vmatpush.msra.mxu0 0.0
        %968 = vmatpush.msra.mxu0 0.0
        %969 = vmatpush.msra.mxu0 0.0
        %970 = vmatpush.msra.mxu0 0.0
        %971 = vmatpush.msra.mxu0 0.0
        %972 = vmatpush.msra.mxu0 0.0
        %973 = vmatpush.msra.mxu0 0.0
        %974 = vmatpush.msra.mxu0 0.0
        %975 = vmatpush.msra.mxu0 %v915
        %976 = vmatpush.msra.mxu0 %v914
        %977 = vmatmul.f32.gmra.mxu0 %v959
        %v978 = vpop.f32.mrf.mxu0
        %v979 = vadd.f32 %v956, %v978
        %980 = vdwg.mxu0
        %s981 = sadd.s32 %s903, 2
        %s982 = sld [smem:[#allocation3 + %s981]]
        %s983 = smul.u32 %s982, 8
        %s984 = scalar_lea.vmem [#allocation12], %s983
        %v985 = vld [vmem:[%s984] sm:$0xff]
        %986 = vrot.lane.b32.xlu0 %v908, 96
        %v987 = vpop.permute.xlu0 %986
        %v989 = vsel %vm897, %v987, 0.0
        %v990 = vsel %vm898, %v987, 0.0
        %991 = vrot.lane.b32.xlu0 %v911, 96
        %v992 = vpop.permute.xlu0 %991
        %v994 = vsel %vm900, %v992, 0.0
        %v995 = vsel %vm901, %v992, 0.0
        %v996 = vadd.f32 %v989, %v994
        %v997 = vadd.f32 %v990, %v995
        %v999 = vsel %vm427, %v985, 0
        %1001 = vmatpush.msra.mxu0 0.0
        %1002 = vmatpush.msra.mxu0 0.0
        %1003 = vmatpush.msra.mxu0 0.0
        %1004 = vmatpush.msra.mxu0 0.0
        %1005 = vmatpush.msra.mxu0 0.0
        %1006 = vmatpush.msra.mxu0 0.0
        %1007 = vmatpush.msra.mxu0 0.0
        %1008 = vmatpush.msra.mxu0 0.0
        %1009 = vmatpush.msra.mxu0 0.0
        %1010 = vmatpush.msra.mxu0 0.0
        %1011 = vmatpush.msra.mxu0 0.0
        %1012 = vmatpush.msra.mxu0 0.0
        %1013 = vmatpush.msra.mxu0 0.0
        %1014 = vmatpush.msra.mxu0 0.0
        %1015 = vmatpush.msra.mxu0 %v997
        %1016 = vmatpush.msra.mxu0 %v996
        %1017 = vmatmul.f32.gmra.mxu0 %v999
        %v1018 = vpop.f32.mrf.mxu0
        %v1019 = vadd.f32 0.0, %v1018
        %1020 = vdwg.mxu0
        %v1021 = vadd.f32 %v979, %v1019
        %s1022 = sadd.s32 %s903, 3
        %s1023 = sld [smem:[#allocation3 + %s1022]]
        %s1024 = smul.u32 %s1023, 8
        %s1025 = scalar_lea.vmem [#allocation12], %s1024
        %v1026 = vld [vmem:[%s1025] sm:$0xff]
        %1027 = vrot.lane.b32.xlu0 %v908, 80
        %v1028 = vpop.permute.xlu0 %1027
        %v1030 = vsel %vm897, %v1028, 0.0
        %v1031 = vsel %vm898, %v1028, 0.0
        %1032 = vrot.lane.b32.xlu0 %v911, 80
        %v1033 = vpop.permute.xlu0 %1032
        %v1035 = vsel %vm900, %v1033, 0.0
        %v1036 = vsel %vm901, %v1033, 0.0
        %v1037 = vadd.f32 %v1030, %v1035
        %v1038 = vadd.f32 %v1031, %v1036
        %v1040 = vsel %vm427, %v1026, 0
        %1042 = vmatpush.msra.mxu0 0.0
        %1043 = vmatpush.msra.mxu0 0.0
        %1044 = vmatpush.msra.mxu0 0.0
        %1045 = vmatpush.msra.mxu0 0.0
        %1046 = vmatpush.msra.mxu0 0.0
        %1047 = vmatpush.msra.mxu0 0.0
        %1048 = vmatpush.msra.mxu0 0.0
        %1049 = vmatpush.msra.mxu0 0.0
        %1050 = vmatpush.msra.mxu0 0.0
        %1051 = vmatpush.msra.mxu0 0.0
        %1052 = vmatpush.msra.mxu0 0.0
        %1053 = vmatpush.msra.mxu0 0.0
        %1054 = vmatpush.msra.mxu0 0.0
        %1055 = vmatpush.msra.mxu0 0.0
        %1056 = vmatpush.msra.mxu0 %v1038
        %1057 = vmatpush.msra.mxu0 %v1037
        %1058 = vmatmul.f32.gmra.mxu0 %v1040
        %v1059 = vpop.f32.mrf.mxu0
        %v1060 = vadd.f32 0.0, %v1059
        %1061 = vdwg.mxu0
        %v1062 = vadd.f32 %v1021, %v1060
        %s1063 = scalar_lea.vmem %s380, 24 [#allocation13]
        %1064 = vst.msk [vmem:[%s1063] sm:$0xff] %vm427, %v1062
        %v1065 = vperm.slane %v385, 4
        %vm1066 = vcmp.eq.s32.totalorder %v383, %v1065
        %vm1067 = vcmp.eq.s32.totalorder %v384, %v1065
        %v1068 = vperm.slane %v386, 4
        %vm1069 = vcmp.eq.s32.totalorder %v383, %v1068
        %vm1070 = vcmp.eq.s32.totalorder %v384, %v1068
        %s1071 = sadd.s32 %s563, 4
        %s1072 = smul.u32 %s1071, 4
        %s1073 = sld [smem:[#allocation3 + %s1072]]
        %s1074 = smul.u32 %s1073, 8
        %s1075 = scalar_lea.vmem [#allocation12], %s1074
        %v1076 = vld [vmem:[%s1075] sm:$0xff]
        %v1077 = vperm.slane %v387, 4
        %v1078 = vsel %vm1066, %v1077, 0.0
        %v1079 = vsel %vm1067, %v1077, 0.0
        %v1080 = vperm.slane %v388, 4
        %v1081 = vsel %vm1069, %v1080, 0.0
        %v1082 = vsel %vm1070, %v1080, 0.0
        %v1083 = vadd.f32 %v1078, %v1081
        %v1084 = vadd.f32 %v1079, %v1082
        %s1085 = sadd.s32 %s1072, 1
        %s1086 = sld [smem:[#allocation3 + %s1085]]
        %s1087 = smul.u32 %s1086, 8
        %s1088 = scalar_lea.vmem [#allocation12], %s1087
        %v1089 = vld [vmem:[%s1088] sm:$0xff]
        %1091 = vrot.lane.b32.xlu0 %v1077, 112
        %v1092 = vpop.permute.xlu0 %1091
        %v1094 = vsel %vm1066, %v1092, 0.0
        %v1095 = vsel %vm1067, %v1092, 0.0
        %1097 = vrot.lane.b32.xlu0 %v1080, 112
        %v1098 = vpop.permute.xlu0 %1097
        %v1100 = vsel %vm1069, %v1098, 0.0
        %v1101 = vsel %vm1070, %v1098, 0.0
        %v1102 = vadd.f32 %v1094, %v1100
        %v1103 = vadd.f32 %v1095, %v1101
        %v1105 = vsel %vm427, %v1089, 0
        %1107 = vmatpush.msra.mxu0 0.0
        %1108 = vmatpush.msra.mxu0 0.0
        %1109 = vmatpush.msra.mxu0 0.0
        %1110 = vmatpush.msra.mxu0 0.0
        %1111 = vmatpush.msra.mxu0 0.0
        %1112 = vmatpush.msra.mxu0 0.0
        %1113 = vmatpush.msra.mxu0 0.0
        %1114 = vmatpush.msra.mxu0 0.0
        %1115 = vmatpush.msra.mxu0 0.0
        %1116 = vmatpush.msra.mxu0 0.0
        %1117 = vmatpush.msra.mxu0 0.0
        %1118 = vmatpush.msra.mxu0 0.0
        %1119 = vmatpush.msra.mxu0 0.0
        %1120 = vmatpush.msra.mxu0 0.0
        %1121 = vmatpush.msra.mxu0 %v1103
        %1122 = vmatpush.msra.mxu0 %v1102
        %1123 = vmatmul.f32.gmra.mxu0 %v1105
        %v1124 = vpop.f32.mrf.mxu0
        %v1125 = vadd.f32 0.0, %v1124
        %1126 = vdwg.mxu0
        %v1128 = vsel %vm427, %v1076, 0
        %1130 = vmatpush.msra.mxu0 0.0
        %1131 = vmatpush.msra.mxu0 0.0
        %1132 = vmatpush.msra.mxu0 0.0
        %1133 = vmatpush.msra.mxu0 0.0
        %1134 = vmatpush.msra.mxu0 0.0
        %1135 = vmatpush.msra.mxu0 0.0
        %1136 = vmatpush.msra.mxu0 0.0
        %1137 = vmatpush.msra.mxu0 0.0
        %1138 = vmatpush.msra.mxu0 0.0
        %1139 = vmatpush.msra.mxu0 0.0
        %1140 = vmatpush.msra.mxu0 0.0
        %1141 = vmatpush.msra.mxu0 0.0
        %1142 = vmatpush.msra.mxu0 0.0
        %1143 = vmatpush.msra.mxu0 0.0
        %1144 = vmatpush.msra.mxu0 %v1084
        %1145 = vmatpush.msra.mxu0 %v1083
        %1146 = vmatmul.f32.gmra.mxu0 %v1128
        %v1147 = vpop.f32.mrf.mxu0
        %v1148 = vadd.f32 %v1125, %v1147
        %1149 = vdwg.mxu0
        %s1150 = sadd.s32 %s1072, 2
        %s1151 = sld [smem:[#allocation3 + %s1150]]
        %s1152 = smul.u32 %s1151, 8
        %s1153 = scalar_lea.vmem [#allocation12], %s1152
        %v1154 = vld [vmem:[%s1153] sm:$0xff]
        %1155 = vrot.lane.b32.xlu0 %v1077, 96
        %v1156 = vpop.permute.xlu0 %1155
        %v1158 = vsel %vm1066, %v1156, 0.0
        %v1159 = vsel %vm1067, %v1156, 0.0
        %1160 = vrot.lane.b32.xlu0 %v1080, 96
        %v1161 = vpop.permute.xlu0 %1160
        %v1163 = vsel %vm1069, %v1161, 0.0
        %v1164 = vsel %vm1070, %v1161, 0.0
        %v1165 = vadd.f32 %v1158, %v1163
        %v1166 = vadd.f32 %v1159, %v1164
        %v1168 = vsel %vm427, %v1154, 0
        %1170 = vmatpush.msra.mxu0 0.0
        %1171 = vmatpush.msra.mxu0 0.0
        %1172 = vmatpush.msra.mxu0 0.0
        %1173 = vmatpush.msra.mxu0 0.0
        %1174 = vmatpush.msra.mxu0 0.0
        %1175 = vmatpush.msra.mxu0 0.0
        %1176 = vmatpush.msra.mxu0 0.0
        %1177 = vmatpush.msra.mxu0 0.0
        %1178 = vmatpush.msra.mxu0 0.0
        %1179 = vmatpush.msra.mxu0 0.0
        %1180 = vmatpush.msra.mxu0 0.0
        %1181 = vmatpush.msra.mxu0 0.0
        %1182 = vmatpush.msra.mxu0 0.0
        %1183 = vmatpush.msra.mxu0 0.0
        %1184 = vmatpush.msra.mxu0 %v1166
        %1185 = vmatpush.msra.mxu0 %v1165
        %1186 = vmatmul.f32.gmra.mxu0 %v1168
        %v1187 = vpop.f32.mrf.mxu0
        %v1188 = vadd.f32 0.0, %v1187
        %1189 = vdwg.mxu0
        %v1190 = vadd.f32 %v1148, %v1188
        %s1191 = sadd.s32 %s1072, 3
        %s1192 = sld [smem:[#allocation3 + %s1191]]
        %s1193 = smul.u32 %s1192, 8
        %s1194 = scalar_lea.vmem [#allocation12], %s1193
        %v1195 = vld [vmem:[%s1194] sm:$0xff]
        %1196 = vrot.lane.b32.xlu0 %v1077, 80
        %v1197 = vpop.permute.xlu0 %1196
        %v1199 = vsel %vm1066, %v1197, 0.0
        %v1200 = vsel %vm1067, %v1197, 0.0
        %1201 = vrot.lane.b32.xlu0 %v1080, 80
        %v1202 = vpop.permute.xlu0 %1201
        %v1204 = vsel %vm1069, %v1202, 0.0
        %v1205 = vsel %vm1070, %v1202, 0.0
        %v1206 = vadd.f32 %v1199, %v1204
        %v1207 = vadd.f32 %v1200, %v1205
        %v1209 = vsel %vm427, %v1195, 0
        %1211 = vmatpush.msra.mxu0 0.0
        %1212 = vmatpush.msra.mxu0 0.0
        %1213 = vmatpush.msra.mxu0 0.0
        %1214 = vmatpush.msra.mxu0 0.0
        %1215 = vmatpush.msra.mxu0 0.0
        %1216 = vmatpush.msra.mxu0 0.0
        %1217 = vmatpush.msra.mxu0 0.0
        %1218 = vmatpush.msra.mxu0 0.0
        %1219 = vmatpush.msra.mxu0 0.0
        %1220 = vmatpush.msra.mxu0 0.0
        %1221 = vmatpush.msra.mxu0 0.0
        %1222 = vmatpush.msra.mxu0 0.0
        %1223 = vmatpush.msra.mxu0 0.0
        %1224 = vmatpush.msra.mxu0 0.0
        %1225 = vmatpush.msra.mxu0 %v1207
        %1226 = vmatpush.msra.mxu0 %v1206
        %1227 = vmatmul.f32.gmra.mxu0 %v1209
        %v1228 = vpop.f32.mrf.mxu0
        %v1229 = vadd.f32 0.0, %v1228
        %1230 = vdwg.mxu0
        %v1231 = vadd.f32 %v1190, %v1229
        %s1232 = scalar_lea.vmem %s380, 32 [#allocation13]
        %1233 = vst.msk [vmem:[%s1232] sm:$0xff] %vm427, %v1231
        %v1234 = vperm.slane %v385, 5
        %vm1235 = vcmp.eq.s32.totalorder %v383, %v1234
        %vm1236 = vcmp.eq.s32.totalorder %v384, %v1234
        %v1237 = vperm.slane %v386, 5
        %vm1238 = vcmp.eq.s32.totalorder %v383, %v1237
        %vm1239 = vcmp.eq.s32.totalorder %v384, %v1237
        %s1240 = sadd.s32 %s563, 5
        %s1241 = smul.u32 %s1240, 4
        %s1242 = sld [smem:[#allocation3 + %s1241]]
        %s1243 = smul.u32 %s1242, 8
        %s1244 = scalar_lea.vmem [#allocation12], %s1243
        %v1245 = vld [vmem:[%s1244] sm:$0xff]
        %v1246 = vperm.slane %v387, 5
        %v1247 = vsel %vm1235, %v1246, 0.0
        %v1248 = vsel %vm1236, %v1246, 0.0
        %v1249 = vperm.slane %v388, 5
        %v1250 = vsel %vm1238, %v1249, 0.0
        %v1251 = vsel %vm1239, %v1249, 0.0
        %v1252 = vadd.f32 %v1247, %v1250
        %v1253 = vadd.f32 %v1248, %v1251
        %s1254 = sadd.s32 %s1241, 1
        %s1255 = sld [smem:[#allocation3 + %s1254]]
        %s1256 = smul.u32 %s1255, 8
        %s1257 = scalar_lea.vmem [#allocation12], %s1256
        %v1258 = vld [vmem:[%s1257] sm:$0xff]
        %1260 = vrot.lane.b32.xlu0 %v1246, 112
        %v1261 = vpop.permute.xlu0 %1260
        %v1263 = vsel %vm1235, %v1261, 0.0
        %v1264 = vsel %vm1236, %v1261, 0.0
        %1266 = vrot.lane.b32.xlu0 %v1249, 112
        %v1267 = vpop.permute.xlu0 %1266
        %v1269 = vsel %vm1238, %v1267, 0.0
        %v1270 = vsel %vm1239, %v1267, 0.0
        %v1271 = vadd.f32 %v1263, %v1269
        %v1272 = vadd.f32 %v1264, %v1270
        %v1274 = vsel %vm427, %v1258, 0
        %1276 = vmatpush.msra.mxu0 0.0
        %1277 = vmatpush.msra.mxu0 0.0
        %1278 = vmatpush.msra.mxu0 0.0
        %1279 = vmatpush.msra.mxu0 0.0
        %1280 = vmatpush.msra.mxu0 0.0
        %1281 = vmatpush.msra.mxu0 0.0
        %1282 = vmatpush.msra.mxu0 0.0
        %1283 = vmatpush.msra.mxu0 0.0
        %1284 = vmatpush.msra.mxu0 0.0
        %1285 = vmatpush.msra.mxu0 0.0
        %1286 = vmatpush.msra.mxu0 0.0
        %1287 = vmatpush.msra.mxu0 0.0
        %1288 = vmatpush.msra.mxu0 0.0
        %1289 = vmatpush.msra.mxu0 0.0
        %1290 = vmatpush.msra.mxu0 %v1272
        %1291 = vmatpush.msra.mxu0 %v1271
        %1292 = vmatmul.f32.gmra.mxu0 %v1274
        %v1293 = vpop.f32.mrf.mxu0
        %v1294 = vadd.f32 0.0, %v1293
        %1295 = vdwg.mxu0
        %v1297 = vsel %vm427, %v1245, 0
        %1299 = vmatpush.msra.mxu0 0.0
        %1300 = vmatpush.msra.mxu0 0.0
        %1301 = vmatpush.msra.mxu0 0.0
        %1302 = vmatpush.msra.mxu0 0.0
        %1303 = vmatpush.msra.mxu0 0.0
        %1304 = vmatpush.msra.mxu0 0.0
        %1305 = vmatpush.msra.mxu0 0.0
        %1306 = vmatpush.msra.mxu0 0.0
        %1307 = vmatpush.msra.mxu0 0.0
        %1308 = vmatpush.msra.mxu0 0.0
        %1309 = vmatpush.msra.mxu0 0.0
        %1310 = vmatpush.msra.mxu0 0.0
        %1311 = vmatpush.msra.mxu0 0.0
        %1312 = vmatpush.msra.mxu0 0.0
        %1313 = vmatpush.msra.mxu0 %v1253
        %1314 = vmatpush.msra.mxu0 %v1252
        %1315 = vmatmul.f32.gmra.mxu0 %v1297
        %v1316 = vpop.f32.mrf.mxu0
        %v1317 = vadd.f32 %v1294, %v1316
        %1318 = vdwg.mxu0
        %s1319 = sadd.s32 %s1241, 2
        %s1320 = sld [smem:[#allocation3 + %s1319]]
        %s1321 = smul.u32 %s1320, 8
        %s1322 = scalar_lea.vmem [#allocation12], %s1321
        %v1323 = vld [vmem:[%s1322] sm:$0xff]
        %1324 = vrot.lane.b32.xlu0 %v1246, 96
        %v1325 = vpop.permute.xlu0 %1324
        %v1327 = vsel %vm1235, %v1325, 0.0
        %v1328 = vsel %vm1236, %v1325, 0.0
        %1329 = vrot.lane.b32.xlu0 %v1249, 96
        %v1330 = vpop.permute.xlu0 %1329
        %v1332 = vsel %vm1238, %v1330, 0.0
        %v1333 = vsel %vm1239, %v1330, 0.0
        %v1334 = vadd.f32 %v1327, %v1332
        %v1335 = vadd.f32 %v1328, %v1333
        %v1337 = vsel %vm427, %v1323, 0
        %1339 = vmatpush.msra.mxu0 0.0
        %1340 = vmatpush.msra.mxu0 0.0
        %1341 = vmatpush.msra.mxu0 0.0
        %1342 = vmatpush.msra.mxu0 0.0
        %1343 = vmatpush.msra.mxu0 0.0
        %1344 = vmatpush.msra.mxu0 0.0
        %1345 = vmatpush.msra.mxu0 0.0
        %1346 = vmatpush.msra.mxu0 0.0
        %1347 = vmatpush.msra.mxu0 0.0
        %1348 = vmatpush.msra.mxu0 0.0
        %1349 = vmatpush.msra.mxu0 0.0
        %1350 = vmatpush.msra.mxu0 0.0
        %1351 = vmatpush.msra.mxu0 0.0
        %1352 = vmatpush.msra.mxu0 0.0
        %1353 = vmatpush.msra.mxu0 %v1335
        %1354 = vmatpush.msra.mxu0 %v1334
        %1355 = vmatmul.f32.gmra.mxu0 %v1337
        %v1356 = vpop.f32.mrf.mxu0
        %v1357 = vadd.f32 0.0, %v1356
        %1358 = vdwg.mxu0
        %v1359 = vadd.f32 %v1317, %v1357
        %s1360 = sadd.s32 %s1241, 3
        %s1361 = sld [smem:[#allocation3 + %s1360]]
        %s1362 = smul.u32 %s1361, 8
        %s1363 = scalar_lea.vmem [#allocation12], %s1362
        %v1364 = vld [vmem:[%s1363] sm:$0xff]
        %1365 = vrot.lane.b32.xlu0 %v1246, 80
        %v1366 = vpop.permute.xlu0 %1365
        %v1368 = vsel %vm1235, %v1366, 0.0
        %v1369 = vsel %vm1236, %v1366, 0.0
        %1370 = vrot.lane.b32.xlu0 %v1249, 80
        %v1371 = vpop.permute.xlu0 %1370
        %v1373 = vsel %vm1238, %v1371, 0.0
        %v1374 = vsel %vm1239, %v1371, 0.0
        %v1375 = vadd.f32 %v1368, %v1373
        %v1376 = vadd.f32 %v1369, %v1374
        %v1378 = vsel %vm427, %v1364, 0
        %1380 = vmatpush.msra.mxu0 0.0
        %1381 = vmatpush.msra.mxu0 0.0
        %1382 = vmatpush.msra.mxu0 0.0
        %1383 = vmatpush.msra.mxu0 0.0
        %1384 = vmatpush.msra.mxu0 0.0
        %1385 = vmatpush.msra.mxu0 0.0
        %1386 = vmatpush.msra.mxu0 0.0
        %1387 = vmatpush.msra.mxu0 0.0
        %1388 = vmatpush.msra.mxu0 0.0
        %1389 = vmatpush.msra.mxu0 0.0
        %1390 = vmatpush.msra.mxu0 0.0
        %1391 = vmatpush.msra.mxu0 0.0
        %1392 = vmatpush.msra.mxu0 0.0
        %1393 = vmatpush.msra.mxu0 0.0
        %1394 = vmatpush.msra.mxu0 %v1376
        %1395 = vmatpush.msra.mxu0 %v1375
        %1396 = vmatmul.f32.gmra.mxu0 %v1378
        %v1397 = vpop.f32.mrf.mxu0
        %v1398 = vadd.f32 0.0, %v1397
        %1399 = vdwg.mxu0
        %v1400 = vadd.f32 %v1359, %v1398
        %s1401 = scalar_lea.vmem %s380, 40 [#allocation13]
        %1402 = vst.msk [vmem:[%s1401] sm:$0xff] %vm427, %v1400
        %v1403 = vperm.slane %v385, 6
        %vm1404 = vcmp.eq.s32.totalorder %v383, %v1403
        %vm1405 = vcmp.eq.s32.totalorder %v384, %v1403
        %v1406 = vperm.slane %v386, 6
        %vm1407 = vcmp.eq.s32.totalorder %v383, %v1406
        %vm1408 = vcmp.eq.s32.totalorder %v384, %v1406
        %s1409 = sadd.s32 %s563, 6
        %s1410 = smul.u32 %s1409, 4
        %s1411 = sld [smem:[#allocation3 + %s1410]]
        %s1412 = smul.u32 %s1411, 8
        %s1413 = scalar_lea.vmem [#allocation12], %s1412
        %v1414 = vld [vmem:[%s1413] sm:$0xff]
        %v1415 = vperm.slane %v387, 6
        %v1416 = vsel %vm1404, %v1415, 0.0
        %v1417 = vsel %vm1405, %v1415, 0.0
        %v1418 = vperm.slane %v388, 6
        %v1419 = vsel %vm1407, %v1418, 0.0
        %v1420 = vsel %vm1408, %v1418, 0.0
        %v1421 = vadd.f32 %v1416, %v1419
        %v1422 = vadd.f32 %v1417, %v1420
        %s1423 = sadd.s32 %s1410, 1
        %s1424 = sld [smem:[#allocation3 + %s1423]]
        %s1425 = smul.u32 %s1424, 8
        %s1426 = scalar_lea.vmem [#allocation12], %s1425
        %v1427 = vld [vmem:[%s1426] sm:$0xff]
        %1429 = vrot.lane.b32.xlu0 %v1415, 112
        %v1430 = vpop.permute.xlu0 %1429
        %v1432 = vsel %vm1404, %v1430, 0.0
        %v1433 = vsel %vm1405, %v1430, 0.0
        %1435 = vrot.lane.b32.xlu0 %v1418, 112
        %v1436 = vpop.permute.xlu0 %1435
        %v1438 = vsel %vm1407, %v1436, 0.0
        %v1439 = vsel %vm1408, %v1436, 0.0
        %v1440 = vadd.f32 %v1432, %v1438
        %v1441 = vadd.f32 %v1433, %v1439
        %v1443 = vsel %vm427, %v1427, 0
        %1445 = vmatpush.msra.mxu0 0.0
        %1446 = vmatpush.msra.mxu0 0.0
        %1447 = vmatpush.msra.mxu0 0.0
        %1448 = vmatpush.msra.mxu0 0.0
        %1449 = vmatpush.msra.mxu0 0.0
        %1450 = vmatpush.msra.mxu0 0.0
        %1451 = vmatpush.msra.mxu0 0.0
        %1452 = vmatpush.msra.mxu0 0.0
        %1453 = vmatpush.msra.mxu0 0.0
        %1454 = vmatpush.msra.mxu0 0.0
        %1455 = vmatpush.msra.mxu0 0.0
        %1456 = vmatpush.msra.mxu0 0.0
        %1457 = vmatpush.msra.mxu0 0.0
        %1458 = vmatpush.msra.mxu0 0.0
        %1459 = vmatpush.msra.mxu0 %v1441
        %1460 = vmatpush.msra.mxu0 %v1440
        %1461 = vmatmul.f32.gmra.mxu0 %v1443
        %v1462 = vpop.f32.mrf.mxu0
        %v1463 = vadd.f32 0.0, %v1462
        %1464 = vdwg.mxu0
        %v1466 = vsel %vm427, %v1414, 0
        %1468 = vmatpush.msra.mxu0 0.0
        %1469 = vmatpush.msra.mxu0 0.0
        %1470 = vmatpush.msra.mxu0 0.0
        %1471 = vmatpush.msra.mxu0 0.0
        %1472 = vmatpush.msra.mxu0 0.0
        %1473 = vmatpush.msra.mxu0 0.0
        %1474 = vmatpush.msra.mxu0 0.0
        %1475 = vmatpush.msra.mxu0 0.0
        %1476 = vmatpush.msra.mxu0 0.0
        %1477 = vmatpush.msra.mxu0 0.0
        %1478 = vmatpush.msra.mxu0 0.0
        %1479 = vmatpush.msra.mxu0 0.0
        %1480 = vmatpush.msra.mxu0 0.0
        %1481 = vmatpush.msra.mxu0 0.0
        %1482 = vmatpush.msra.mxu0 %v1422
        %1483 = vmatpush.msra.mxu0 %v1421
        %1484 = vmatmul.f32.gmra.mxu0 %v1466
        %v1485 = vpop.f32.mrf.mxu0
        %v1486 = vadd.f32 %v1463, %v1485
        %1487 = vdwg.mxu0
        %s1488 = sadd.s32 %s1410, 2
        %s1489 = sld [smem:[#allocation3 + %s1488]]
        %s1490 = smul.u32 %s1489, 8
        %s1491 = scalar_lea.vmem [#allocation12], %s1490
        %v1492 = vld [vmem:[%s1491] sm:$0xff]
        %1493 = vrot.lane.b32.xlu0 %v1415, 96
        %v1494 = vpop.permute.xlu0 %1493
        %v1496 = vsel %vm1404, %v1494, 0.0
        %v1497 = vsel %vm1405, %v1494, 0.0
        %1498 = vrot.lane.b32.xlu0 %v1418, 96
        %v1499 = vpop.permute.xlu0 %1498
        %v1501 = vsel %vm1407, %v1499, 0.0
        %v1502 = vsel %vm1408, %v1499, 0.0
        %v1503 = vadd.f32 %v1496, %v1501
        %v1504 = vadd.f32 %v1497, %v1502
        %v1506 = vsel %vm427, %v1492, 0
        %1508 = vmatpush.msra.mxu0 0.0
        %1509 = vmatpush.msra.mxu0 0.0
        %1510 = vmatpush.msra.mxu0 0.0
        %1511 = vmatpush.msra.mxu0 0.0
        %1512 = vmatpush.msra.mxu0 0.0
        %1513 = vmatpush.msra.mxu0 0.0
        %1514 = vmatpush.msra.mxu0 0.0
        %1515 = vmatpush.msra.mxu0 0.0
        %1516 = vmatpush.msra.mxu0 0.0
        %1517 = vmatpush.msra.mxu0 0.0
        %1518 = vmatpush.msra.mxu0 0.0
        %1519 = vmatpush.msra.mxu0 0.0
        %1520 = vmatpush.msra.mxu0 0.0
        %1521 = vmatpush.msra.mxu0 0.0
        %1522 = vmatpush.msra.mxu0 %v1504
        %1523 = vmatpush.msra.mxu0 %v1503
        %1524 = vmatmul.f32.gmra.mxu0 %v1506
        %v1525 = vpop.f32.mrf.mxu0
        %v1526 = vadd.f32 0.0, %v1525
        %1527 = vdwg.mxu0
        %v1528 = vadd.f32 %v1486, %v1526
        %s1529 = sadd.s32 %s1410, 3
        %s1530 = sld [smem:[#allocation3 + %s1529]]
        %s1531 = smul.u32 %s1530, 8
        %s1532 = scalar_lea.vmem [#allocation12], %s1531
        %v1533 = vld [vmem:[%s1532] sm:$0xff]
        %1534 = vrot.lane.b32.xlu0 %v1415, 80
        %v1535 = vpop.permute.xlu0 %1534
        %v1537 = vsel %vm1404, %v1535, 0.0
        %v1538 = vsel %vm1405, %v1535, 0.0
        %1539 = vrot.lane.b32.xlu0 %v1418, 80
        %v1540 = vpop.permute.xlu0 %1539
        %v1542 = vsel %vm1407, %v1540, 0.0
        %v1543 = vsel %vm1408, %v1540, 0.0
        %v1544 = vadd.f32 %v1537, %v1542
        %v1545 = vadd.f32 %v1538, %v1543
        %v1547 = vsel %vm427, %v1533, 0
        %1549 = vmatpush.msra.mxu0 0.0
        %1550 = vmatpush.msra.mxu0 0.0
        %1551 = vmatpush.msra.mxu0 0.0
        %1552 = vmatpush.msra.mxu0 0.0
        %1553 = vmatpush.msra.mxu0 0.0
        %1554 = vmatpush.msra.mxu0 0.0
        %1555 = vmatpush.msra.mxu0 0.0
        %1556 = vmatpush.msra.mxu0 0.0
        %1557 = vmatpush.msra.mxu0 0.0
        %1558 = vmatpush.msra.mxu0 0.0
        %1559 = vmatpush.msra.mxu0 0.0
        %1560 = vmatpush.msra.mxu0 0.0
        %1561 = vmatpush.msra.mxu0 0.0
        %1562 = vmatpush.msra.mxu0 0.0
        %1563 = vmatpush.msra.mxu0 %v1545
        %1564 = vmatpush.msra.mxu0 %v1544
        %1565 = vmatmul.f32.gmra.mxu0 %v1547
        %v1566 = vpop.f32.mrf.mxu0
        %v1567 = vadd.f32 0.0, %v1566
        %1568 = vdwg.mxu0
        %v1569 = vadd.f32 %v1528, %v1567
        %s1570 = scalar_lea.vmem %s380, 48 [#allocation13]
        %1571 = vst.msk [vmem:[%s1570] sm:$0xff] %vm427, %v1569
        %v1572 = vperm.slane %v385, 7
        %vm1573 = vcmp.eq.s32.totalorder %v383, %v1572
        %vm1574 = vcmp.eq.s32.totalorder %v384, %v1572
        %v1575 = vperm.slane %v386, 7
        %vm1576 = vcmp.eq.s32.totalorder %v383, %v1575
        %vm1577 = vcmp.eq.s32.totalorder %v384, %v1575
        %s1578 = sadd.s32 %s563, 7
        %s1579 = smul.u32 %s1578, 4
        %s1580 = sld [smem:[#allocation3 + %s1579]]
        %s1581 = smul.u32 %s1580, 8
        %s1582 = scalar_lea.vmem [#allocation12], %s1581
        %v1583 = vld [vmem:[%s1582] sm:$0xff]
        %v1584 = vperm.slane %v387, 7
        %v1585 = vsel %vm1573, %v1584, 0.0
        %v1586 = vsel %vm1574, %v1584, 0.0
        %v1587 = vperm.slane %v388, 7
        %v1588 = vsel %vm1576, %v1587, 0.0
        %v1589 = vsel %vm1577, %v1587, 0.0
        %v1590 = vadd.f32 %v1585, %v1588
        %v1591 = vadd.f32 %v1586, %v1589
        %s1592 = sadd.s32 %s1579, 1
        %s1593 = sld [smem:[#allocation3 + %s1592]]
        %s1594 = smul.u32 %s1593, 8
        %s1595 = scalar_lea.vmem [#allocation12], %s1594
        %v1596 = vld [vmem:[%s1595] sm:$0xff]
        %1598 = vrot.lane.b32.xlu0 %v1584, 112
        %v1599 = vpop.permute.xlu0 %1598
        %v1601 = vsel %vm1573, %v1599, 0.0
        %v1602 = vsel %vm1574, %v1599, 0.0
        %1604 = vrot.lane.b32.xlu0 %v1587, 112
        %v1605 = vpop.permute.xlu0 %1604
        %v1607 = vsel %vm1576, %v1605, 0.0
        %v1608 = vsel %vm1577, %v1605, 0.0
        %v1609 = vadd.f32 %v1601, %v1607
        %v1610 = vadd.f32 %v1602, %v1608
        %v1612 = vsel %vm427, %v1596, 0
        %1614 = vmatpush.msra.mxu0 0.0
        %1615 = vmatpush.msra.mxu0 0.0
        %1616 = vmatpush.msra.mxu0 0.0
        %1617 = vmatpush.msra.mxu0 0.0
        %1618 = vmatpush.msra.mxu0 0.0
        %1619 = vmatpush.msra.mxu0 0.0
        %1620 = vmatpush.msra.mxu0 0.0
        %1621 = vmatpush.msra.mxu0 0.0
        %1622 = vmatpush.msra.mxu0 0.0
        %1623 = vmatpush.msra.mxu0 0.0
        %1624 = vmatpush.msra.mxu0 0.0
        %1625 = vmatpush.msra.mxu0 0.0
        %1626 = vmatpush.msra.mxu0 0.0
        %1627 = vmatpush.msra.mxu0 0.0
        %1628 = vmatpush.msra.mxu0 %v1610
        %1629 = vmatpush.msra.mxu0 %v1609
        %1630 = vmatmul.f32.gmra.mxu0 %v1612
        %v1631 = vpop.f32.mrf.mxu0
        %v1632 = vadd.f32 0.0, %v1631
        %1633 = vdwg.mxu0
        %v1635 = vsel %vm427, %v1583, 0
        %1637 = vmatpush.msra.mxu0 0.0
        %1638 = vmatpush.msra.mxu0 0.0
        %1639 = vmatpush.msra.mxu0 0.0
        %1640 = vmatpush.msra.mxu0 0.0
        %1641 = vmatpush.msra.mxu0 0.0
        %1642 = vmatpush.msra.mxu0 0.0
        %1643 = vmatpush.msra.mxu0 0.0
        %1644 = vmatpush.msra.mxu0 0.0
        %1645 = vmatpush.msra.mxu0 0.0
        %1646 = vmatpush.msra.mxu0 0.0
        %1647 = vmatpush.msra.mxu0 0.0
        %1648 = vmatpush.msra.mxu0 0.0
        %1649 = vmatpush.msra.mxu0 0.0
        %1650 = vmatpush.msra.mxu0 0.0
        %1651 = vmatpush.msra.mxu0 %v1591
        %1652 = vmatpush.msra.mxu0 %v1590
        %1653 = vmatmul.f32.gmra.mxu0 %v1635
        %v1654 = vpop.f32.mrf.mxu0
        %v1655 = vadd.f32 %v1632, %v1654
        %1656 = vdwg.mxu0
        %s1657 = sadd.s32 %s1579, 2
        %s1658 = sld [smem:[#allocation3 + %s1657]]
        %s1659 = smul.u32 %s1658, 8
        %s1660 = scalar_lea.vmem [#allocation12], %s1659
        %v1661 = vld [vmem:[%s1660] sm:$0xff]
        %1662 = vrot.lane.b32.xlu0 %v1584, 96
        %v1663 = vpop.permute.xlu0 %1662
        %v1665 = vsel %vm1573, %v1663, 0.0
        %v1666 = vsel %vm1574, %v1663, 0.0
        %1667 = vrot.lane.b32.xlu0 %v1587, 96
        %v1668 = vpop.permute.xlu0 %1667
        %v1670 = vsel %vm1576, %v1668, 0.0
        %v1671 = vsel %vm1577, %v1668, 0.0
        %v1672 = vadd.f32 %v1665, %v1670
        %v1673 = vadd.f32 %v1666, %v1671
        %v1675 = vsel %vm427, %v1661, 0
        %1677 = vmatpush.msra.mxu0 0.0
        %1678 = vmatpush.msra.mxu0 0.0
        %1679 = vmatpush.msra.mxu0 0.0
        %1680 = vmatpush.msra.mxu0 0.0
        %1681 = vmatpush.msra.mxu0 0.0
        %1682 = vmatpush.msra.mxu0 0.0
        %1683 = vmatpush.msra.mxu0 0.0
        %1684 = vmatpush.msra.mxu0 0.0
        %1685 = vmatpush.msra.mxu0 0.0
        %1686 = vmatpush.msra.mxu0 0.0
        %1687 = vmatpush.msra.mxu0 0.0
        %1688 = vmatpush.msra.mxu0 0.0
        %1689 = vmatpush.msra.mxu0 0.0
        %1690 = vmatpush.msra.mxu0 0.0
        %1691 = vmatpush.msra.mxu0 %v1673
        %1692 = vmatpush.msra.mxu0 %v1672
        %1693 = vmatmul.f32.gmra.mxu0 %v1675
        %v1694 = vpop.f32.mrf.mxu0
        %v1695 = vadd.f32 0.0, %v1694
        %1696 = vdwg.mxu0
        %v1697 = vadd.f32 %v1655, %v1695
        %s1698 = sadd.s32 %s1579, 3
        %s1699 = sld [smem:[#allocation3 + %s1698]]
        %s1700 = smul.u32 %s1699, 8
        %s1701 = scalar_lea.vmem [#allocation12], %s1700
        %v1702 = vld [vmem:[%s1701] sm:$0xff]
        %1703 = vrot.lane.b32.xlu0 %v1584, 80
        %v1704 = vpop.permute.xlu0 %1703
        %v1706 = vsel %vm1573, %v1704, 0.0
        %v1707 = vsel %vm1574, %v1704, 0.0
        %1708 = vrot.lane.b32.xlu0 %v1587, 80
        %v1709 = vpop.permute.xlu0 %1708
        %v1711 = vsel %vm1576, %v1709, 0.0
        %v1712 = vsel %vm1577, %v1709, 0.0
        %v1713 = vadd.f32 %v1706, %v1711
        %v1714 = vadd.f32 %v1707, %v1712
        %v1716 = vsel %vm427, %v1702, 0
        %1718 = vmatpush.msra.mxu0 0.0
        %1719 = vmatpush.msra.mxu0 0.0
        %1720 = vmatpush.msra.mxu0 0.0
        %1721 = vmatpush.msra.mxu0 0.0
        %1722 = vmatpush.msra.mxu0 0.0
        %1723 = vmatpush.msra.mxu0 0.0
        %1724 = vmatpush.msra.mxu0 0.0
        %1725 = vmatpush.msra.mxu0 0.0
        %1726 = vmatpush.msra.mxu0 0.0
        %1727 = vmatpush.msra.mxu0 0.0
        %1728 = vmatpush.msra.mxu0 0.0
        %1729 = vmatpush.msra.mxu0 0.0
        %1730 = vmatpush.msra.mxu0 0.0
        %1731 = vmatpush.msra.mxu0 0.0
        %1732 = vmatpush.msra.mxu0 %v1714
        %1733 = vmatpush.msra.mxu0 %v1713
        %1734 = vmatmul.f32.gmra.mxu0 %v1716
        %v1735 = vpop.f32.mrf.mxu0
        %v1736 = vadd.f32 0.0, %v1735
        %1737 = vdwg.mxu0
        %v1738 = vadd.f32 %v1697, %v1736
        %s1739 = scalar_lea.vmem %s380, 56 [#allocation13]
        %1740 = vst.msk [vmem:[%s1739] sm:$0xff] %vm427, %v1738
        %s1741 = sand.u32 %s170, 1
        %s1742 = scalar_lea.sflag [#allocation6], %s1741
        %s1743 = sand.u32 %s170, 1
        %s1744 = smul.addr %s1743, 64
        %s1745 = scalar_lea.vmem [#allocation13], %s1744
        // Predicated region
        $region61: #{tpu_custom_call.1} parent=39 // pred_check
          %p1746 = pneg %p180
        $region62: #{tpu_custom_call.1} parent=39 // pred_check_branch
          %1748 = sbr.rel (%p1746) target = $region64
        $region63: #{tpu_custom_call.1} parent=39 // pred_region
          %s1749 = smul.u32 8, %s37
          %1751 = vsyncadd %s1742, 0
          %s1752 = smul.addr %s1749, 8
          %s1753 = scalar_lea.hbm %s6, %s1752
          %s1754 = sshll.u32 %s1745, 4
          %s1755 = int_to_ptr.vmem [resolvable:$true] %s1754
          %s1756 = sshll.u32 %s1753, 4
          %s1757 = int_to_ptr.hbm [resolvable:$true] %s1756
          %1762 = dma.vmem_to_hbm [thread:$0]  %s1755, 1024, %s1757, %s1742, 128, 128, 8
        $region64: #{tpu_custom_call.1} parent=39 // pred_fallthru
          _
      $region40: #{tpu_custom_call.1} parent=5 // pred_fallthru
        _
      %p1763 = scmp.le.s32.totalorder 2, %s32
      // Predicated region
      $region65: #{tpu_custom_call.1} parent=5 // pred_check
        %p1764 = pneg %p1763
      $region66: #{tpu_custom_call.1} parent=5 // pred_check_branch
        %1766 = sbr.rel (%p1764) target = $region68
      $region67: #{tpu_custom_call.1} parent=5 // pred_region
        %s1767 = ssub.s32 %s32, 2
        // Predicated region
        $region69: #{tpu_custom_call.1} parent=67 // pred_check
          %p1768 = pneg %p186
        $region70: #{tpu_custom_call.1} parent=67 // pred_check_branch
          %1770 = sbr.rel (%p1768) target = $region72
        $region71: #{tpu_custom_call.1} parent=67 // pred_region
          %s1771 = sand.u32 %s171, 1
          %s1772 = scalar_lea.sflag [#allocation6], %s1771
          %s1773 = sand.u32 %s171, 1
          %s1774 = smul.addr %s1773, 64
          %s1775 = scalar_lea.vmem [#allocation13], %s1774
          %1777 = dma.done %s1772, 1024
        $region72: #{tpu_custom_call.1} parent=67 // pred_fallthru
          _
      $region68: #{tpu_custom_call.1} parent=5 // pred_fallthru
        _
    $region6: #{tpu_custom_call.1} parent=1 // loop_footer
      %s36 = sadd.s32 1, %s32
    $region7: #{tpu_custom_call.1} parent=1 // loop_footer_branch
      %31 = sbr.rel target = $region3
    $region8: #{tpu_custom_call.1} parent=1 // loop_exit
      _
    %1778 = vsyncpa [#allocation5], 1
    %s1779 = scalar_lea.sflag [#allocation5], 1
    %1780 = vsyncpa %s1779, 1
    %1781 = vsyncpa [#allocation8], 1
    %s1782 = scalar_lea.sflag [#allocation8], 1
    %1783 = vsyncpa %s1782, 1
    %1784 = vsyncpa [#allocation11], 1
    %s1785 = scalar_lea.sflag [#allocation11], 1
    %1786 = vsyncpa %s1785, 1
    %1787 = vsyncpa [#allocation6], 1
    %s1788 = scalar_lea.sflag [#allocation6], 1
    %1789 = vsyncpa %s1788, 1

</llo_original>
